<compile_context>
chip_gen: v7x
topology: tpu7x:2x2x1
jax: 0.10.0
libtpu: 0.0.40
codegen_flags: <defaults>
</compile_context>

<pallas_src>
import jax
import jax.numpy as jnp
from jax.experimental import pallas as pl
from jax.experimental.pallas import tpu as pltpu


def _make_dwconv_kernel(k: int, p: int, h: int, w: int, cb: int):
    """Kernel body for one (batch, channel-block) grid step, channels-last."""

    def kernel(w_ref, b_ref, x_ref, o_ref, xpad_ref):
        # w_ref    : VMEM (k*k, Cb)               BN-folded depthwise weights (lane vectors)
        # b_ref    : VMEM (1, Cb)                 BN-folded per-channel bias
        # x_ref    : VMEM (H, W, Cb)              unpadded input block (channels on lanes)
        # o_ref    : VMEM (H, W, Cb)              output block
        # xpad_ref : VMEM (H+2p, W+2p, Cb) f32    zero-padded scratch slab
        xpad_ref[...] = jnp.zeros_like(xpad_ref)
        xpad_ref[p:p + h, p:p + w, :] = x_ref[...].astype(jnp.float32)

        acc = jnp.zeros((h, w, cb), dtype=jnp.float32)
        for di in range(k):
            for dj in range(k):
                tap = w_ref[di * k + dj, :]                       # (Cb,) lane vector
                acc = acc + xpad_ref[di:di + h, dj:dj + w, :] * tap
        acc = acc + b_ref[0, :]
        o_ref[...] = jnp.clip(acc, 0.0, 6.0).astype(o_ref.dtype)  # ReLU6

    return kernel


def _pick_channel_block(c, h, w, p, itemsize, budget_bytes=16 << 20):
    """Largest legal channel block whose per-step VMEM footprint fits the budget.

    Legal lane-dim block sizes are: the full channel count C, or a divisor of C
    that is a multiple of 128 (TPU lane rule)."""
    if c % 128 == 0:
        cands = [m for m in range(c, 0, -128) if c % m == 0]
    else:
        # TODO(synk): pad awkward channel counts up to a multiple of 128 instead.
        cands = [c]
    for cb in cands:
        per_step = cb * (2 * 2 * h * w * itemsize             # double-buffered in + out
                         + (h + 2 * p) * (w + 2 * p) * 4)     # f32 padded scratch
        if per_step <= budget_bytes:
            return cb
    return cands[-1]


def dwconv(x, dw_weight, gamma, beta, running_mean, running_var, eps=1e-5):
    """Fused depthwise conv (stride 1, 'same' pad) + BatchNorm(eval) + ReLU6.

    Accepts / returns NCHW (PyTorch layout); internally channels-last."""
    n, c, h, w = x.shape
    k = dw_weight.shape[-1]
    p = k // 2

    # ---- fold BatchNorm (inference) into the conv: y = conv(x, w*s) + (beta - mean*s)
    scale = (gamma / jnp.sqrt(running_var + eps)).astype(jnp.float32)       # (C,)
    w_folded = (dw_weight.reshape(c, k * k).astype(jnp.float32)
                * scale[:, None]).T                                          # (k*k, C)
    b_folded = (beta - running_mean * scale).astype(jnp.float32).reshape(1, c)

    # ---- channels-last so channels map onto the 128-wide lane axis in the kernel
    x_nhwc = jnp.transpose(x, (0, 2, 3, 1))                                  # (N,H,W,C)

    cb = _pick_channel_block(c, h, w, p, x.dtype.itemsize)
    kernel = _make_dwconv_kernel(k, p, h, w, cb)

    out_nhwc = pl.pallas_call(
        kernel,
        out_shape=jax.ShapeDtypeStruct((n, h, w, c), x.dtype),
        grid=(n, c // cb),
        in_specs=[
            # folded weights / bias: per-channel-block lane vectors in VMEM
            pl.BlockSpec((k * k, cb), lambda ni, ci: (0, ci)),
            pl.BlockSpec((1, cb), lambda ni, ci: (0, ci)),
            # input: one (H, W, Cb) channels-last slab per grid step (batch squeezed)
            pl.BlockSpec((None, h, w, cb), lambda ni, ci: (ni, 0, 0, ci)),
        ],
        out_specs=pl.BlockSpec((None, h, w, cb), lambda ni, ci: (ni, 0, 0, ci)),
        scratch_shapes=[pltpu.VMEM((h + 2 * p, w + 2 * p, cb), jnp.float32)],
        compiler_params=pltpu.CompilerParams(
            dimension_semantics=("parallel", "parallel"),
            vmem_limit_bytes=32 << 20),
    )(w_folded, b_folded, x_nhwc)

    return jnp.transpose(out_nhwc, (0, 3, 1, 2))                             # back to NCHW


if __name__ == "__main__":
    key = jax.random.PRNGKey(0)
    k1, k2, k3, k4, k5, k6 = jax.random.split(key, 6)

    N, C, H, W, K = 2, 4, 16, 16, 5
    x = jax.random.normal(k1, (N, C, H, W), dtype=jnp.float32)
    dw_w = 0.1 * jax.random.normal(k2, (C, 1, K, K), dtype=jnp.float32)   # PyTorch (C,1,K,K)
    gamma = jax.random.uniform(k3, (C,), minval=0.5, maxval=1.5, dtype=jnp.float32)
    beta = 0.1 * jax.random.normal(k4, (C,), dtype=jnp.float32)
    r_mean = 0.1 * jax.random.normal(k5, (C,), dtype=jnp.float32)
    r_var = jax.random.uniform(k6, (C,), minval=0.5, maxval=1.5, dtype=jnp.float32)

    out = dwconv(x, dw_w, gamma, beta, r_mean, r_var)
    out = jax.block_until_ready(out)

    # pure-JAX reference: depthwise conv -> BN(eval) -> ReLU6, NCHW
    conv = jax.lax.conv_general_dilated(
        x, dw_w, window_strides=(1, 1), padding=[(K // 2, K // 2)] * 2,
        feature_group_count=C, dimension_numbers=("NCHW", "OIHW", "NCHW"),
        precision=jax.lax.Precision.HIGHEST)
    s = gamma / jnp.sqrt(r_var + 1e-5)
    ref = jnp.clip(conv * s[None, :, None, None]
                   + (beta - r_mean * s)[None, :, None, None], 0.0, 6.0)

    assert out.shape == (N, C, H, W)
    assert out.dtype == jnp.float32
    assert bool(jnp.all(jnp.isfinite(out)))
    assert bool(jnp.allclose(out, ref, atol=1e-4, rtol=1e-4)), \
        float(jnp.max(jnp.abs(out - ref)))
    print("KERNEL_OK")
</pallas_src>

<mosaic_0001>
module attributes {stable_mosaic.version = 11 : i64} {
  func.func @kernel(%arg0: i32, %arg1: i32, %arg2: memref<25x4xf32, #tpu.memory_space<vmem>>, %arg3: memref<1x4xf32, #tpu.memory_space<vmem>>, %arg4: memref<1x16x16x4xf32, #tpu.memory_space<vmem>>, %arg5: memref<1x16x16x4xf32, #tpu.memory_space<vmem>>, %arg6: memref<20x20x4xf32, #tpu.memory_space<vmem>>) attributes {dimension_semantics = [#tpu.dimension_semantics<parallel>, #tpu.dimension_semantics<parallel>], iteration_bounds = array<i64: 2, 1>, scalar_prefetch = 0 : i64, scratch_operands = 1 : i64, tpu.core_type = #tpu.core_type<tc>, window_params = [{transform_indices = @transform_0, window_bounds = array<i64: 25, 4>}, {transform_indices = @transform_1, window_bounds = array<i64: 1, 4>}, {transform_indices = @transform_2, window_bounds = array<i64: 1, 16, 16, 4>}, {transform_indices = @transform_3, window_bounds = array<i64: 1, 16, 16, 4>}]} {
    %cst = arith.constant 0.000000e+00 : f32
    %0 = vector.broadcast %cst : f32 to vector<20x20x4xf32>
    %c0 = arith.constant 0 : index
    %c0_0 = arith.constant 0 : index
    %c0_1 = arith.constant 0 : index
    %1 = vector.load %arg6[%c0, %c0_0, %c0_1] : memref<20x20x4xf32, #tpu.memory_space<vmem>>, vector<20x20x4xf32>
    tpu.vector_store %arg6[%c0, %c0_0, %c0_1], %0 {strides = array<i32>} : memref<20x20x4xf32, #tpu.memory_space<vmem>>, vector<20x20x4xf32>,
    %c0_2 = arith.constant 0 : index
    %c0_3 = arith.constant 0 : index
    %c0_4 = arith.constant 0 : index
    %c0_5 = arith.constant 0 : index
    %2 = vector.load %arg4[%c0_2, %c0_3, %c0_4, %c0_5] : memref<1x16x16x4xf32, #tpu.memory_space<vmem>>, vector<1x16x16x4xf32>
    %3 = vector.shape_cast %2 : vector<1x16x16x4xf32> to vector<16x16x4xf32>
    %c2 = arith.constant 2 : index
    %c2_6 = arith.constant 2 : index
    %c0_7 = arith.constant 0 : index
    %4 = vector.load %arg6[%c2, %c2_6, %c0_7] : memref<20x20x4xf32, #tpu.memory_space<vmem>>, vector<16x16x4xf32>
    tpu.vector_store %arg6[%c2, %c2_6, %c0_7], %3 {strides = array<i32>} : memref<20x20x4xf32, #tpu.memory_space<vmem>>, vector<16x16x4xf32>,
    %cst_8 = arith.constant 0.000000e+00 : f32
    %5 = vector.broadcast %cst_8 : f32 to vector<16x16x4xf32>
    %c0_9 = arith.constant 0 : index
    %c0_10 = arith.constant 0 : index
    %6 = vector.load %arg2[%c0_9, %c0_10] : memref<25x4xf32, #tpu.memory_space<vmem>>, vector<1x4xf32>
    %7 = vector.shape_cast %6 : vector<1x4xf32> to vector<4xf32>
    %c0_11 = arith.constant 0 : index
    %c0_12 = arith.constant 0 : index
    %c0_13 = arith.constant 0 : index
    %8 = vector.load %arg6[%c0_11, %c0_12, %c0_13] : memref<20x20x4xf32, #tpu.memory_space<vmem>>, vector<16x16x4xf32>
    %9 = vector.shape_cast %7 : vector<4xf32> to vector<1x1x4xf32>
    %10 = vector.broadcast %9 : vector<1x1x4xf32> to vector<16x16x4xf32>
    %11 = arith.mulf %8, %10 : vector<16x16x4xf32>
    %12 = arith.addf %5, %11 : vector<16x16x4xf32>
    %c1 = arith.constant 1 : index
    %c0_14 = arith.constant 0 : index
    %13 = vector.load %arg2[%c1, %c0_14] : memref<25x4xf32, #tpu.memory_space<vmem>>, vector<1x4xf32>
    %14 = vector.shape_cast %13 : vector<1x4xf32> to vector<4xf32>
    %c0_15 = arith.constant 0 : index
    %c1_16 = arith.constant 1 : index
    %c0_17 = arith.constant 0 : index
    %15 = vector.load %arg6[%c0_15, %c1_16, %c0_17] : memref<20x20x4xf32, #tpu.memory_space<vmem>>, vector<16x16x4xf32>
    %16 = vector.shape_cast %14 : vector<4xf32> to vector<1x1x4xf32>
    %17 = vector.broadcast %16 : vector<1x1x4xf32> to vector<16x16x4xf32>
    %18 = arith.mulf %15, %17 : vector<16x16x4xf32>
    %19 = arith.addf %12, %18 : vector<16x16x4xf32>
    %c2_18 = arith.constant 2 : index
    %c0_19 = arith.constant 0 : index
    %20 = vector.load %arg2[%c2_18, %c0_19] : memref<25x4xf32, #tpu.memory_space<vmem>>, vector<1x4xf32>
    %21 = vector.shape_cast %20 : vector<1x4xf32> to vector<4xf32>
    %c0_20 = arith.constant 0 : index
    %c2_21 = arith.constant 2 : index
    %c0_22 = arith.constant 0 : index
    %22 = vector.load %arg6[%c0_20, %c2_21, %c0_22] : memref<20x20x4xf32, #tpu.memory_space<vmem>>, vector<16x16x4xf32>
    %23 = vector.shape_cast %21 : vector<4xf32> to vector<1x1x4xf32>
    %24 = vector.broadcast %23 : vector<1x1x4xf32> to vector<16x16x4xf32>
    %25 = arith.mulf %22, %24 : vector<16x16x4xf32>
    %26 = arith.addf %19, %25 : vector<16x16x4xf32>
    %c3 = arith.constant 3 : index
    %c0_23 = arith.constant 0 : index
    %27 = vector.load %arg2[%c3, %c0_23] : memref<25x4xf32, #tpu.memory_space<vmem>>, vector<1x4xf32>
    %28 = vector.shape_cast %27 : vector<1x4xf32> to vector<4xf32>
    %c0_24 = arith.constant 0 : index
    %c3_25 = arith.constant 3 : index
    %c0_26 = arith.constant 0 : index
    %29 = vector.load %arg6[%c0_24, %c3_25, %c0_26] : memref<20x20x4xf32, #tpu.memory_space<vmem>>, vector<16x16x4xf32>
    %30 = vector.shape_cast %28 : vector<4xf32> to vector<1x1x4xf32>
    %31 = vector.broadcast %30 : vector<1x1x4xf32> to vector<16x16x4xf32>
    %32 = arith.mulf %29, %31 : vector<16x16x4xf32>
    %33 = arith.addf %26, %32 : vector<16x16x4xf32>
    %c4 = arith.constant 4 : index
    %c0_27 = arith.constant 0 : index
    %34 = vector.load %arg2[%c4, %c0_27] : memref<25x4xf32, #tpu.memory_space<vmem>>, vector<1x4xf32>
    %35 = vector.shape_cast %34 : vector<1x4xf32> to vector<4xf32>
    %c0_28 = arith.constant 0 : index
    %c4_29 = arith.constant 4 : index
    %c0_30 = arith.constant 0 : index
    %36 = vector.load %arg6[%c0_28, %c4_29, %c0_30] : memref<20x20x4xf32, #tpu.memory_space<vmem>>, vector<16x16x4xf32>
    %37 = vector.shape_cast %35 : vector<4xf32> to vector<1x1x4xf32>
    %38 = vector.broadcast %37 : vector<1x1x4xf32> to vector<16x16x4xf32>
    %39 = arith.mulf %36, %38 : vector<16x16x4xf32>
    %40 = arith.addf %33, %39 : vector<16x16x4xf32>
    %c5 = arith.constant 5 : index
    %c0_31 = arith.constant 0 : index
    %41 = vector.load %arg2[%c5, %c0_31] : memref<25x4xf32, #tpu.memory_space<vmem>>, vector<1x4xf32>
    %42 = vector.shape_cast %41 : vector<1x4xf32> to vector<4xf32>
    %c1_32 = arith.constant 1 : index
    %c0_33 = arith.constant 0 : index
    %c0_34 = arith.constant 0 : index
    %43 = vector.load %arg6[%c1_32, %c0_33, %c0_34] : memref<20x20x4xf32, #tpu.memory_space<vmem>>, vector<16x16x4xf32>
    %44 = vector.shape_cast %42 : vector<4xf32> to vector<1x1x4xf32>
    %45 = vector.broadcast %44 : vector<1x1x4xf32> to vector<16x16x4xf32>
    %46 = arith.mulf %43, %45 : vector<16x16x4xf32>
    %47 = arith.addf %40, %46 : vector<16x16x4xf32>
    %c6 = arith.constant 6 : index
    %c0_35 = arith.constant 0 : index
    %48 = vector.load %arg2[%c6, %c0_35] : memref<25x4xf32, #tpu.memory_space<vmem>>, vector<1x4xf32>
    %49 = vector.shape_cast %48 : vector<1x4xf32> to vector<4xf32>
    %c1_36 = arith.constant 1 : index
    %c1_37 = arith.constant 1 : index
    %c0_38 = arith.constant 0 : index
    %50 = vector.load %arg6[%c1_36, %c1_37, %c0_38] : memref<20x20x4xf32, #tpu.memory_space<vmem>>, vector<16x16x4xf32>
    %51 = vector.shape_cast %49 : vector<4xf32> to vector<1x1x4xf32>
    %52 = vector.broadcast %51 : vector<1x1x4xf32> to vector<16x16x4xf32>
    %53 = arith.mulf %50, %52 : vector<16x16x4xf32>
    %54 = arith.addf %47, %53 : vector<16x16x4xf32>
    %c7 = arith.constant 7 : index
    %c0_39 = arith.constant 0 : index
    %55 = vector.load %arg2[%c7, %c0_39] : memref<25x4xf32, #tpu.memory_space<vmem>>, vector<1x4xf32>
    %56 = vector.shape_cast %55 : vector<1x4xf32> to vector<4xf32>
    %c1_40 = arith.constant 1 : index
    %c2_41 = arith.constant 2 : index
    %c0_42 = arith.constant 0 : index
    %57 = vector.load %arg6[%c1_40, %c2_41, %c0_42] : memref<20x20x4xf32, #tpu.memory_space<vmem>>, vector<16x16x4xf32>
    %58 = vector.shape_cast %56 : vector<4xf32> to vector<1x1x4xf32>
    %59 = vector.broadcast %58 : vector<1x1x4xf32> to vector<16x16x4xf32>
    %60 = arith.mulf %57, %59 : vector<16x16x4xf32>
    %61 = arith.addf %54, %60 : vector<16x16x4xf32>
    %c8 = arith.constant 8 : index
    %c0_43 = arith.constant 0 : index
    %62 = vector.load %arg2[%c8, %c0_43] : memref<25x4xf32, #tpu.memory_space<vmem>>, vector<1x4xf32>
    %63 = vector.shape_cast %62 : vector<1x4xf32> to vector<4xf32>
    %c1_44 = arith.constant 1 : index
    %c3_45 = arith.constant 3 : index
    %c0_46 = arith.constant 0 : index
    %64 = vector.load %arg6[%c1_44, %c3_45, %c0_46] : memref<20x20x4xf32, #tpu.memory_space<vmem>>, vector<16x16x4xf32>
    %65 = vector.shape_cast %63 : vector<4xf32> to vector<1x1x4xf32>
    %66 = vector.broadcast %65 : vector<1x1x4xf32> to vector<16x16x4xf32>
    %67 = arith.mulf %64, %66 : vector<16x16x4xf32>
    %68 = arith.addf %61, %67 : vector<16x16x4xf32>
    %c9 = arith.constant 9 : index
    %c0_47 = arith.constant 0 : index
    %69 = vector.load %arg2[%c9, %c0_47] : memref<25x4xf32, #tpu.memory_space<vmem>>, vector<1x4xf32>
    %70 = vector.shape_cast %69 : vector<1x4xf32> to vector<4xf32>
    %c1_48 = arith.constant 1 : index
    %c4_49 = arith.constant 4 : index
    %c0_50 = arith.constant 0 : index
    %71 = vector.load %arg6[%c1_48, %c4_49, %c0_50] : memref<20x20x4xf32, #tpu.memory_space<vmem>>, vector<16x16x4xf32>
    %72 = vector.shape_cast %70 : vector<4xf32> to vector<1x1x4xf32>
    %73 = vector.broadcast %72 : vector<1x1x4xf32> to vector<16x16x4xf32>
    %74 = arith.mulf %71, %73 : vector<16x16x4xf32>
    %75 = arith.addf %68, %74 : vector<16x16x4xf32>
    %c10 = arith.constant 10 : index
    %c0_51 = arith.constant 0 : index
    %76 = vector.load %arg2[%c10, %c0_51] : memref<25x4xf32, #tpu.memory_space<vmem>>, vector<1x4xf32>
    %77 = vector.shape_cast %76 : vector<1x4xf32> to vector<4xf32>
    %c2_52 = arith.constant 2 : index
    %c0_53 = arith.constant 0 : index
    %c0_54 = arith.constant 0 : index
    %78 = vector.load %arg6[%c2_52, %c0_53, %c0_54] : memref<20x20x4xf32, #tpu.memory_space<vmem>>, vector<16x16x4xf32>
    %79 = vector.shape_cast %77 : vector<4xf32> to vector<1x1x4xf32>
    %80 = vector.broadcast %79 : vector<1x1x4xf32> to vector<16x16x4xf32>
    %81 = arith.mulf %78, %80 : vector<16x16x4xf32>
    %82 = arith.addf %75, %81 : vector<16x16x4xf32>
    %c11 = arith.constant 11 : index
    %c0_55 = arith.constant 0 : index
    %83 = vector.load %arg2[%c11, %c0_55] : memref<25x4xf32, #tpu.memory_space<vmem>>, vector<1x4xf32>
    %84 = vector.shape_cast %83 : vector<1x4xf32> to vector<4xf32>
    %c2_56 = arith.constant 2 : index
    %c1_57 = arith.constant 1 : index
    %c0_58 = arith.constant 0 : index
    %85 = vector.load %arg6[%c2_56, %c1_57, %c0_58] : memref<20x20x4xf32, #tpu.memory_space<vmem>>, vector<16x16x4xf32>
    %86 = vector.shape_cast %84 : vector<4xf32> to vector<1x1x4xf32>
    %87 = vector.broadcast %86 : vector<1x1x4xf32> to vector<16x16x4xf32>
    %88 = arith.mulf %85, %87 : vector<16x16x4xf32>
    %89 = arith.addf %82, %88 : vector<16x16x4xf32>
    %c12 = arith.constant 12 : index
    %c0_59 = arith.constant 0 : index
    %90 = vector.load %arg2[%c12, %c0_59] : memref<25x4xf32, #tpu.memory_space<vmem>>, vector<1x4xf32>
    %91 = vector.shape_cast %90 : vector<1x4xf32> to vector<4xf32>
    %c2_60 = arith.constant 2 : index
    %c2_61 = arith.constant 2 : index
    %c0_62 = arith.constant 0 : index
    %92 = vector.load %arg6[%c2_60, %c2_61, %c0_62] : memref<20x20x4xf32, #tpu.memory_space<vmem>>, vector<16x16x4xf32>
    %93 = vector.shape_cast %91 : vector<4xf32> to vector<1x1x4xf32>
    %94 = vector.broadcast %93 : vector<1x1x4xf32> to vector<16x16x4xf32>
    %95 = arith.mulf %92, %94 : vector<16x16x4xf32>
    %96 = arith.addf %89, %95 : vector<16x16x4xf32>
    %c13 = arith.constant 13 : index
    %c0_63 = arith.constant 0 : index
    %97 = vector.load %arg2[%c13, %c0_63] : memref<25x4xf32, #tpu.memory_space<vmem>>, vector<1x4xf32>
    %98 = vector.shape_cast %97 : vector<1x4xf32> to vector<4xf32>
    %c2_64 = arith.constant 2 : index
    %c3_65 = arith.constant 3 : index
    %c0_66 = arith.constant 0 : index
    %99 = vector.load %arg6[%c2_64, %c3_65, %c0_66] : memref<20x20x4xf32, #tpu.memory_space<vmem>>, vector<16x16x4xf32>
    %100 = vector.shape_cast %98 : vector<4xf32> to vector<1x1x4xf32>
    %101 = vector.broadcast %100 : vector<1x1x4xf32> to vector<16x16x4xf32>
    %102 = arith.mulf %99, %101 : vector<16x16x4xf32>
    %103 = arith.addf %96, %102 : vector<16x16x4xf32>
    %c14 = arith.constant 14 : index
    %c0_67 = arith.constant 0 : index
    %104 = vector.load %arg2[%c14, %c0_67] : memref<25x4xf32, #tpu.memory_space<vmem>>, vector<1x4xf32>
    %105 = vector.shape_cast %104 : vector<1x4xf32> to vector<4xf32>
    %c2_68 = arith.constant 2 : index
    %c4_69 = arith.constant 4 : index
    %c0_70 = arith.constant 0 : index
    %106 = vector.load %arg6[%c2_68, %c4_69, %c0_70] : memref<20x20x4xf32, #tpu.memory_space<vmem>>, vector<16x16x4xf32>
    %107 = vector.shape_cast %105 : vector<4xf32> to vector<1x1x4xf32>
    %108 = vector.broadcast %107 : vector<1x1x4xf32> to vector<16x16x4xf32>
    %109 = arith.mulf %106, %108 : vector<16x16x4xf32>
    %110 = arith.addf %103, %109 : vector<16x16x4xf32>
    %c15 = arith.constant 15 : index
    %c0_71 = arith.constant 0 : index
    %111 = vector.load %arg2[%c15, %c0_71] : memref<25x4xf32, #tpu.memory_space<vmem>>, vector<1x4xf32>
    %112 = vector.shape_cast %111 : vector<1x4xf32> to vector<4xf32>
    %c3_72 = arith.constant 3 : index
    %c0_73 = arith.constant 0 : index
    %c0_74 = arith.constant 0 : index
    %113 = vector.load %arg6[%c3_72, %c0_73, %c0_74] : memref<20x20x4xf32, #tpu.memory_space<vmem>>, vector<16x16x4xf32>
    %114 = vector.shape_cast %112 : vector<4xf32> to vector<1x1x4xf32>
    %115 = vector.broadcast %114 : vector<1x1x4xf32> to vector<16x16x4xf32>
    %116 = arith.mulf %113, %115 : vector<16x16x4xf32>
    %117 = arith.addf %110, %116 : vector<16x16x4xf32>
    %c16 = arith.constant 16 : index
    %c0_75 = arith.constant 0 : index
    %118 = vector.load %arg2[%c16, %c0_75] : memref<25x4xf32, #tpu.memory_space<vmem>>, vector<1x4xf32>
    %119 = vector.shape_cast %118 : vector<1x4xf32> to vector<4xf32>
    %c3_76 = arith.constant 3 : index
    %c1_77 = arith.constant 1 : index
    %c0_78 = arith.constant 0 : index
    %120 = vector.load %arg6[%c3_76, %c1_77, %c0_78] : memref<20x20x4xf32, #tpu.memory_space<vmem>>, vector<16x16x4xf32>
    %121 = vector.shape_cast %119 : vector<4xf32> to vector<1x1x4xf32>
    %122 = vector.broadcast %121 : vector<1x1x4xf32> to vector<16x16x4xf32>
    %123 = arith.mulf %120, %122 : vector<16x16x4xf32>
    %124 = arith.addf %117, %123 : vector<16x16x4xf32>
    %c17 = arith.constant 17 : index
    %c0_79 = arith.constant 0 : index
    %125 = vector.load %arg2[%c17, %c0_79] : memref<25x4xf32, #tpu.memory_space<vmem>>, vector<1x4xf32>
    %126 = vector.shape_cast %125 : vector<1x4xf32> to vector<4xf32>
    %c3_80 = arith.constant 3 : index
    %c2_81 = arith.constant 2 : index
    %c0_82 = arith.constant 0 : index
    %127 = vector.load %arg6[%c3_80, %c2_81, %c0_82] : memref<20x20x4xf32, #tpu.memory_space<vmem>>, vector<16x16x4xf32>
    %128 = vector.shape_cast %126 : vector<4xf32> to vector<1x1x4xf32>
    %129 = vector.broadcast %128 : vector<1x1x4xf32> to vector<16x16x4xf32>
    %130 = arith.mulf %127, %129 : vector<16x16x4xf32>
    %131 = arith.addf %124, %130 : vector<16x16x4xf32>
    %c18 = arith.constant 18 : index
    %c0_83 = arith.constant 0 : index
    %132 = vector.load %arg2[%c18, %c0_83] : memref<25x4xf32, #tpu.memory_space<vmem>>, vector<1x4xf32>
    %133 = vector.shape_cast %132 : vector<1x4xf32> to vector<4xf32>
    %c3_84 = arith.constant 3 : index
    %c3_85 = arith.constant 3 : index
    %c0_86 = arith.constant 0 : index
    %134 = vector.load %arg6[%c3_84, %c3_85, %c0_86] : memref<20x20x4xf32, #tpu.memory_space<vmem>>, vector<16x16x4xf32>
    %135 = vector.shape_cast %133 : vector<4xf32> to vector<1x1x4xf32>
    %136 = vector.broadcast %135 : vector<1x1x4xf32> to vector<16x16x4xf32>
    %137 = arith.mulf %134, %136 : vector<16x16x4xf32>
    %138 = arith.addf %131, %137 : vector<16x16x4xf32>
    %c19 = arith.constant 19 : index
    %c0_87 = arith.constant 0 : index
    %139 = vector.load %arg2[%c19, %c0_87] : memref<25x4xf32, #tpu.memory_space<vmem>>, vector<1x4xf32>
    %140 = vector.shape_cast %139 : vector<1x4xf32> to vector<4xf32>
    %c3_88 = arith.constant 3 : index
    %c4_89 = arith.constant 4 : index
    %c0_90 = arith.constant 0 : index
    %141 = vector.load %arg6[%c3_88, %c4_89, %c0_90] : memref<20x20x4xf32, #tpu.memory_space<vmem>>, vector<16x16x4xf32>
    %142 = vector.shape_cast %140 : vector<4xf32> to vector<1x1x4xf32>
    %143 = vector.broadcast %142 : vector<1x1x4xf32> to vector<16x16x4xf32>
    %144 = arith.mulf %141, %143 : vector<16x16x4xf32>
    %145 = arith.addf %138, %144 : vector<16x16x4xf32>
    %c20 = arith.constant 20 : index
    %c0_91 = arith.constant 0 : index
    %146 = vector.load %arg2[%c20, %c0_91] : memref<25x4xf32, #tpu.memory_space<vmem>>, vector<1x4xf32>
    %147 = vector.shape_cast %146 : vector<1x4xf32> to vector<4xf32>
    %c4_92 = arith.constant 4 : index
    %c0_93 = arith.constant 0 : index
    %c0_94 = arith.constant 0 : index
    %148 = vector.load %arg6[%c4_92, %c0_93, %c0_94] : memref<20x20x4xf32, #tpu.memory_space<vmem>>, vector<16x16x4xf32>
    %149 = vector.shape_cast %147 : vector<4xf32> to vector<1x1x4xf32>
    %150 = vector.broadcast %149 : vector<1x1x4xf32> to vector<16x16x4xf32>
    %151 = arith.mulf %148, %150 : vector<16x16x4xf32>
    %152 = arith.addf %145, %151 : vector<16x16x4xf32>
    %c21 = arith.constant 21 : index
    %c0_95 = arith.constant 0 : index
    %153 = vector.load %arg2[%c21, %c0_95] : memref<25x4xf32, #tpu.memory_space<vmem>>, vector<1x4xf32>
    %154 = vector.shape_cast %153 : vector<1x4xf32> to vector<4xf32>
    %c4_96 = arith.constant 4 : index
    %c1_97 = arith.constant 1 : index
    %c0_98 = arith.constant 0 : index
    %155 = vector.load %arg6[%c4_96, %c1_97, %c0_98] : memref<20x20x4xf32, #tpu.memory_space<vmem>>, vector<16x16x4xf32>
    %156 = vector.shape_cast %154 : vector<4xf32> to vector<1x1x4xf32>
    %157 = vector.broadcast %156 : vector<1x1x4xf32> to vector<16x16x4xf32>
    %158 = arith.mulf %155, %157 : vector<16x16x4xf32>
    %159 = arith.addf %152, %158 : vector<16x16x4xf32>
    %c22 = arith.constant 22 : index
    %c0_99 = arith.constant 0 : index
    %160 = vector.load %arg2[%c22, %c0_99] : memref<25x4xf32, #tpu.memory_space<vmem>>, vector<1x4xf32>
    %161 = vector.shape_cast %160 : vector<1x4xf32> to vector<4xf32>
    %c4_100 = arith.constant 4 : index
    %c2_101 = arith.constant 2 : index
    %c0_102 = arith.constant 0 : index
    %162 = vector.load %arg6[%c4_100, %c2_101, %c0_102] : memref<20x20x4xf32, #tpu.memory_space<vmem>>, vector<16x16x4xf32>
    %163 = vector.shape_cast %161 : vector<4xf32> to vector<1x1x4xf32>
    %164 = vector.broadcast %163 : vector<1x1x4xf32> to vector<16x16x4xf32>
    %165 = arith.mulf %162, %164 : vector<16x16x4xf32>
    %166 = arith.addf %159, %165 : vector<16x16x4xf32>
    %c23 = arith.constant 23 : index
    %c0_103 = arith.constant 0 : index
    %167 = vector.load %arg2[%c23, %c0_103] : memref<25x4xf32, #tpu.memory_space<vmem>>, vector<1x4xf32>
    %168 = vector.shape_cast %167 : vector<1x4xf32> to vector<4xf32>
    %c4_104 = arith.constant 4 : index
    %c3_105 = arith.constant 3 : index
    %c0_106 = arith.constant 0 : index
    %169 = vector.load %arg6[%c4_104, %c3_105, %c0_106] : memref<20x20x4xf32, #tpu.memory_space<vmem>>, vector<16x16x4xf32>
    %170 = vector.shape_cast %168 : vector<4xf32> to vector<1x1x4xf32>
    %171 = vector.broadcast %170 : vector<1x1x4xf32> to vector<16x16x4xf32>
    %172 = arith.mulf %169, %171 : vector<16x16x4xf32>
    %173 = arith.addf %166, %172 : vector<16x16x4xf32>
    %c24 = arith.constant 24 : index
    %c0_107 = arith.constant 0 : index
    %174 = vector.load %arg2[%c24, %c0_107] : memref<25x4xf32, #tpu.memory_space<vmem>>, vector<1x4xf32>
    %175 = vector.shape_cast %174 : vector<1x4xf32> to vector<4xf32>
    %c4_108 = arith.constant 4 : index
    %c4_109 = arith.constant 4 : index
    %c0_110 = arith.constant 0 : index
    %176 = vector.load %arg6[%c4_108, %c4_109, %c0_110] : memref<20x20x4xf32, #tpu.memory_space<vmem>>, vector<16x16x4xf32>
    %177 = vector.shape_cast %175 : vector<4xf32> to vector<1x1x4xf32>
    %178 = vector.broadcast %177 : vector<1x1x4xf32> to vector<16x16x4xf32>
    %179 = arith.mulf %176, %178 : vector<16x16x4xf32>
    %180 = arith.addf %173, %179 : vector<16x16x4xf32>
    %c0_111 = arith.constant 0 : index
    %c0_112 = arith.constant 0 : index
    %181 = vector.load %arg3[%c0_111, %c0_112] : memref<1x4xf32, #tpu.memory_space<vmem>>, vector<1x4xf32>
    %182 = vector.shape_cast %181 : vector<1x4xf32> to vector<4xf32>
    %183 = vector.shape_cast %182 : vector<4xf32> to vector<1x1x4xf32>
    %184 = vector.broadcast %183 : vector<1x1x4xf32> to vector<16x16x4xf32>
    %185 = arith.addf %180, %184 : vector<16x16x4xf32>
    %cst_113 = arith.constant 0.000000e+00 : f32
    %cst_114 = arith.constant 6.000000e+00 : f32
    %186 = vector.broadcast %cst_113 : f32 to vector<16x16x4xf32>
    %187 = arith.maximumf %186, %185 : vector<16x16x4xf32>
    %188 = vector.broadcast %cst_114 : f32 to vector<16x16x4xf32>
    %189 = arith.minimumf %188, %187 : vector<16x16x4xf32>
    %c0_115 = arith.constant 0 : index
    %c0_116 = arith.constant 0 : index
    %c0_117 = arith.constant 0 : index
    %c0_118 = arith.constant 0 : index
    %190 = vector.load %arg5[%c0_115, %c0_116, %c0_117, %c0_118] : memref<1x16x16x4xf32, #tpu.memory_space<vmem>>, vector<1x16x16x4xf32>
    %191 = vector.shape_cast %190 : vector<1x16x16x4xf32> to vector<16x16x4xf32>
    %192 = vector.shape_cast %189 : vector<16x16x4xf32> to vector<1x16x16x4xf32>
    tpu.vector_store %arg5[%c0_115, %c0_116, %c0_117, %c0_118], %192 {strides = array<i32>} : memref<1x16x16x4xf32, #tpu.memory_space<vmem>>, vector<1x16x16x4xf32>,
    return
  }
  func.func @transform_0(%arg0: i32, %arg1: i32) -> (i32, i32) {
    %c0_i32 = arith.constant 0 : i32
    %c0_i32_0 = arith.constant 0 : i32
    return %c0_i32, %arg1 : i32, i32
  }
  func.func @transform_1(%arg0: i32, %arg1: i32) -> (i32, i32) {
    %c0_i32 = arith.constant 0 : i32
    %c0_i32_0 = arith.constant 0 : i32
    return %c0_i32, %arg1 : i32, i32
  }
  func.func @transform_2(%arg0: i32, %arg1: i32) -> (i32, i32, i32, i32) {
    %c0_i32 = arith.constant 0 : i32
    %c0_i32_0 = arith.constant 0 : i32
    %c0_i32_1 = arith.constant 0 : i32
    return %arg0, %c0_i32, %c0_i32_0, %arg1 : i32, i32, i32, i32
  }
  func.func @transform_3(%arg0: i32, %arg1: i32) -> (i32, i32, i32, i32) {
    %c0_i32 = arith.constant 0 : i32
    %c0_i32_0 = arith.constant 0 : i32
    %c0_i32_1 = arith.constant 0 : i32
    return %arg0, %c0_i32, %c0_i32_0, %arg1 : i32, i32, i32, i32
  }
}

</mosaic_0001>

<llo_original>
// kernel: tpu_custom_call.1
$region0: #{tpu_custom_call.1}
  #allocation0 [shape = 'u32[]', space=smem, size = 0x4, offset = 0x4, fixed_abs, tag = 'smem constant byte address 0x4 - core index']
  #allocation1 [shape = 'u32[144,128]{1,0:T(1,128)}', space=vmem, size = 0x12000, scoped, tag = 'internal scratch']
  #allocation2 [shape = 'f32[20,20,4]{2,1,0:T(8,128)}', space=vmem, size = 0x3c000, scoped, tag = 'scratch operand']
  %s0 = inlined_call_operand.vmem [shape: f32[25,4], index: 0, kind: input, shape index: {}]
  %s1 = inlined_call_operand.vmem [shape: f32[1,4], index: 1, kind: input, shape index: {}]
  %s2 = inlined_call_operand.vmem [shape: f32[2,16,16,4], index: 2, kind: input, shape index: {}]
  %s3 = inlined_call_operand.vmem [shape: f32[2,16,16,4], index: 3, kind: output, shape index: {}]
  %s4 = sld [smem:[#allocation0]]
  $region45: #{tpu_custom_call.1} parent=0
    _
  %s6 = ssub.s32 1, %s4
  %s7 = scalar_select 0, %s6, %s4
  loop: start=0, step=1, limit=4
  $region2: #{tpu_custom_call.1} parent=0 // loop_pre_header
    _
  $region3: #{tpu_custom_call.1} parent=0 // loop_header
    %s9 = sphi 0, %s13
    %p10 = scmp.ge.s32.totalorder %s9, 4
    %s16 = sphi 0, %s28
    %s17 = sphi 0, %s24
    %s18 = sphi 0, %s16
    %s19 = sphi 0, %s17
    %s20 = sphi 0, %s18
    %s21 = sphi 0, %s19
    %s31 = sphi 0, %s33
    %s34 = sphi 0, %s31
    %s35 = sphi 0, %s34
    %s51 = sphi 0, %s35
    %s57 = sphi 0, %s59
    %s60 = sphi 0, %s57
    %s61 = sphi 0, %s60
    %s77 = sphi 0, %s61
    %s85 = sphi 0, %s87
    %s88 = sphi 0, %s85
    %s89 = sphi 0, %s88
    %s105 = sphi 0, %s89
    %s113 = sphi 0, %s115
    %s116 = sphi 0, %s113
    %s117 = sphi 0, %s116
    %s133 = sphi 0, %s117
  $region4: #{tpu_custom_call.1} parent=0 // loop_header_branch
    %12 = sbr.rel (%p10) target = $region8
  $region5: #{tpu_custom_call.1} parent=0 // loop_body
    %s14 = ssub.s32 %s9, 1
    %s15 = ssub.s32 %s9, 2
    %s22 = sadd.s32 1, %s17
    %p23 = scmp.ge.s32.totalorder %s22, 1
    %s24 = scalar_select %p23, 0, %s22
    %s25 = sadd.s32 1, %s16
    %s26 = scalar_select %p23, %s25, %s16
    %p27 = scmp.ge.s32.totalorder %s26, 2
    %s28 = scalar_select %p27, 0, %s26
    %s29 = ssub.s32 %s17, %s24
    %p30 = scmp.eq.s32.totalorder %s29, 0
    %s32 = sadd.s32 %s31, 1
    %s33 = scalar_select %p30, %s31, %s32
    %p36 = pneg %p30
    %p37 = scmp.eq.s32.totalorder %s9, 1
    %p38 = por %p36, %p37
    %p39 = scmp.ne.s32.totalorder %s31, %s34
    %p40 = scmp.eq.s32.totalorder %s9, 0
    %p41 = por %p39, %p40
    %p42 = scmp.ne.s32.totalorder %s31, %s34
    %p43 = scmp.eq.s32.totalorder %s14, 1
    %p44 = por %p42, %p43
    %p45 = scmp.ne.s32.totalorder %s34, %s35
    %p46 = scmp.eq.s32.totalorder %s14, 0
    %p47 = por %p45, %p46
    %p48 = scmp.ne.s32.totalorder %s34, %s35
    %p49 = scmp.eq.s32.totalorder %s15, 1
    %p50 = por %p48, %p49
    %p52 = scmp.ne.s32.totalorder %s35, %s51
    %p53 = scmp.eq.s32.totalorder %s15, 0
    %p54 = por %p52, %p53
    %s55 = ssub.s32 %s17, %s24
    %p56 = scmp.eq.s32.totalorder %s55, 0
    %s58 = sadd.s32 %s57, 1
    %s59 = scalar_select %p56, %s57, %s58
    %p62 = pneg %p56
    %p63 = scmp.eq.s32.totalorder %s9, 1
    %p64 = por %p62, %p63
    %p65 = scmp.ne.s32.totalorder %s57, %s60
    %p66 = scmp.eq.s32.totalorder %s9, 0
    %p67 = por %p65, %p66
    %p68 = scmp.ne.s32.totalorder %s57, %s60
    %p69 = scmp.eq.s32.totalorder %s14, 1
    %p70 = por %p68, %p69
    %p71 = scmp.ne.s32.totalorder %s60, %s61
    %p72 = scmp.eq.s32.totalorder %s14, 0
    %p73 = por %p71, %p72
    %p74 = scmp.ne.s32.totalorder %s60, %s61
    %p75 = scmp.eq.s32.totalorder %s15, 1
    %p76 = por %p74, %p75
    %p78 = scmp.ne.s32.totalorder %s61, %s77
    %p79 = scmp.eq.s32.totalorder %s15, 0
    %p80 = por %p78, %p79
    %s81 = ssub.s32 %s16, %s28
    %s82 = ssub.s32 %s17, %s24
    %s83 = sor.u32 %s81, %s82
    %p84 = scmp.eq.s32.totalorder %s83, 0
    %s86 = sadd.s32 %s85, 1
    %s87 = scalar_select %p84, %s85, %s86
    %p90 = pneg %p84
    %p91 = scmp.eq.s32.totalorder %s9, 1
    %p92 = por %p90, %p91
    %p93 = scmp.ne.s32.totalorder %s85, %s88
    %p94 = scmp.eq.s32.totalorder %s9, 0
    %p95 = por %p93, %p94
    %p96 = scmp.ne.s32.totalorder %s85, %s88
    %p97 = scmp.eq.s32.totalorder %s14, 1
    %p98 = por %p96, %p97
    %p99 = scmp.ne.s32.totalorder %s88, %s89
    %p100 = scmp.eq.s32.totalorder %s14, 0
    %p101 = por %p99, %p100
    %p102 = scmp.ne.s32.totalorder %s88, %s89
    %p103 = scmp.eq.s32.totalorder %s15, 1
    %p104 = por %p102, %p103
    %p106 = scmp.ne.s32.totalorder %s89, %s105
    %p107 = scmp.eq.s32.totalorder %s15, 0
    %p108 = por %p106, %p107
    %s109 = ssub.s32 %s16, %s28
    %s110 = ssub.s32 %s17, %s24
    %s111 = sor.u32 %s109, %s110
    %p112 = scmp.eq.s32.totalorder %s111, 0
    %s114 = sadd.s32 %s113, 1
    %s115 = scalar_select %p112, %s113, %s114
    %p118 = pneg %p112
    %p119 = scmp.eq.s32.totalorder %s9, 1
    %p120 = por %p118, %p119
    %p121 = scmp.ne.s32.totalorder %s113, %s116
    %p122 = scmp.eq.s32.totalorder %s9, 0
    %p123 = por %p121, %p122
    %p124 = scmp.ne.s32.totalorder %s113, %s116
    %p125 = scmp.eq.s32.totalorder %s14, 1
    %p126 = por %p124, %p125
    %p127 = scmp.ne.s32.totalorder %s116, %s117
    %p128 = scmp.eq.s32.totalorder %s14, 0
    %p129 = por %p127, %p128
    %p130 = scmp.ne.s32.totalorder %s116, %s117
    %p131 = scmp.eq.s32.totalorder %s15, 1
    %p132 = por %p130, %p131
    %p134 = scmp.ne.s32.totalorder %s117, %s133
    %p135 = scmp.eq.s32.totalorder %s15, 0
    %p136 = por %p134, %p135
    %p137 = scmp.le.s32.totalorder 1, %s9
    %p138 = scmp.lt.s32.totalorder %s9, 3
    %p139 = pnand %p137, %p138
    %p140 = pneg %p139
    // Predicated region
    $region9: #{tpu_custom_call.1} parent=5 // pred_check
      _
    $region10: #{tpu_custom_call.1} parent=5 // pred_check_branch
      %142 = sbr.rel (%p139) target = $region12
    $region11: #{tpu_custom_call.1} parent=5 // pred_region
      %s143 = ssub.s32 %s9, 1
      // Predicated region
      $region13: #{tpu_custom_call.1} parent=11 // pred_check
        %p144 = pneg %p47
      $region14: #{tpu_custom_call.1} parent=11 // pred_check_branch
        %146 = sbr.rel (%p144) target = $region16
      $region15: #{tpu_custom_call.1} parent=11 // pred_region
        %p147 = scmp.lt.s32.totalorder %s19, 0
        %s148 = scalar_select %p147, %s19, 0
        %s149 = smul.addr %s148, 8
        %s150 = scalar_lea.vmem %s0, %s149
      $region16: #{tpu_custom_call.1} parent=11 // pred_fallthru
        _
      // Predicated region
      $region17: #{tpu_custom_call.1} parent=11 // pred_check
        %p151 = pneg %p73
      $region18: #{tpu_custom_call.1} parent=11 // pred_check_branch
        %153 = sbr.rel (%p151) target = $region20
      $region19: #{tpu_custom_call.1} parent=11 // pred_region
        %p154 = scmp.lt.s32.totalorder %s19, 0
        %s155 = scalar_select %p154, %s19, 0
        %s156 = scalar_lea.vmem %s1, %s155
      $region20: #{tpu_custom_call.1} parent=11 // pred_fallthru
        _
    $region12: #{tpu_custom_call.1} parent=5 // pred_fallthru
      _
    %p157 = scmp.lt.s32.totalorder %s9, 2
    // Predicated region
    $region21: #{tpu_custom_call.1} parent=5 // pred_check
      %p158 = pneg %p157
    $region22: #{tpu_custom_call.1} parent=5 // pred_check_branch
      %160 = sbr.rel (%p158) target = $region24
    $region23: #{tpu_custom_call.1} parent=5 // pred_region
      // Predicated region
      $region25: #{tpu_custom_call.1} parent=23 // pred_check
        %p161 = pneg %p95
      $region26: #{tpu_custom_call.1} parent=23 // pred_check_branch
        %163 = sbr.rel (%p161) target = $region28
      $region27: #{tpu_custom_call.1} parent=23 // pred_region
        %p164 = scmp.lt.s32.totalorder %s16, 1
        %s165 = scalar_select %p164, %s16, 1
        %p166 = scmp.lt.s32.totalorder %s17, 0
        %s167 = scalar_select %p166, %s17, 0
        %s168 = smul.addr %s165, 32
        %s169 = sadd.s32 %s167, %s168
        %s170 = smul.addr %s169, 8
        %s171 = scalar_lea.vmem %s2, %s170
      $region28: #{tpu_custom_call.1} parent=23 // pred_fallthru
        _
    $region24: #{tpu_custom_call.1} parent=5 // pred_fallthru
      _
    %p172 = scmp.le.s32.totalorder 1, %s9
    %p173 = scmp.lt.s32.totalorder %s9, 3
    %p174 = pnand %p172, %p173
    %p175 = pneg %p174
    // Predicated region
    $region29: #{tpu_custom_call.1} parent=5 // pred_check
      _
    $region30: #{tpu_custom_call.1} parent=5 // pred_check_branch
      %177 = sbr.rel (%p174) target = $region32
    $region31: #{tpu_custom_call.1} parent=5 // pred_region
      %s178 = ssub.s32 %s9, 1
      %p179 = scmp.lt.s32.totalorder %s19, 0
      %s180 = scalar_select %p179, %s19, 0
      %s181 = smul.addr %s180, 8
      %s182 = scalar_lea.vmem %s0, %s181
      %p183 = pneg %p47
      %p184 = pneg %p44
      %p185 = scmp.lt.s32.totalorder %s19, 0
      %s186 = scalar_select %p185, %s19, 0
      %s187 = scalar_lea.vmem %s1, %s186
      %p188 = pneg %p73
      %p189 = pneg %p70
      %p190 = scmp.lt.s32.totalorder %s18, 1
      %s191 = scalar_select %p190, %s18, 1
      %p192 = scmp.lt.s32.totalorder %s19, 0
      %s193 = scalar_select %p192, %s19, 0
      %s194 = smul.addr %s191, 32
      %s195 = sadd.s32 %s193, %s194
      %s196 = smul.addr %s195, 8
      %s197 = scalar_lea.vmem %s2, %s196
      %p198 = pneg %p101
      %p199 = pneg %p98
      %p200 = pneg %p129
      %p201 = pneg %p126
      %p202 = scmp.lt.s32.totalorder %s18, 1
      %s203 = scalar_select %p202, %s18, 1
      %p204 = scmp.lt.s32.totalorder %s19, 0
      %s205 = scalar_select %p204, %s19, 0
      %s206 = smul.addr %s203, 32
      %s207 = sadd.s32 %s205, %s206
      %s208 = smul.addr %s207, 8
      %s209 = scalar_lea.vmem %s3, %s208
      %p210 = scmp.lt.s32.totalorder %s19, 0
      %s211 = scalar_select %p210, %s19, 0
      %s212 = smul.addr %s211, 8
      %s213 = scalar_lea.vmem %s0, %s212
      %p214 = scmp.lt.s32.totalorder %s19, 0
      %s215 = scalar_select %p214, %s19, 0
      %s216 = scalar_lea.vmem %s1, %s215
      %p217 = scmp.lt.s32.totalorder %s18, 1
      %s218 = scalar_select %p217, %s18, 1
      %p219 = scmp.lt.s32.totalorder %s19, 0
      %s220 = scalar_select %p219, %s19, 0
      %s221 = smul.addr %s218, 32
      %s222 = sadd.s32 %s220, %s221
      %s223 = smul.addr %s222, 8
      %s224 = scalar_lea.vmem %s2, %s223
      %p225 = scmp.lt.s32.totalorder %s18, 1
      %s226 = scalar_select %p225, %s18, 1
      %p227 = scmp.lt.s32.totalorder %s19, 0
      %s228 = scalar_select %p227, %s19, 0
      %s229 = smul.addr %s226, 32
      %s230 = sadd.s32 %s228, %s229
      %s231 = smul.addr %s230, 8
      %s232 = scalar_lea.vmem %s3, %s231
      %vm233 = vcmask 31744
      %234 = vst.msk [vmem:[#allocation2] sm:$0xff] %vm233, 0.0
      %235 = vst.msk [vmem:[#allocation2 + $0x8] sm:$0xff] %vm233, 0.0
      %vm236 = vcmask 27648
      %237 = vst.msk [vmem:[#allocation2 + $0x10] sm:$0xf] %vm236, 0.0
      %238 = vst.msk [vmem:[#allocation2 + $0x18] sm:$0xff] %vm233, 0.0
      %239 = vst.msk [vmem:[#allocation2 + $0x20] sm:$0xff] %vm233, 0.0
      %240 = vst.msk [vmem:[#allocation2 + $0x28] sm:$0xf] %vm236, 0.0
      %241 = vst.msk [vmem:[#allocation2 + $0x30] sm:$0xff] %vm233, 0.0
      %242 = vst.msk [vmem:[#allocation2 + $0x38] sm:$0xff] %vm233, 0.0
      %243 = vst.msk [vmem:[#allocation2 + $0x40] sm:$0xf] %vm236, 0.0
      %244 = vst.msk [vmem:[#allocation2 + $0x48] sm:$0xff] %vm233, 0.0
      %245 = vst.msk [vmem:[#allocation2 + $0x50] sm:$0xff] %vm233, 0.0
      %246 = vst.msk [vmem:[#allocation2 + $0x58] sm:$0xf] %vm236, 0.0
      %247 = vst.msk [vmem:[#allocation2 + $0x60] sm:$0xff] %vm233, 0.0
      %248 = vst.msk [vmem:[#allocation2 + $0x68] sm:$0xff] %vm233, 0.0
      %249 = vst.msk [vmem:[#allocation2 + $0x70] sm:$0xf] %vm236, 0.0
      %250 = vst.msk [vmem:[#allocation2 + $0x78] sm:$0xff] %vm233, 0.0
      %251 = vst.msk [vmem:[#allocation2 + $0x80] sm:$0xff] %vm233, 0.0
      %252 = vst.msk [vmem:[#allocation2 + $0x88] sm:$0xf] %vm236, 0.0
      %253 = vst.msk [vmem:[#allocation2 + $0x90] sm:$0xff] %vm233, 0.0
      %254 = vst.msk [vmem:[#allocation2 + $0x98] sm:$0xff] %vm233, 0.0
      %255 = vst.msk [vmem:[#allocation2 + $0xa0] sm:$0xf] %vm236, 0.0
      %256 = vst.msk [vmem:[#allocation2 + $0xa8] sm:$0xff] %vm233, 0.0
      %257 = vst.msk [vmem:[#allocation2 + $0xb0] sm:$0xff] %vm233, 0.0
      %258 = vst.msk [vmem:[#allocation2 + $0xb8] sm:$0xf] %vm236, 0.0
      %259 = vst.msk [vmem:[#allocation2 + $0xc0] sm:$0xff] %vm233, 0.0
      %260 = vst.msk [vmem:[#allocation2 + $0xc8] sm:$0xff] %vm233, 0.0
      %261 = vst.msk [vmem:[#allocation2 + $0xd0] sm:$0xf] %vm236, 0.0
      %262 = vst.msk [vmem:[#allocation2 + $0xd8] sm:$0xff] %vm233, 0.0
      %263 = vst.msk [vmem:[#allocation2 + $0xe0] sm:$0xff] %vm233, 0.0
      %264 = vst.msk [vmem:[#allocation2 + $0xe8] sm:$0xf] %vm236, 0.0
      %265 = vst.msk [vmem:[#allocation2 + $0xf0] sm:$0xff] %vm233, 0.0
      %266 = vst.msk [vmem:[#allocation2 + $0xf8] sm:$0xff] %vm233, 0.0
      %267 = vst.msk [vmem:[#allocation2 + $0x100] sm:$0xf] %vm236, 0.0
      %268 = vst.msk [vmem:[#allocation2 + $0x108] sm:$0xff] %vm233, 0.0
      %269 = vst.msk [vmem:[#allocation2 + $0x110] sm:$0xff] %vm233, 0.0
      %270 = vst.msk [vmem:[#allocation2 + $0x118] sm:$0xf] %vm236, 0.0
      %271 = vst.msk [vmem:[#allocation2 + $0x120] sm:$0xff] %vm233, 0.0
      %272 = vst.msk [vmem:[#allocation2 + $0x128] sm:$0xff] %vm233, 0.0
      %273 = vst.msk [vmem:[#allocation2 + $0x130] sm:$0xf] %vm236, 0.0
      %274 = vst.msk [vmem:[#allocation2 + $0x138] sm:$0xff] %vm233, 0.0
      %275 = vst.msk [vmem:[#allocation2 + $0x140] sm:$0xff] %vm233, 0.0
      %276 = vst.msk [vmem:[#allocation2 + $0x148] sm:$0xf] %vm236, 0.0
      %277 = vst.msk [vmem:[#allocation2 + $0x150] sm:$0xff] %vm233, 0.0
      %278 = vst.msk [vmem:[#allocation2 + $0x158] sm:$0xff] %vm233, 0.0
      %279 = vst.msk [vmem:[#allocation2 + $0x160] sm:$0xf] %vm236, 0.0
      %280 = vst.msk [vmem:[#allocation2 + $0x168] sm:$0xff] %vm233, 0.0
      %281 = vst.msk [vmem:[#allocation2 + $0x170] sm:$0xff] %vm233, 0.0
      %282 = vst.msk [vmem:[#allocation2 + $0x178] sm:$0xf] %vm236, 0.0
      %283 = vst.msk [vmem:[#allocation2 + $0x180] sm:$0xff] %vm233, 0.0
      %284 = vst.msk [vmem:[#allocation2 + $0x188] sm:$0xff] %vm233, 0.0
      %285 = vst.msk [vmem:[#allocation2 + $0x190] sm:$0xf] %vm236, 0.0
      %286 = vst.msk [vmem:[#allocation2 + $0x198] sm:$0xff] %vm233, 0.0
      %287 = vst.msk [vmem:[#allocation2 + $0x1a0] sm:$0xff] %vm233, 0.0
      %288 = vst.msk [vmem:[#allocation2 + $0x1a8] sm:$0xf] %vm236, 0.0
      %289 = vst.msk [vmem:[#allocation2 + $0x1b0] sm:$0xff] %vm233, 0.0
      %290 = vst.msk [vmem:[#allocation2 + $0x1b8] sm:$0xff] %vm233, 0.0
      %291 = vst.msk [vmem:[#allocation2 + $0x1c0] sm:$0xf] %vm236, 0.0
      %292 = vst.msk [vmem:[#allocation2 + $0x1c8] sm:$0xff] %vm233, 0.0
      %293 = vst.msk [vmem:[#allocation2 + $0x1d0] sm:$0xff] %vm233, 0.0
      %294 = vst.msk [vmem:[#allocation2 + $0x1d8] sm:$0xf] %vm236, 0.0
      %v295 = vld [vmem:[%s224] sm:$0xff]
      %v296 = vld [vmem:[%s224 + $0x8] sm:$0xff]
      %v297 = vld [vmem:[%s224 + $0x10] sm:$0xff]
      %v298 = vld [vmem:[%s224 + $0x18] sm:$0xff]
      %v299 = vld [vmem:[%s224 + $0x20] sm:$0xff]
      %v300 = vld [vmem:[%s224 + $0x28] sm:$0xff]
      %v301 = vld [vmem:[%s224 + $0x30] sm:$0xff]
      %v302 = vld [vmem:[%s224 + $0x38] sm:$0xff]
      %v303 = vld [vmem:[%s224 + $0x40] sm:$0xff]
      %v304 = vld [vmem:[%s224 + $0x48] sm:$0xff]
      %v305 = vld [vmem:[%s224 + $0x50] sm:$0xff]
      %v306 = vld [vmem:[%s224 + $0x58] sm:$0xff]
      %v307 = vld [vmem:[%s224 + $0x60] sm:$0xff]
      %v308 = vld [vmem:[%s224 + $0x68] sm:$0xff]
      %v309 = vld [vmem:[%s224 + $0x70] sm:$0xff]
      %v310 = vld [vmem:[%s224 + $0x78] sm:$0xff]
      %v311 = vld [vmem:[%s224 + $0x80] sm:$0xff]
      %v312 = vld [vmem:[%s224 + $0x88] sm:$0xff]
      %v313 = vld [vmem:[%s224 + $0x90] sm:$0xff]
      %v314 = vld [vmem:[%s224 + $0x98] sm:$0xff]
      %v315 = vld [vmem:[%s224 + $0xa0] sm:$0xff]
      %v316 = vld [vmem:[%s224 + $0xa8] sm:$0xff]
      %v317 = vld [vmem:[%s224 + $0xb0] sm:$0xff]
      %v318 = vld [vmem:[%s224 + $0xb8] sm:$0xff]
      %v319 = vld [vmem:[%s224 + $0xc0] sm:$0xff]
      %v320 = vld [vmem:[%s224 + $0xc8] sm:$0xff]
      %v321 = vld [vmem:[%s224 + $0xd0] sm:$0xff]
      %v322 = vld [vmem:[%s224 + $0xd8] sm:$0xff]
      %v323 = vld [vmem:[%s224 + $0xe0] sm:$0xff]
      %v324 = vld [vmem:[%s224 + $0xe8] sm:$0xff]
      %v325 = vld [vmem:[%s224 + $0xf0] sm:$0xff]
      %v326 = vld [vmem:[%s224 + $0xf8] sm:$0xff]
      %s327 = scalar_lea.vmem [#allocation2], 48
      %328 = vst.msk [vmem:[%s327 + $0x2] sm:$0xff] %vm233, %v295
      %329 = vst.msk [vmem:[%s327 + $0xa] sm:$0xff] %vm233, %v296
      %330 = vst.msk [vmem:[%s327 + $0x1a] sm:$0xff] %vm233, %v297
      %331 = vst.msk [vmem:[%s327 + $0x22] sm:$0xff] %vm233, %v298
      %332 = vst.msk [vmem:[%s327 + $0x32] sm:$0xff] %vm233, %v299
      %333 = vst.msk [vmem:[%s327 + $0x3a] sm:$0xff] %vm233, %v300
      %334 = vst.msk [vmem:[%s327 + $0x4a] sm:$0xff] %vm233, %v301
      %335 = vst.msk [vmem:[%s327 + $0x52] sm:$0xff] %vm233, %v302
      %336 = vst.msk [vmem:[%s327 + $0x62] sm:$0xff] %vm233, %v303
      %337 = vst.msk [vmem:[%s327 + $0x6a] sm:$0xff] %vm233, %v304
      %338 = vst.msk [vmem:[%s327 + $0x7a] sm:$0xff] %vm233, %v305
      %339 = vst.msk [vmem:[%s327 + $0x82] sm:$0xff] %vm233, %v306
      %340 = vst.msk [vmem:[%s327 + $0x92] sm:$0xff] %vm233, %v307
      %341 = vst.msk [vmem:[%s327 + $0x9a] sm:$0xff] %vm233, %v308
      %342 = vst.msk [vmem:[%s327 + $0xaa] sm:$0xff] %vm233, %v309
      %343 = vst.msk [vmem:[%s327 + $0xb2] sm:$0xff] %vm233, %v310
      %344 = vst.msk [vmem:[%s327 + $0xc2] sm:$0xff] %vm233, %v311
      %345 = vst.msk [vmem:[%s327 + $0xca] sm:$0xff] %vm233, %v312
      %346 = vst.msk [vmem:[%s327 + $0xda] sm:$0xff] %vm233, %v313
      %347 = vst.msk [vmem:[%s327 + $0xe2] sm:$0xff] %vm233, %v314
      %348 = vst.msk [vmem:[%s327 + $0xf2] sm:$0xff] %vm233, %v315
      %349 = vst.msk [vmem:[%s327 + $0xfa] sm:$0xff] %vm233, %v316
      %350 = vst.msk [vmem:[%s327 + $0x10a] sm:$0xff] %vm233, %v317
      %351 = vst.msk [vmem:[%s327 + $0x112] sm:$0xff] %vm233, %v318
      %352 = vst.msk [vmem:[%s327 + $0x122] sm:$0xff] %vm233, %v319
      %353 = vst.msk [vmem:[%s327 + $0x12a] sm:$0xff] %vm233, %v320
      %354 = vst.msk [vmem:[%s327 + $0x13a] sm:$0xff] %vm233, %v321
      %355 = vst.msk [vmem:[%s327 + $0x142] sm:$0xff] %vm233, %v322
      %356 = vst.msk [vmem:[%s327 + $0x152] sm:$0xff] %vm233, %v323
      %357 = vst.msk [vmem:[%s327 + $0x15a] sm:$0xff] %vm233, %v324
      %358 = vst.msk [vmem:[%s327 + $0x16a] sm:$0xff] %vm233, %v325
      %359 = vst.msk [vmem:[%s327 + $0x172] sm:$0xff] %vm233, %v326
      %v360 = vld [vmem:[%s213] sm:$0x1]
      %v361 = vld [vmem:[#allocation2] sm:$0xff]
      %v362 = vld [vmem:[#allocation2 + $0x8] sm:$0xff]
      %v363 = vld [vmem:[#allocation2 + $0x18] sm:$0xff]
      %v364 = vld [vmem:[#allocation2 + $0x20] sm:$0xff]
      %v365 = vld [vmem:[#allocation2 + $0x30] sm:$0xff]
      %v366 = vld [vmem:[#allocation2 + $0x38] sm:$0xff]
      %v367 = vld [vmem:[#allocation2 + $0x48] sm:$0xff]
      %v368 = vld [vmem:[#allocation2 + $0x50] sm:$0xff]
      %v369 = vld [vmem:[#allocation2 + $0x60] sm:$0xff]
      %v370 = vld [vmem:[#allocation2 + $0x68] sm:$0xff]
      %v371 = vld [vmem:[#allocation2 + $0x78] sm:$0xff]
      %v372 = vld [vmem:[#allocation2 + $0x80] sm:$0xff]
      %v373 = vld [vmem:[#allocation2 + $0x90] sm:$0xff]
      %v374 = vld [vmem:[#allocation2 + $0x98] sm:$0xff]
      %v375 = vld [vmem:[#allocation2 + $0xa8] sm:$0xff]
      %v376 = vld [vmem:[#allocation2 + $0xb0] sm:$0xff]
      %v377 = vld [vmem:[#allocation2 + $0xc0] sm:$0xff]
      %v378 = vld [vmem:[#allocation2 + $0xc8] sm:$0xff]
      %v379 = vld [vmem:[#allocation2 + $0xd8] sm:$0xff]
      %v380 = vld [vmem:[#allocation2 + $0xe0] sm:$0xff]
      %v381 = vld [vmem:[#allocation2 + $0xf0] sm:$0xff]
      %v382 = vld [vmem:[#allocation2 + $0xf8] sm:$0xff]
      %v383 = vld [vmem:[#allocation2 + $0x108] sm:$0xff]
      %v384 = vld [vmem:[#allocation2 + $0x110] sm:$0xff]
      %v385 = vld [vmem:[#allocation2 + $0x120] sm:$0xff]
      %v386 = vld [vmem:[#allocation2 + $0x128] sm:$0xff]
      %v387 = vld [vmem:[#allocation2 + $0x138] sm:$0xff]
      %v388 = vld [vmem:[#allocation2 + $0x140] sm:$0xff]
      %v389 = vld [vmem:[#allocation2 + $0x150] sm:$0xff]
      %v390 = vld [vmem:[#allocation2 + $0x158] sm:$0xff]
      %v391 = vld [vmem:[#allocation2 + $0x168] sm:$0xff]
      %v392 = vld [vmem:[#allocation2 + $0x170] sm:$0xff]
      %v393 = vlaneseq
      %v394 = vshrl.u32 %v393, 7
      %v395 = vsub.s32 0, %v394
      %v396 = vrot.slane %v360, %v395
      %v397 = vmul.f32 %v361, %v396
      %v398 = vmul.f32 %v362, %v396
      %v399 = vmul.f32 %v363, %v396
      %v400 = vmul.f32 %v364, %v396
      %v401 = vmul.f32 %v365, %v396
      %v402 = vmul.f32 %v366, %v396
      %v403 = vmul.f32 %v367, %v396
      %v404 = vmul.f32 %v368, %v396
      %v405 = vmul.f32 %v369, %v396
      %v406 = vmul.f32 %v370, %v396
      %v407 = vmul.f32 %v371, %v396
      %v408 = vmul.f32 %v372, %v396
      %v409 = vmul.f32 %v373, %v396
      %v410 = vmul.f32 %v374, %v396
      %v411 = vmul.f32 %v375, %v396
      %v412 = vmul.f32 %v376, %v396
      %v413 = vmul.f32 %v377, %v396
      %v414 = vmul.f32 %v378, %v396
      %v415 = vmul.f32 %v379, %v396
      %v416 = vmul.f32 %v380, %v396
      %v417 = vmul.f32 %v381, %v396
      %v418 = vmul.f32 %v382, %v396
      %v419 = vmul.f32 %v383, %v396
      %v420 = vmul.f32 %v384, %v396
      %v421 = vmul.f32 %v385, %v396
      %v422 = vmul.f32 %v386, %v396
      %v423 = vmul.f32 %v387, %v396
      %v424 = vmul.f32 %v388, %v396
      %v425 = vmul.f32 %v389, %v396
      %v426 = vmul.f32 %v390, %v396
      %v427 = vmul.f32 %v391, %v396
      %v428 = vmul.f32 %v392, %v396
      %v429 = vadd.f32 %v397, 0.0
      %v430 = vadd.f32 %v398, 0.0
      %v431 = vadd.f32 %v399, 0.0
      %v432 = vadd.f32 %v400, 0.0
      %v433 = vadd.f32 %v401, 0.0
      %v434 = vadd.f32 %v402, 0.0
      %v435 = vadd.f32 %v403, 0.0
      %v436 = vadd.f32 %v404, 0.0
      %v437 = vadd.f32 %v405, 0.0
      %v438 = vadd.f32 %v406, 0.0
      %v439 = vadd.f32 %v407, 0.0
      %v440 = vadd.f32 %v408, 0.0
      %v441 = vadd.f32 %v409, 0.0
      %v442 = vadd.f32 %v410, 0.0
      %v443 = vadd.f32 %v411, 0.0
      %v444 = vadd.f32 %v412, 0.0
      %v445 = vadd.f32 %v413, 0.0
      %v446 = vadd.f32 %v414, 0.0
      %v447 = vadd.f32 %v415, 0.0
      %v448 = vadd.f32 %v416, 0.0
      %v449 = vadd.f32 %v417, 0.0
      %v450 = vadd.f32 %v418, 0.0
      %v451 = vadd.f32 %v419, 0.0
      %v452 = vadd.f32 %v420, 0.0
      %v453 = vadd.f32 %v421, 0.0
      %v454 = vadd.f32 %v422, 0.0
      %v455 = vadd.f32 %v423, 0.0
      %v456 = vadd.f32 %v424, 0.0
      %v457 = vadd.f32 %v425, 0.0
      %v458 = vadd.f32 %v426, 0.0
      %v459 = vadd.f32 %v427, 0.0
      %v460 = vadd.f32 %v428, 0.0
      %v461 = vld [vmem:[%s213 + $0x1] sm:$0x1]
      %v462 = vld [vmem:[#allocation2 + $0x1] sm:$0xff]
      %v463 = vld [vmem:[#allocation2 + $0x9] sm:$0xff]
      %v464 = vld [vmem:[#allocation2 + $0x19] sm:$0xff]
      %v465 = vld [vmem:[#allocation2 + $0x21] sm:$0xff]
      %v466 = vld [vmem:[#allocation2 + $0x31] sm:$0xff]
      %v467 = vld [vmem:[#allocation2 + $0x39] sm:$0xff]
      %v468 = vld [vmem:[#allocation2 + $0x49] sm:$0xff]
      %v469 = vld [vmem:[#allocation2 + $0x51] sm:$0xff]
      %v470 = vld [vmem:[#allocation2 + $0x61] sm:$0xff]
      %v471 = vld [vmem:[#allocation2 + $0x69] sm:$0xff]
      %v472 = vld [vmem:[#allocation2 + $0x79] sm:$0xff]
      %v473 = vld [vmem:[#allocation2 + $0x81] sm:$0xff]
      %v474 = vld [vmem:[#allocation2 + $0x91] sm:$0xff]
      %v475 = vld [vmem:[#allocation2 + $0x99] sm:$0xff]
      %v476 = vld [vmem:[#allocation2 + $0xa9] sm:$0xff]
      %v477 = vld [vmem:[#allocation2 + $0xb1] sm:$0xff]
      %v478 = vld [vmem:[#allocation2 + $0xc1] sm:$0xff]
      %v479 = vld [vmem:[#allocation2 + $0xc9] sm:$0xff]
      %v480 = vld [vmem:[#allocation2 + $0xd9] sm:$0xff]
      %v481 = vld [vmem:[#allocation2 + $0xe1] sm:$0xff]
      %v482 = vld [vmem:[#allocation2 + $0xf1] sm:$0xff]
      %v483 = vld [vmem:[#allocation2 + $0xf9] sm:$0xff]
      %v484 = vld [vmem:[#allocation2 + $0x109] sm:$0xff]
      %v485 = vld [vmem:[#allocation2 + $0x111] sm:$0xff]
      %v486 = vld [vmem:[#allocation2 + $0x121] sm:$0xff]
      %v487 = vld [vmem:[#allocation2 + $0x129] sm:$0xff]
      %v488 = vld [vmem:[#allocation2 + $0x139] sm:$0xff]
      %v489 = vld [vmem:[#allocation2 + $0x141] sm:$0xff]
      %v490 = vld [vmem:[#allocation2 + $0x151] sm:$0xff]
      %v491 = vld [vmem:[#allocation2 + $0x159] sm:$0xff]
      %v492 = vld [vmem:[#allocation2 + $0x169] sm:$0xff]
      %v493 = vld [vmem:[#allocation2 + $0x171] sm:$0xff]
      %v494 = vlaneseq
      %v495 = vshrl.u32 %v494, 7
      %v496 = vsub.s32 0, %v495
      %v497 = vrot.slane %v461, %v496
      %v498 = vmul.f32 %v462, %v497
      %v499 = vmul.f32 %v463, %v497
      %v500 = vmul.f32 %v464, %v497
      %v501 = vmul.f32 %v465, %v497
      %v502 = vmul.f32 %v466, %v497
      %v503 = vmul.f32 %v467, %v497
      %v504 = vmul.f32 %v468, %v497
      %v505 = vmul.f32 %v469, %v497
      %v506 = vmul.f32 %v470, %v497
      %v507 = vmul.f32 %v471, %v497
      %v508 = vmul.f32 %v472, %v497
      %v509 = vmul.f32 %v473, %v497
      %v510 = vmul.f32 %v474, %v497
      %v511 = vmul.f32 %v475, %v497
      %v512 = vmul.f32 %v476, %v497
      %v513 = vmul.f32 %v477, %v497
      %v514 = vmul.f32 %v478, %v497
      %v515 = vmul.f32 %v479, %v497
      %v516 = vmul.f32 %v480, %v497
      %v517 = vmul.f32 %v481, %v497
      %v518 = vmul.f32 %v482, %v497
      %v519 = vmul.f32 %v483, %v497
      %v520 = vmul.f32 %v484, %v497
      %v521 = vmul.f32 %v485, %v497
      %v522 = vmul.f32 %v486, %v497
      %v523 = vmul.f32 %v487, %v497
      %v524 = vmul.f32 %v488, %v497
      %v525 = vmul.f32 %v489, %v497
      %v526 = vmul.f32 %v490, %v497
      %v527 = vmul.f32 %v491, %v497
      %v528 = vmul.f32 %v492, %v497
      %v529 = vmul.f32 %v493, %v497
      %v530 = vadd.f32 %v429, %v498
      %v531 = vadd.f32 %v430, %v499
      %v532 = vadd.f32 %v431, %v500
      %v533 = vadd.f32 %v432, %v501
      %v534 = vadd.f32 %v433, %v502
      %v535 = vadd.f32 %v434, %v503
      %v536 = vadd.f32 %v435, %v504
      %v537 = vadd.f32 %v436, %v505
      %v538 = vadd.f32 %v437, %v506
      %v539 = vadd.f32 %v438, %v507
      %v540 = vadd.f32 %v439, %v508
      %v541 = vadd.f32 %v440, %v509
      %v542 = vadd.f32 %v441, %v510
      %v543 = vadd.f32 %v442, %v511
      %v544 = vadd.f32 %v443, %v512
      %v545 = vadd.f32 %v444, %v513
      %v546 = vadd.f32 %v445, %v514
      %v547 = vadd.f32 %v446, %v515
      %v548 = vadd.f32 %v447, %v516
      %v549 = vadd.f32 %v448, %v517
      %v550 = vadd.f32 %v449, %v518
      %v551 = vadd.f32 %v450, %v519
      %v552 = vadd.f32 %v451, %v520
      %v553 = vadd.f32 %v452, %v521
      %v554 = vadd.f32 %v453, %v522
      %v555 = vadd.f32 %v454, %v523
      %v556 = vadd.f32 %v455, %v524
      %v557 = vadd.f32 %v456, %v525
      %v558 = vadd.f32 %v457, %v526
      %v559 = vadd.f32 %v458, %v527
      %v560 = vadd.f32 %v459, %v528
      %v561 = vadd.f32 %v460, %v529
      %v562 = vld [vmem:[%s213 + $0x2] sm:$0x1]
      %v563 = vld [vmem:[#allocation2 + $0x2] sm:$0xff]
      %v564 = vld [vmem:[#allocation2 + $0xa] sm:$0xff]
      %v565 = vld [vmem:[#allocation2 + $0x1a] sm:$0xff]
      %v566 = vld [vmem:[#allocation2 + $0x22] sm:$0xff]
      %v567 = vld [vmem:[#allocation2 + $0x32] sm:$0xff]
      %v568 = vld [vmem:[#allocation2 + $0x3a] sm:$0xff]
      %v569 = vld [vmem:[#allocation2 + $0x4a] sm:$0xff]
      %v570 = vld [vmem:[#allocation2 + $0x52] sm:$0xff]
      %v571 = vld [vmem:[#allocation2 + $0x62] sm:$0xff]
      %v572 = vld [vmem:[#allocation2 + $0x6a] sm:$0xff]
      %v573 = vld [vmem:[#allocation2 + $0x7a] sm:$0xff]
      %v574 = vld [vmem:[#allocation2 + $0x82] sm:$0xff]
      %v575 = vld [vmem:[#allocation2 + $0x92] sm:$0xff]
      %v576 = vld [vmem:[#allocation2 + $0x9a] sm:$0xff]
      %v577 = vld [vmem:[#allocation2 + $0xaa] sm:$0xff]
      %v578 = vld [vmem:[#allocation2 + $0xb2] sm:$0xff]
      %v579 = vld [vmem:[#allocation2 + $0xc2] sm:$0xff]
      %v580 = vld [vmem:[#allocation2 + $0xca] sm:$0xff]
      %v581 = vld [vmem:[#allocation2 + $0xda] sm:$0xff]
      %v582 = vld [vmem:[#allocation2 + $0xe2] sm:$0xff]
      %v583 = vld [vmem:[#allocation2 + $0xf2] sm:$0xff]
      %v584 = vld [vmem:[#allocation2 + $0xfa] sm:$0xff]
      %v585 = vld [vmem:[#allocation2 + $0x10a] sm:$0xff]
      %v586 = vld [vmem:[#allocation2 + $0x112] sm:$0xff]
      %v587 = vld [vmem:[#allocation2 + $0x122] sm:$0xff]
      %v588 = vld [vmem:[#allocation2 + $0x12a] sm:$0xff]
      %v589 = vld [vmem:[#allocation2 + $0x13a] sm:$0xff]
      %v590 = vld [vmem:[#allocation2 + $0x142] sm:$0xff]
      %v591 = vld [vmem:[#allocation2 + $0x152] sm:$0xff]
      %v592 = vld [vmem:[#allocation2 + $0x15a] sm:$0xff]
      %v593 = vld [vmem:[#allocation2 + $0x16a] sm:$0xff]
      %v594 = vld [vmem:[#allocation2 + $0x172] sm:$0xff]
      %v595 = vlaneseq
      %v596 = vshrl.u32 %v595, 7
      %v597 = vsub.s32 0, %v596
      %v598 = vrot.slane %v562, %v597
      %v599 = vmul.f32 %v563, %v598
      %v600 = vmul.f32 %v564, %v598
      %v601 = vmul.f32 %v565, %v598
      %v602 = vmul.f32 %v566, %v598
      %v603 = vmul.f32 %v567, %v598
      %v604 = vmul.f32 %v568, %v598
      %v605 = vmul.f32 %v569, %v598
      %v606 = vmul.f32 %v570, %v598
      %v607 = vmul.f32 %v571, %v598
      %v608 = vmul.f32 %v572, %v598
      %v609 = vmul.f32 %v573, %v598
      %v610 = vmul.f32 %v574, %v598
      %v611 = vmul.f32 %v575, %v598
      %v612 = vmul.f32 %v576, %v598
      %v613 = vmul.f32 %v577, %v598
      %v614 = vmul.f32 %v578, %v598
      %v615 = vmul.f32 %v579, %v598
      %v616 = vmul.f32 %v580, %v598
      %v617 = vmul.f32 %v581, %v598
      %v618 = vmul.f32 %v582, %v598
      %v619 = vmul.f32 %v583, %v598
      %v620 = vmul.f32 %v584, %v598
      %v621 = vmul.f32 %v585, %v598
      %v622 = vmul.f32 %v586, %v598
      %v623 = vmul.f32 %v587, %v598
      %v624 = vmul.f32 %v588, %v598
      %v625 = vmul.f32 %v589, %v598
      %v626 = vmul.f32 %v590, %v598
      %v627 = vmul.f32 %v591, %v598
      %v628 = vmul.f32 %v592, %v598
      %v629 = vmul.f32 %v593, %v598
      %v630 = vmul.f32 %v594, %v598
      %v631 = vadd.f32 %v530, %v599
      %v632 = vadd.f32 %v531, %v600
      %v633 = vadd.f32 %v532, %v601
      %v634 = vadd.f32 %v533, %v602
      %v635 = vadd.f32 %v534, %v603
      %v636 = vadd.f32 %v535, %v604
      %v637 = vadd.f32 %v536, %v605
      %v638 = vadd.f32 %v537, %v606
      %v639 = vadd.f32 %v538, %v607
      %v640 = vadd.f32 %v539, %v608
      %v641 = vadd.f32 %v540, %v609
      %v642 = vadd.f32 %v541, %v610
      %v643 = vadd.f32 %v542, %v611
      %v644 = vadd.f32 %v543, %v612
      %v645 = vadd.f32 %v544, %v613
      %v646 = vadd.f32 %v545, %v614
      %v647 = vadd.f32 %v546, %v615
      %v648 = vadd.f32 %v547, %v616
      %v649 = vadd.f32 %v548, %v617
      %v650 = vadd.f32 %v549, %v618
      %v651 = vadd.f32 %v550, %v619
      %v652 = vadd.f32 %v551, %v620
      %v653 = vadd.f32 %v552, %v621
      %v654 = vadd.f32 %v553, %v622
      %v655 = vadd.f32 %v554, %v623
      %v656 = vadd.f32 %v555, %v624
      %v657 = vadd.f32 %v556, %v625
      %v658 = vadd.f32 %v557, %v626
      %v659 = vadd.f32 %v558, %v627
      %v660 = vadd.f32 %v559, %v628
      %v661 = vadd.f32 %v560, %v629
      %v662 = vadd.f32 %v561, %v630
      %v663 = vld [vmem:[%s213 + $0x3] sm:$0x1]
      %v664 = vld [vmem:[#allocation2 + $0x3] sm:$0xff]
      %v665 = vld [vmem:[#allocation2 + $0xb] sm:$0xff]
      %v666 = vld [vmem:[#allocation2 + $0x1b] sm:$0xff]
      %v667 = vld [vmem:[#allocation2 + $0x23] sm:$0xff]
      %v668 = vld [vmem:[#allocation2 + $0x33] sm:$0xff]
      %v669 = vld [vmem:[#allocation2 + $0x3b] sm:$0xff]
      %v670 = vld [vmem:[#allocation2 + $0x4b] sm:$0xff]
      %v671 = vld [vmem:[#allocation2 + $0x53] sm:$0xff]
      %v672 = vld [vmem:[#allocation2 + $0x63] sm:$0xff]
      %v673 = vld [vmem:[#allocation2 + $0x6b] sm:$0xff]
      %v674 = vld [vmem:[#allocation2 + $0x7b] sm:$0xff]
      %v675 = vld [vmem:[#allocation2 + $0x83] sm:$0xff]
      %v676 = vld [vmem:[#allocation2 + $0x93] sm:$0xff]
      %v677 = vld [vmem:[#allocation2 + $0x9b] sm:$0xff]
      %v678 = vld [vmem:[#allocation2 + $0xab] sm:$0xff]
      %v679 = vld [vmem:[#allocation2 + $0xb3] sm:$0xff]
      %v680 = vld [vmem:[#allocation2 + $0xc3] sm:$0xff]
      %v681 = vld [vmem:[#allocation2 + $0xcb] sm:$0xff]
      %v682 = vld [vmem:[#allocation2 + $0xdb] sm:$0xff]
      %v683 = vld [vmem:[#allocation2 + $0xe3] sm:$0xff]
      %v684 = vld [vmem:[#allocation2 + $0xf3] sm:$0xff]
      %v685 = vld [vmem:[#allocation2 + $0xfb] sm:$0xff]
      %v686 = vld [vmem:[#allocation2 + $0x10b] sm:$0xff]
      %v687 = vld [vmem:[#allocation2 + $0x113] sm:$0xff]
      %v688 = vld [vmem:[#allocation2 + $0x123] sm:$0xff]
      %v689 = vld [vmem:[#allocation2 + $0x12b] sm:$0xff]
      %v690 = vld [vmem:[#allocation2 + $0x13b] sm:$0xff]
      %v691 = vld [vmem:[#allocation2 + $0x143] sm:$0xff]
      %v692 = vld [vmem:[#allocation2 + $0x153] sm:$0xff]
      %v693 = vld [vmem:[#allocation2 + $0x15b] sm:$0xff]
      %v694 = vld [vmem:[#allocation2 + $0x16b] sm:$0xff]
      %v695 = vld [vmem:[#allocation2 + $0x173] sm:$0xff]
      %v696 = vlaneseq
      %v697 = vshrl.u32 %v696, 7
      %v698 = vsub.s32 0, %v697
      %v699 = vrot.slane %v663, %v698
      %v700 = vmul.f32 %v664, %v699
      %v701 = vmul.f32 %v665, %v699
      %v702 = vmul.f32 %v666, %v699
      %v703 = vmul.f32 %v667, %v699
      %v704 = vmul.f32 %v668, %v699
      %v705 = vmul.f32 %v669, %v699
      %v706 = vmul.f32 %v670, %v699
      %v707 = vmul.f32 %v671, %v699
      %v708 = vmul.f32 %v672, %v699
      %v709 = vmul.f32 %v673, %v699
      %v710 = vmul.f32 %v674, %v699
      %v711 = vmul.f32 %v675, %v699
      %v712 = vmul.f32 %v676, %v699
      %v713 = vmul.f32 %v677, %v699
      %v714 = vmul.f32 %v678, %v699
      %v715 = vmul.f32 %v679, %v699
      %v716 = vmul.f32 %v680, %v699
      %v717 = vmul.f32 %v681, %v699
      %v718 = vmul.f32 %v682, %v699
      %v719 = vmul.f32 %v683, %v699
      %v720 = vmul.f32 %v684, %v699
      %v721 = vmul.f32 %v685, %v699
      %v722 = vmul.f32 %v686, %v699
      %v723 = vmul.f32 %v687, %v699
      %v724 = vmul.f32 %v688, %v699
      %v725 = vmul.f32 %v689, %v699
      %v726 = vmul.f32 %v690, %v699
      %v727 = vmul.f32 %v691, %v699
      %v728 = vmul.f32 %v692, %v699
      %v729 = vmul.f32 %v693, %v699
      %v730 = vmul.f32 %v694, %v699
      %v731 = vmul.f32 %v695, %v699
      %v732 = vadd.f32 %v631, %v700
      %v733 = vadd.f32 %v632, %v701
      %v734 = vadd.f32 %v633, %v702
      %v735 = vadd.f32 %v634, %v703
      %v736 = vadd.f32 %v635, %v704
      %v737 = vadd.f32 %v636, %v705
      %v738 = vadd.f32 %v637, %v706
      %v739 = vadd.f32 %v638, %v707
      %v740 = vadd.f32 %v639, %v708
      %v741 = vadd.f32 %v640, %v709
      %v742 = vadd.f32 %v641, %v710
      %v743 = vadd.f32 %v642, %v711
      %v744 = vadd.f32 %v643, %v712
      %v745 = vadd.f32 %v644, %v713
      %v746 = vadd.f32 %v645, %v714
      %v747 = vadd.f32 %v646, %v715
      %v748 = vadd.f32 %v647, %v716
      %v749 = vadd.f32 %v648, %v717
      %v750 = vadd.f32 %v649, %v718
      %v751 = vadd.f32 %v650, %v719
      %v752 = vadd.f32 %v651, %v720
      %v753 = vadd.f32 %v652, %v721
      %v754 = vadd.f32 %v653, %v722
      %v755 = vadd.f32 %v654, %v723
      %v756 = vadd.f32 %v655, %v724
      %v757 = vadd.f32 %v656, %v725
      %v758 = vadd.f32 %v657, %v726
      %v759 = vadd.f32 %v658, %v727
      %v760 = vadd.f32 %v659, %v728
      %v761 = vadd.f32 %v660, %v729
      %v762 = vadd.f32 %v661, %v730
      %v763 = vadd.f32 %v662, %v731
      %v764 = vld [vmem:[%s213 + $0x4] sm:$0x1]
      %v765 = vld [vmem:[#allocation2 + $0x4] sm:$0xff]
      %v766 = vld [vmem:[#allocation2 + $0xc] sm:$0xff]
      %v767 = vld [vmem:[#allocation2 + $0x1c] sm:$0xff]
      %v768 = vld [vmem:[#allocation2 + $0x24] sm:$0xff]
      %v769 = vld [vmem:[#allocation2 + $0x34] sm:$0xff]
      %v770 = vld [vmem:[#allocation2 + $0x3c] sm:$0xff]
      %v771 = vld [vmem:[#allocation2 + $0x4c] sm:$0xff]
      %v772 = vld [vmem:[#allocation2 + $0x54] sm:$0xff]
      %v773 = vld [vmem:[#allocation2 + $0x64] sm:$0xff]
      %v774 = vld [vmem:[#allocation2 + $0x6c] sm:$0xff]
      %v775 = vld [vmem:[#allocation2 + $0x7c] sm:$0xff]
      %v776 = vld [vmem:[#allocation2 + $0x84] sm:$0xff]
      %v777 = vld [vmem:[#allocation2 + $0x94] sm:$0xff]
      %v778 = vld [vmem:[#allocation2 + $0x9c] sm:$0xff]
      %v779 = vld [vmem:[#allocation2 + $0xac] sm:$0xff]
      %v780 = vld [vmem:[#allocation2 + $0xb4] sm:$0xff]
      %v781 = vld [vmem:[#allocation2 + $0xc4] sm:$0xff]
      %v782 = vld [vmem:[#allocation2 + $0xcc] sm:$0xff]
      %v783 = vld [vmem:[#allocation2 + $0xdc] sm:$0xff]
      %v784 = vld [vmem:[#allocation2 + $0xe4] sm:$0xff]
      %v785 = vld [vmem:[#allocation2 + $0xf4] sm:$0xff]
      %v786 = vld [vmem:[#allocation2 + $0xfc] sm:$0xff]
      %v787 = vld [vmem:[#allocation2 + $0x10c] sm:$0xff]
      %v788 = vld [vmem:[#allocation2 + $0x114] sm:$0xff]
      %v789 = vld [vmem:[#allocation2 + $0x124] sm:$0xff]
      %v790 = vld [vmem:[#allocation2 + $0x12c] sm:$0xff]
      %v791 = vld [vmem:[#allocation2 + $0x13c] sm:$0xff]
      %v792 = vld [vmem:[#allocation2 + $0x144] sm:$0xff]
      %v793 = vld [vmem:[#allocation2 + $0x154] sm:$0xff]
      %v794 = vld [vmem:[#allocation2 + $0x15c] sm:$0xff]
      %v795 = vld [vmem:[#allocation2 + $0x16c] sm:$0xff]
      %v796 = vld [vmem:[#allocation2 + $0x174] sm:$0xff]
      %v797 = vlaneseq
      %v798 = vshrl.u32 %v797, 7
      %v799 = vsub.s32 0, %v798
      %v800 = vrot.slane %v764, %v799
      %v801 = vmul.f32 %v765, %v800
      %v802 = vmul.f32 %v766, %v800
      %v803 = vmul.f32 %v767, %v800
      %v804 = vmul.f32 %v768, %v800
      %v805 = vmul.f32 %v769, %v800
      %v806 = vmul.f32 %v770, %v800
      %v807 = vmul.f32 %v771, %v800
      %v808 = vmul.f32 %v772, %v800
      %v809 = vmul.f32 %v773, %v800
      %v810 = vmul.f32 %v774, %v800
      %v811 = vmul.f32 %v775, %v800
      %v812 = vmul.f32 %v776, %v800
      %v813 = vmul.f32 %v777, %v800
      %v814 = vmul.f32 %v778, %v800
      %v815 = vmul.f32 %v779, %v800
      %v816 = vmul.f32 %v780, %v800
      %v817 = vmul.f32 %v781, %v800
      %v818 = vmul.f32 %v782, %v800
      %v819 = vmul.f32 %v783, %v800
      %v820 = vmul.f32 %v784, %v800
      %v821 = vmul.f32 %v785, %v800
      %v822 = vmul.f32 %v786, %v800
      %v823 = vmul.f32 %v787, %v800
      %v824 = vmul.f32 %v788, %v800
      %v825 = vmul.f32 %v789, %v800
      %v826 = vmul.f32 %v790, %v800
      %v827 = vmul.f32 %v791, %v800
      %v828 = vmul.f32 %v792, %v800
      %v829 = vmul.f32 %v793, %v800
      %v830 = vmul.f32 %v794, %v800
      %v831 = vmul.f32 %v795, %v800
      %v832 = vmul.f32 %v796, %v800
      %v833 = vadd.f32 %v732, %v801
      %v834 = vadd.f32 %v733, %v802
      %v835 = vadd.f32 %v734, %v803
      %v836 = vadd.f32 %v735, %v804
      %v837 = vadd.f32 %v736, %v805
      %v838 = vadd.f32 %v737, %v806
      %v839 = vadd.f32 %v738, %v807
      %v840 = vadd.f32 %v739, %v808
      %v841 = vadd.f32 %v740, %v809
      %v842 = vadd.f32 %v741, %v810
      %v843 = vadd.f32 %v742, %v811
      %v844 = vadd.f32 %v743, %v812
      %v845 = vadd.f32 %v744, %v813
      %v846 = vadd.f32 %v745, %v814
      %v847 = vadd.f32 %v746, %v815
      %v848 = vadd.f32 %v747, %v816
      %v849 = vadd.f32 %v748, %v817
      %v850 = vadd.f32 %v749, %v818
      %v851 = vadd.f32 %v750, %v819
      %v852 = vadd.f32 %v751, %v820
      %v853 = vadd.f32 %v752, %v821
      %v854 = vadd.f32 %v753, %v822
      %v855 = vadd.f32 %v754, %v823
      %v856 = vadd.f32 %v755, %v824
      %v857 = vadd.f32 %v756, %v825
      %v858 = vadd.f32 %v757, %v826
      %v859 = vadd.f32 %v758, %v827
      %v860 = vadd.f32 %v759, %v828
      %v861 = vadd.f32 %v760, %v829
      %v862 = vadd.f32 %v761, %v830
      %v863 = vadd.f32 %v762, %v831
      %v864 = vadd.f32 %v763, %v832
      %v865 = vld [vmem:[%s213 + $0x5] sm:$0x1]
      %s866 = scalar_lea.vmem [#allocation2], 24
      %v867 = vld [vmem:[%s866] sm:$0xff]
      %v868 = vld [vmem:[%s866 + $0x8] sm:$0xff]
      %v869 = vld [vmem:[%s866 + $0x18] sm:$0xff]
      %v870 = vld [vmem:[%s866 + $0x20] sm:$0xff]
      %v871 = vld [vmem:[%s866 + $0x30] sm:$0xff]
      %v872 = vld [vmem:[%s866 + $0x38] sm:$0xff]
      %v873 = vld [vmem:[%s866 + $0x48] sm:$0xff]
      %v874 = vld [vmem:[%s866 + $0x50] sm:$0xff]
      %v875 = vld [vmem:[%s866 + $0x60] sm:$0xff]
      %v876 = vld [vmem:[%s866 + $0x68] sm:$0xff]
      %v877 = vld [vmem:[%s866 + $0x78] sm:$0xff]
      %v878 = vld [vmem:[%s866 + $0x80] sm:$0xff]
      %v879 = vld [vmem:[%s866 + $0x90] sm:$0xff]
      %v880 = vld [vmem:[%s866 + $0x98] sm:$0xff]
      %v881 = vld [vmem:[%s866 + $0xa8] sm:$0xff]
      %v882 = vld [vmem:[%s866 + $0xb0] sm:$0xff]
      %v883 = vld [vmem:[%s866 + $0xc0] sm:$0xff]
      %v884 = vld [vmem:[%s866 + $0xc8] sm:$0xff]
      %v885 = vld [vmem:[%s866 + $0xd8] sm:$0xff]
      %v886 = vld [vmem:[%s866 + $0xe0] sm:$0xff]
      %v887 = vld [vmem:[%s866 + $0xf0] sm:$0xff]
      %v888 = vld [vmem:[%s866 + $0xf8] sm:$0xff]
      %v889 = vld [vmem:[%s866 + $0x108] sm:$0xff]
      %v890 = vld [vmem:[%s866 + $0x110] sm:$0xff]
      %v891 = vld [vmem:[%s866 + $0x120] sm:$0xff]
      %v892 = vld [vmem:[%s866 + $0x128] sm:$0xff]
      %v893 = vld [vmem:[%s866 + $0x138] sm:$0xff]
      %v894 = vld [vmem:[%s866 + $0x140] sm:$0xff]
      %v895 = vld [vmem:[%s866 + $0x150] sm:$0xff]
      %v896 = vld [vmem:[%s866 + $0x158] sm:$0xff]
      %v897 = vld [vmem:[%s866 + $0x168] sm:$0xff]
      %v898 = vld [vmem:[%s866 + $0x170] sm:$0xff]
      %v899 = vlaneseq
      %v900 = vshrl.u32 %v899, 7
      %v901 = vsub.s32 0, %v900
      %v902 = vrot.slane %v865, %v901
      %v903 = vmul.f32 %v867, %v902
      %v904 = vmul.f32 %v868, %v902
      %v905 = vmul.f32 %v869, %v902
      %v906 = vmul.f32 %v870, %v902
      %v907 = vmul.f32 %v871, %v902
      %v908 = vmul.f32 %v872, %v902
      %v909 = vmul.f32 %v873, %v902
      %v910 = vmul.f32 %v874, %v902
      %v911 = vmul.f32 %v875, %v902
      %v912 = vmul.f32 %v876, %v902
      %v913 = vmul.f32 %v877, %v902
      %v914 = vmul.f32 %v878, %v902
      %v915 = vmul.f32 %v879, %v902
      %v916 = vmul.f32 %v880, %v902
      %v917 = vmul.f32 %v881, %v902
      %v918 = vmul.f32 %v882, %v902
      %v919 = vmul.f32 %v883, %v902
      %v920 = vmul.f32 %v884, %v902
      %v921 = vmul.f32 %v885, %v902
      %v922 = vmul.f32 %v886, %v902
      %v923 = vmul.f32 %v887, %v902
      %v924 = vmul.f32 %v888, %v902
      %v925 = vmul.f32 %v889, %v902
      %v926 = vmul.f32 %v890, %v902
      %v927 = vmul.f32 %v891, %v902
      %v928 = vmul.f32 %v892, %v902
      %v929 = vmul.f32 %v893, %v902
      %v930 = vmul.f32 %v894, %v902
      %v931 = vmul.f32 %v895, %v902
      %v932 = vmul.f32 %v896, %v902
      %v933 = vmul.f32 %v897, %v902
      %v934 = vmul.f32 %v898, %v902
      %v935 = vadd.f32 %v833, %v903
      %v936 = vadd.f32 %v834, %v904
      %v937 = vadd.f32 %v835, %v905
      %v938 = vadd.f32 %v836, %v906
      %v939 = vadd.f32 %v837, %v907
      %v940 = vadd.f32 %v838, %v908
      %v941 = vadd.f32 %v839, %v909
      %v942 = vadd.f32 %v840, %v910
      %v943 = vadd.f32 %v841, %v911
      %v944 = vadd.f32 %v842, %v912
      %v945 = vadd.f32 %v843, %v913
      %v946 = vadd.f32 %v844, %v914
      %v947 = vadd.f32 %v845, %v915
      %v948 = vadd.f32 %v846, %v916
      %v949 = vadd.f32 %v847, %v917
      %v950 = vadd.f32 %v848, %v918
      %v951 = vadd.f32 %v849, %v919
      %v952 = vadd.f32 %v850, %v920
      %v953 = vadd.f32 %v851, %v921
      %v954 = vadd.f32 %v852, %v922
      %v955 = vadd.f32 %v853, %v923
      %v956 = vadd.f32 %v854, %v924
      %v957 = vadd.f32 %v855, %v925
      %v958 = vadd.f32 %v856, %v926
      %v959 = vadd.f32 %v857, %v927
      %v960 = vadd.f32 %v858, %v928
      %v961 = vadd.f32 %v859, %v929
      %v962 = vadd.f32 %v860, %v930
      %v963 = vadd.f32 %v861, %v931
      %v964 = vadd.f32 %v862, %v932
      %v965 = vadd.f32 %v863, %v933
      %v966 = vadd.f32 %v864, %v934
      %v967 = vld [vmem:[%s213 + $0x6] sm:$0x1]
      %v968 = vld [vmem:[%s866 + $0x1] sm:$0xff]
      %v969 = vld [vmem:[%s866 + $0x9] sm:$0xff]
      %v970 = vld [vmem:[%s866 + $0x19] sm:$0xff]
      %v971 = vld [vmem:[%s866 + $0x21] sm:$0xff]
      %v972 = vld [vmem:[%s866 + $0x31] sm:$0xff]
      %v973 = vld [vmem:[%s866 + $0x39] sm:$0xff]
      %v974 = vld [vmem:[%s866 + $0x49] sm:$0xff]
      %v975 = vld [vmem:[%s866 + $0x51] sm:$0xff]
      %v976 = vld [vmem:[%s866 + $0x61] sm:$0xff]
      %v977 = vld [vmem:[%s866 + $0x69] sm:$0xff]
      %v978 = vld [vmem:[%s866 + $0x79] sm:$0xff]
      %v979 = vld [vmem:[%s866 + $0x81] sm:$0xff]
      %v980 = vld [vmem:[%s866 + $0x91] sm:$0xff]
      %v981 = vld [vmem:[%s866 + $0x99] sm:$0xff]
      %v982 = vld [vmem:[%s866 + $0xa9] sm:$0xff]
      %v983 = vld [vmem:[%s866 + $0xb1] sm:$0xff]
      %v984 = vld [vmem:[%s866 + $0xc1] sm:$0xff]
      %v985 = vld [vmem:[%s866 + $0xc9] sm:$0xff]
      %v986 = vld [vmem:[%s866 + $0xd9] sm:$0xff]
      %v987 = vld [vmem:[%s866 + $0xe1] sm:$0xff]
      %v988 = vld [vmem:[%s866 + $0xf1] sm:$0xff]
      %v989 = vld [vmem:[%s866 + $0xf9] sm:$0xff]
      %v990 = vld [vmem:[%s866 + $0x109] sm:$0xff]
      %v991 = vld [vmem:[%s866 + $0x111] sm:$0xff]
      %v992 = vld [vmem:[%s866 + $0x121] sm:$0xff]
      %v993 = vld [vmem:[%s866 + $0x129] sm:$0xff]
      %v994 = vld [vmem:[%s866 + $0x139] sm:$0xff]
      %v995 = vld [vmem:[%s866 + $0x141] sm:$0xff]
      %v996 = vld [vmem:[%s866 + $0x151] sm:$0xff]
      %v997 = vld [vmem:[%s866 + $0x159] sm:$0xff]
      %v998 = vld [vmem:[%s866 + $0x169] sm:$0xff]
      %v999 = vld [vmem:[%s866 + $0x171] sm:$0xff]
      %v1000 = vlaneseq
      %v1001 = vshrl.u32 %v1000, 7
      %v1002 = vsub.s32 0, %v1001
      %v1003 = vrot.slane %v967, %v1002
      %v1004 = vmul.f32 %v968, %v1003
      %v1005 = vmul.f32 %v969, %v1003
      %v1006 = vmul.f32 %v970, %v1003
      %v1007 = vmul.f32 %v971, %v1003
      %v1008 = vmul.f32 %v972, %v1003
      %v1009 = vmul.f32 %v973, %v1003
      %v1010 = vmul.f32 %v974, %v1003
      %v1011 = vmul.f32 %v975, %v1003
      %v1012 = vmul.f32 %v976, %v1003
      %v1013 = vmul.f32 %v977, %v1003
      %v1014 = vmul.f32 %v978, %v1003
      %v1015 = vmul.f32 %v979, %v1003
      %v1016 = vmul.f32 %v980, %v1003
      %v1017 = vmul.f32 %v981, %v1003
      %v1018 = vmul.f32 %v982, %v1003
      %v1019 = vmul.f32 %v983, %v1003
      %v1020 = vmul.f32 %v984, %v1003
      %v1021 = vmul.f32 %v985, %v1003
      %v1022 = vmul.f32 %v986, %v1003
      %v1023 = vmul.f32 %v987, %v1003
      %v1024 = vmul.f32 %v988, %v1003
      %v1025 = vmul.f32 %v989, %v1003
      %v1026 = vmul.f32 %v990, %v1003
      %v1027 = vmul.f32 %v991, %v1003
      %v1028 = vmul.f32 %v992, %v1003
      %v1029 = vmul.f32 %v993, %v1003
      %v1030 = vmul.f32 %v994, %v1003
      %v1031 = vmul.f32 %v995, %v1003
      %v1032 = vmul.f32 %v996, %v1003
      %v1033 = vmul.f32 %v997, %v1003
      %v1034 = vmul.f32 %v998, %v1003
      %v1035 = vmul.f32 %v999, %v1003
      %v1036 = vadd.f32 %v935, %v1004
      %v1037 = vadd.f32 %v936, %v1005
      %v1038 = vadd.f32 %v937, %v1006
      %v1039 = vadd.f32 %v938, %v1007
      %v1040 = vadd.f32 %v939, %v1008
      %v1041 = vadd.f32 %v940, %v1009
      %v1042 = vadd.f32 %v941, %v1010
      %v1043 = vadd.f32 %v942, %v1011
      %v1044 = vadd.f32 %v943, %v1012
      %v1045 = vadd.f32 %v944, %v1013
      %v1046 = vadd.f32 %v945, %v1014
      %v1047 = vadd.f32 %v946, %v1015
      %v1048 = vadd.f32 %v947, %v1016
      %v1049 = vadd.f32 %v948, %v1017
      %v1050 = vadd.f32 %v949, %v1018
      %v1051 = vadd.f32 %v950, %v1019
      %v1052 = vadd.f32 %v951, %v1020
      %v1053 = vadd.f32 %v952, %v1021
      %v1054 = vadd.f32 %v953, %v1022
      %v1055 = vadd.f32 %v954, %v1023
      %v1056 = vadd.f32 %v955, %v1024
      %v1057 = vadd.f32 %v956, %v1025
      %v1058 = vadd.f32 %v957, %v1026
      %v1059 = vadd.f32 %v958, %v1027
      %v1060 = vadd.f32 %v959, %v1028
      %v1061 = vadd.f32 %v960, %v1029
      %v1062 = vadd.f32 %v961, %v1030
      %v1063 = vadd.f32 %v962, %v1031
      %v1064 = vadd.f32 %v963, %v1032
      %v1065 = vadd.f32 %v964, %v1033
      %v1066 = vadd.f32 %v965, %v1034
      %v1067 = vadd.f32 %v966, %v1035
      %v1068 = vld [vmem:[%s213 + $0x7] sm:$0x1]
      %v1069 = vld [vmem:[%s866 + $0x2] sm:$0xff]
      %v1070 = vld [vmem:[%s866 + $0xa] sm:$0xff]
      %v1071 = vld [vmem:[%s866 + $0x1a] sm:$0xff]
      %v1072 = vld [vmem:[%s866 + $0x22] sm:$0xff]
      %v1073 = vld [vmem:[%s866 + $0x32] sm:$0xff]
      %v1074 = vld [vmem:[%s866 + $0x3a] sm:$0xff]
      %v1075 = vld [vmem:[%s866 + $0x4a] sm:$0xff]
      %v1076 = vld [vmem:[%s866 + $0x52] sm:$0xff]
      %v1077 = vld [vmem:[%s866 + $0x62] sm:$0xff]
      %v1078 = vld [vmem:[%s866 + $0x6a] sm:$0xff]
      %v1079 = vld [vmem:[%s866 + $0x7a] sm:$0xff]
      %v1080 = vld [vmem:[%s866 + $0x82] sm:$0xff]
      %v1081 = vld [vmem:[%s866 + $0x92] sm:$0xff]
      %v1082 = vld [vmem:[%s866 + $0x9a] sm:$0xff]
      %v1083 = vld [vmem:[%s866 + $0xaa] sm:$0xff]
      %v1084 = vld [vmem:[%s866 + $0xb2] sm:$0xff]
      %v1085 = vld [vmem:[%s866 + $0xc2] sm:$0xff]
      %v1086 = vld [vmem:[%s866 + $0xca] sm:$0xff]
      %v1087 = vld [vmem:[%s866 + $0xda] sm:$0xff]
      %v1088 = vld [vmem:[%s866 + $0xe2] sm:$0xff]
      %v1089 = vld [vmem:[%s866 + $0xf2] sm:$0xff]
      %v1090 = vld [vmem:[%s866 + $0xfa] sm:$0xff]
      %v1091 = vld [vmem:[%s866 + $0x10a] sm:$0xff]
      %v1092 = vld [vmem:[%s866 + $0x112] sm:$0xff]
      %v1093 = vld [vmem:[%s866 + $0x122] sm:$0xff]
      %v1094 = vld [vmem:[%s866 + $0x12a] sm:$0xff]
      %v1095 = vld [vmem:[%s866 + $0x13a] sm:$0xff]
      %v1096 = vld [vmem:[%s866 + $0x142] sm:$0xff]
      %v1097 = vld [vmem:[%s866 + $0x152] sm:$0xff]
      %v1098 = vld [vmem:[%s866 + $0x15a] sm:$0xff]
      %v1099 = vld [vmem:[%s866 + $0x16a] sm:$0xff]
      %v1100 = vld [vmem:[%s866 + $0x172] sm:$0xff]
      %v1101 = vlaneseq
      %v1102 = vshrl.u32 %v1101, 7
      %v1103 = vsub.s32 0, %v1102
      %v1104 = vrot.slane %v1068, %v1103
      %v1105 = vmul.f32 %v1069, %v1104
      %v1106 = vmul.f32 %v1070, %v1104
      %v1107 = vmul.f32 %v1071, %v1104
      %v1108 = vmul.f32 %v1072, %v1104
      %v1109 = vmul.f32 %v1073, %v1104
      %v1110 = vmul.f32 %v1074, %v1104
      %v1111 = vmul.f32 %v1075, %v1104
      %v1112 = vmul.f32 %v1076, %v1104
      %v1113 = vmul.f32 %v1077, %v1104
      %v1114 = vmul.f32 %v1078, %v1104
      %v1115 = vmul.f32 %v1079, %v1104
      %v1116 = vmul.f32 %v1080, %v1104
      %v1117 = vmul.f32 %v1081, %v1104
      %v1118 = vmul.f32 %v1082, %v1104
      %v1119 = vmul.f32 %v1083, %v1104
      %v1120 = vmul.f32 %v1084, %v1104
      %v1121 = vmul.f32 %v1085, %v1104
      %v1122 = vmul.f32 %v1086, %v1104
      %v1123 = vmul.f32 %v1087, %v1104
      %v1124 = vmul.f32 %v1088, %v1104
      %v1125 = vmul.f32 %v1089, %v1104
      %v1126 = vmul.f32 %v1090, %v1104
      %v1127 = vmul.f32 %v1091, %v1104
      %v1128 = vmul.f32 %v1092, %v1104
      %v1129 = vmul.f32 %v1093, %v1104
      %v1130 = vmul.f32 %v1094, %v1104
      %v1131 = vmul.f32 %v1095, %v1104
      %v1132 = vmul.f32 %v1096, %v1104
      %v1133 = vmul.f32 %v1097, %v1104
      %v1134 = vmul.f32 %v1098, %v1104
      %v1135 = vmul.f32 %v1099, %v1104
      %v1136 = vmul.f32 %v1100, %v1104
      %v1137 = vadd.f32 %v1036, %v1105
      %v1138 = vadd.f32 %v1037, %v1106
      %v1139 = vadd.f32 %v1038, %v1107
      %v1140 = vadd.f32 %v1039, %v1108
      %v1141 = vadd.f32 %v1040, %v1109
      %v1142 = vadd.f32 %v1041, %v1110
      %v1143 = vadd.f32 %v1042, %v1111
      %v1144 = vadd.f32 %v1043, %v1112
      %v1145 = vadd.f32 %v1044, %v1113
      %v1146 = vadd.f32 %v1045, %v1114
      %v1147 = vadd.f32 %v1046, %v1115
      %v1148 = vadd.f32 %v1047, %v1116
      %v1149 = vadd.f32 %v1048, %v1117
      %v1150 = vadd.f32 %v1049, %v1118
      %v1151 = vadd.f32 %v1050, %v1119
      %v1152 = vadd.f32 %v1051, %v1120
      %v1153 = vadd.f32 %v1052, %v1121
      %v1154 = vadd.f32 %v1053, %v1122
      %v1155 = vadd.f32 %v1054, %v1123
      %v1156 = vadd.f32 %v1055, %v1124
      %v1157 = vadd.f32 %v1056, %v1125
      %v1158 = vadd.f32 %v1057, %v1126
      %v1159 = vadd.f32 %v1058, %v1127
      %v1160 = vadd.f32 %v1059, %v1128
      %v1161 = vadd.f32 %v1060, %v1129
      %v1162 = vadd.f32 %v1061, %v1130
      %v1163 = vadd.f32 %v1062, %v1131
      %v1164 = vadd.f32 %v1063, %v1132
      %v1165 = vadd.f32 %v1064, %v1133
      %v1166 = vadd.f32 %v1065, %v1134
      %v1167 = vadd.f32 %v1066, %v1135
      %v1168 = vadd.f32 %v1067, %v1136
      %v1169 = vld [vmem:[%s213 + $0x8] sm:$0x1]
      %v1170 = vld [vmem:[%s866 + $0x3] sm:$0xff]
      %v1171 = vld [vmem:[%s866 + $0xb] sm:$0xff]
      %v1172 = vld [vmem:[%s866 + $0x1b] sm:$0xff]
      %v1173 = vld [vmem:[%s866 + $0x23] sm:$0xff]
      %v1174 = vld [vmem:[%s866 + $0x33] sm:$0xff]
      %v1175 = vld [vmem:[%s866 + $0x3b] sm:$0xff]
      %v1176 = vld [vmem:[%s866 + $0x4b] sm:$0xff]
      %v1177 = vld [vmem:[%s866 + $0x53] sm:$0xff]
      %v1178 = vld [vmem:[%s866 + $0x63] sm:$0xff]
      %v1179 = vld [vmem:[%s866 + $0x6b] sm:$0xff]
      %v1180 = vld [vmem:[%s866 + $0x7b] sm:$0xff]
      %v1181 = vld [vmem:[%s866 + $0x83] sm:$0xff]
      %v1182 = vld [vmem:[%s866 + $0x93] sm:$0xff]
      %v1183 = vld [vmem:[%s866 + $0x9b] sm:$0xff]
      %v1184 = vld [vmem:[%s866 + $0xab] sm:$0xff]
      %v1185 = vld [vmem:[%s866 + $0xb3] sm:$0xff]
      %v1186 = vld [vmem:[%s866 + $0xc3] sm:$0xff]
      %v1187 = vld [vmem:[%s866 + $0xcb] sm:$0xff]
      %v1188 = vld [vmem:[%s866 + $0xdb] sm:$0xff]
      %v1189 = vld [vmem:[%s866 + $0xe3] sm:$0xff]
      %v1190 = vld [vmem:[%s866 + $0xf3] sm:$0xff]
      %v1191 = vld [vmem:[%s866 + $0xfb] sm:$0xff]
      %v1192 = vld [vmem:[%s866 + $0x10b] sm:$0xff]
      %v1193 = vld [vmem:[%s866 + $0x113] sm:$0xff]
      %v1194 = vld [vmem:[%s866 + $0x123] sm:$0xff]
      %v1195 = vld [vmem:[%s866 + $0x12b] sm:$0xff]
      %v1196 = vld [vmem:[%s866 + $0x13b] sm:$0xff]
      %v1197 = vld [vmem:[%s866 + $0x143] sm:$0xff]
      %v1198 = vld [vmem:[%s866 + $0x153] sm:$0xff]
      %v1199 = vld [vmem:[%s866 + $0x15b] sm:$0xff]
      %v1200 = vld [vmem:[%s866 + $0x16b] sm:$0xff]
      %v1201 = vld [vmem:[%s866 + $0x173] sm:$0xff]
      %v1202 = vlaneseq
      %v1203 = vshrl.u32 %v1202, 7
      %v1204 = vsub.s32 0, %v1203
      %v1205 = vrot.slane %v1169, %v1204
      %v1206 = vmul.f32 %v1170, %v1205
      %v1207 = vmul.f32 %v1171, %v1205
      %v1208 = vmul.f32 %v1172, %v1205
      %v1209 = vmul.f32 %v1173, %v1205
      %v1210 = vmul.f32 %v1174, %v1205
      %v1211 = vmul.f32 %v1175, %v1205
      %v1212 = vmul.f32 %v1176, %v1205
      %v1213 = vmul.f32 %v1177, %v1205
      %v1214 = vmul.f32 %v1178, %v1205
      %v1215 = vmul.f32 %v1179, %v1205
      %v1216 = vmul.f32 %v1180, %v1205
      %v1217 = vmul.f32 %v1181, %v1205
      %v1218 = vmul.f32 %v1182, %v1205
      %v1219 = vmul.f32 %v1183, %v1205
      %v1220 = vmul.f32 %v1184, %v1205
      %v1221 = vmul.f32 %v1185, %v1205
      %v1222 = vmul.f32 %v1186, %v1205
      %v1223 = vmul.f32 %v1187, %v1205
      %v1224 = vmul.f32 %v1188, %v1205
      %v1225 = vmul.f32 %v1189, %v1205
      %v1226 = vmul.f32 %v1190, %v1205
      %v1227 = vmul.f32 %v1191, %v1205
      %v1228 = vmul.f32 %v1192, %v1205
      %v1229 = vmul.f32 %v1193, %v1205
      %v1230 = vmul.f32 %v1194, %v1205
      %v1231 = vmul.f32 %v1195, %v1205
      %v1232 = vmul.f32 %v1196, %v1205
      %v1233 = vmul.f32 %v1197, %v1205
      %v1234 = vmul.f32 %v1198, %v1205
      %v1235 = vmul.f32 %v1199, %v1205
      %v1236 = vmul.f32 %v1200, %v1205
      %v1237 = vmul.f32 %v1201, %v1205
      %v1238 = vadd.f32 %v1137, %v1206
      %v1239 = vadd.f32 %v1138, %v1207
      %v1240 = vadd.f32 %v1139, %v1208
      %v1241 = vadd.f32 %v1140, %v1209
      %v1242 = vadd.f32 %v1141, %v1210
      %v1243 = vadd.f32 %v1142, %v1211
      %v1244 = vadd.f32 %v1143, %v1212
      %v1245 = vadd.f32 %v1144, %v1213
      %v1246 = vadd.f32 %v1145, %v1214
      %v1247 = vadd.f32 %v1146, %v1215
      %v1248 = vadd.f32 %v1147, %v1216
      %v1249 = vadd.f32 %v1148, %v1217
      %v1250 = vadd.f32 %v1149, %v1218
      %v1251 = vadd.f32 %v1150, %v1219
      %v1252 = vadd.f32 %v1151, %v1220
      %v1253 = vadd.f32 %v1152, %v1221
      %v1254 = vadd.f32 %v1153, %v1222
      %v1255 = vadd.f32 %v1154, %v1223
      %v1256 = vadd.f32 %v1155, %v1224
      %v1257 = vadd.f32 %v1156, %v1225
      %v1258 = vadd.f32 %v1157, %v1226
      %v1259 = vadd.f32 %v1158, %v1227
      %v1260 = vadd.f32 %v1159, %v1228
      %v1261 = vadd.f32 %v1160, %v1229
      %v1262 = vadd.f32 %v1161, %v1230
      %v1263 = vadd.f32 %v1162, %v1231
      %v1264 = vadd.f32 %v1163, %v1232
      %v1265 = vadd.f32 %v1164, %v1233
      %v1266 = vadd.f32 %v1165, %v1234
      %v1267 = vadd.f32 %v1166, %v1235
      %v1268 = vadd.f32 %v1167, %v1236
      %v1269 = vadd.f32 %v1168, %v1237
      %v1270 = vld [vmem:[%s213 + $0x9] sm:$0x1]
      %v1271 = vld [vmem:[%s866 + $0x4] sm:$0xff]
      %v1272 = vld [vmem:[%s866 + $0xc] sm:$0xff]
      %v1273 = vld [vmem:[%s866 + $0x1c] sm:$0xff]
      %v1274 = vld [vmem:[%s866 + $0x24] sm:$0xff]
      %v1275 = vld [vmem:[%s866 + $0x34] sm:$0xff]
      %v1276 = vld [vmem:[%s866 + $0x3c] sm:$0xff]
      %v1277 = vld [vmem:[%s866 + $0x4c] sm:$0xff]
      %v1278 = vld [vmem:[%s866 + $0x54] sm:$0xff]
      %v1279 = vld [vmem:[%s866 + $0x64] sm:$0xff]
      %v1280 = vld [vmem:[%s866 + $0x6c] sm:$0xff]
      %v1281 = vld [vmem:[%s866 + $0x7c] sm:$0xff]
      %v1282 = vld [vmem:[%s866 + $0x84] sm:$0xff]
      %v1283 = vld [vmem:[%s866 + $0x94] sm:$0xff]
      %v1284 = vld [vmem:[%s866 + $0x9c] sm:$0xff]
      %v1285 = vld [vmem:[%s866 + $0xac] sm:$0xff]
      %v1286 = vld [vmem:[%s866 + $0xb4] sm:$0xff]
      %v1287 = vld [vmem:[%s866 + $0xc4] sm:$0xff]
      %v1288 = vld [vmem:[%s866 + $0xcc] sm:$0xff]
      %v1289 = vld [vmem:[%s866 + $0xdc] sm:$0xff]
      %v1290 = vld [vmem:[%s866 + $0xe4] sm:$0xff]
      %v1291 = vld [vmem:[%s866 + $0xf4] sm:$0xff]
      %v1292 = vld [vmem:[%s866 + $0xfc] sm:$0xff]
      %v1293 = vld [vmem:[%s866 + $0x10c] sm:$0xff]
      %v1294 = vld [vmem:[%s866 + $0x114] sm:$0xff]
      %v1295 = vld [vmem:[%s866 + $0x124] sm:$0xff]
      %v1296 = vld [vmem:[%s866 + $0x12c] sm:$0xff]
      %v1297 = vld [vmem:[%s866 + $0x13c] sm:$0xff]
      %v1298 = vld [vmem:[%s866 + $0x144] sm:$0xff]
      %v1299 = vld [vmem:[%s866 + $0x154] sm:$0xff]
      %v1300 = vld [vmem:[%s866 + $0x15c] sm:$0xff]
      %v1301 = vld [vmem:[%s866 + $0x16c] sm:$0xff]
      %v1302 = vld [vmem:[%s866 + $0x174] sm:$0xff]
      %v1303 = vlaneseq
      %v1304 = vshrl.u32 %v1303, 7
      %v1305 = vsub.s32 0, %v1304
      %v1306 = vrot.slane %v1270, %v1305
      %v1307 = vmul.f32 %v1271, %v1306
      %v1308 = vmul.f32 %v1272, %v1306
      %v1309 = vmul.f32 %v1273, %v1306
      %v1310 = vmul.f32 %v1274, %v1306
      %v1311 = vmul.f32 %v1275, %v1306
      %v1312 = vmul.f32 %v1276, %v1306
      %v1313 = vmul.f32 %v1277, %v1306
      %v1314 = vmul.f32 %v1278, %v1306
      %v1315 = vmul.f32 %v1279, %v1306
      %v1316 = vmul.f32 %v1280, %v1306
      %v1317 = vmul.f32 %v1281, %v1306
      %v1318 = vmul.f32 %v1282, %v1306
      %v1319 = vmul.f32 %v1283, %v1306
      %v1320 = vmul.f32 %v1284, %v1306
      %v1321 = vmul.f32 %v1285, %v1306
      %v1322 = vmul.f32 %v1286, %v1306
      %v1323 = vmul.f32 %v1287, %v1306
      %v1324 = vmul.f32 %v1288, %v1306
      %v1325 = vmul.f32 %v1289, %v1306
      %v1326 = vmul.f32 %v1290, %v1306
      %v1327 = vmul.f32 %v1291, %v1306
      %v1328 = vmul.f32 %v1292, %v1306
      %v1329 = vmul.f32 %v1293, %v1306
      %v1330 = vmul.f32 %v1294, %v1306
      %v1331 = vmul.f32 %v1295, %v1306
      %v1332 = vmul.f32 %v1296, %v1306
      %v1333 = vmul.f32 %v1297, %v1306
      %v1334 = vmul.f32 %v1298, %v1306
      %v1335 = vmul.f32 %v1299, %v1306
      %v1336 = vmul.f32 %v1300, %v1306
      %v1337 = vmul.f32 %v1301, %v1306
      %v1338 = vmul.f32 %v1302, %v1306
      %v1339 = vadd.f32 %v1238, %v1307
      %v1340 = vadd.f32 %v1239, %v1308
      %v1341 = vadd.f32 %v1240, %v1309
      %v1342 = vadd.f32 %v1241, %v1310
      %v1343 = vadd.f32 %v1242, %v1311
      %v1344 = vadd.f32 %v1243, %v1312
      %v1345 = vadd.f32 %v1244, %v1313
      %v1346 = vadd.f32 %v1245, %v1314
      %v1347 = vadd.f32 %v1246, %v1315
      %v1348 = vadd.f32 %v1247, %v1316
      %v1349 = vadd.f32 %v1248, %v1317
      %v1350 = vadd.f32 %v1249, %v1318
      %v1351 = vadd.f32 %v1250, %v1319
      %v1352 = vadd.f32 %v1251, %v1320
      %v1353 = vadd.f32 %v1252, %v1321
      %v1354 = vadd.f32 %v1253, %v1322
      %v1355 = vadd.f32 %v1254, %v1323
      %v1356 = vadd.f32 %v1255, %v1324
      %v1357 = vadd.f32 %v1256, %v1325
      %v1358 = vadd.f32 %v1257, %v1326
      %v1359 = vadd.f32 %v1258, %v1327
      %v1360 = vadd.f32 %v1259, %v1328
      %v1361 = vadd.f32 %v1260, %v1329
      %v1362 = vadd.f32 %v1261, %v1330
      %v1363 = vadd.f32 %v1262, %v1331
      %v1364 = vadd.f32 %v1263, %v1332
      %v1365 = vadd.f32 %v1264, %v1333
      %v1366 = vadd.f32 %v1265, %v1334
      %v1367 = vadd.f32 %v1266, %v1335
      %v1368 = vadd.f32 %v1267, %v1336
      %v1369 = vadd.f32 %v1268, %v1337
      %v1370 = vadd.f32 %v1269, %v1338
      %v1371 = vld [vmem:[%s213 + $0xa] sm:$0x1]
      %v1372 = vld [vmem:[%s327] sm:$0xff]
      %v1373 = vld [vmem:[%s327 + $0x8] sm:$0xff]
      %v1374 = vld [vmem:[%s327 + $0x18] sm:$0xff]
      %v1375 = vld [vmem:[%s327 + $0x20] sm:$0xff]
      %v1376 = vld [vmem:[%s327 + $0x30] sm:$0xff]
      %v1377 = vld [vmem:[%s327 + $0x38] sm:$0xff]
      %v1378 = vld [vmem:[%s327 + $0x48] sm:$0xff]
      %v1379 = vld [vmem:[%s327 + $0x50] sm:$0xff]
      %v1380 = vld [vmem:[%s327 + $0x60] sm:$0xff]
      %v1381 = vld [vmem:[%s327 + $0x68] sm:$0xff]
      %v1382 = vld [vmem:[%s327 + $0x78] sm:$0xff]
      %v1383 = vld [vmem:[%s327 + $0x80] sm:$0xff]
      %v1384 = vld [vmem:[%s327 + $0x90] sm:$0xff]
      %v1385 = vld [vmem:[%s327 + $0x98] sm:$0xff]
      %v1386 = vld [vmem:[%s327 + $0xa8] sm:$0xff]
      %v1387 = vld [vmem:[%s327 + $0xb0] sm:$0xff]
      %v1388 = vld [vmem:[%s327 + $0xc0] sm:$0xff]
      %v1389 = vld [vmem:[%s327 + $0xc8] sm:$0xff]
      %v1390 = vld [vmem:[%s327 + $0xd8] sm:$0xff]
      %v1391 = vld [vmem:[%s327 + $0xe0] sm:$0xff]
      %v1392 = vld [vmem:[%s327 + $0xf0] sm:$0xff]
      %v1393 = vld [vmem:[%s327 + $0xf8] sm:$0xff]
      %v1394 = vld [vmem:[%s327 + $0x108] sm:$0xff]
      %v1395 = vld [vmem:[%s327 + $0x110] sm:$0xff]
      %v1396 = vld [vmem:[%s327 + $0x120] sm:$0xff]
      %v1397 = vld [vmem:[%s327 + $0x128] sm:$0xff]
      %v1398 = vld [vmem:[%s327 + $0x138] sm:$0xff]
      %v1399 = vld [vmem:[%s327 + $0x140] sm:$0xff]
      %v1400 = vld [vmem:[%s327 + $0x150] sm:$0xff]
      %v1401 = vld [vmem:[%s327 + $0x158] sm:$0xff]
      %v1402 = vld [vmem:[%s327 + $0x168] sm:$0xff]
      %v1403 = vld [vmem:[%s327 + $0x170] sm:$0xff]
      %v1404 = vlaneseq
      %v1405 = vshrl.u32 %v1404, 7
      %v1406 = vsub.s32 0, %v1405
      %v1407 = vrot.slane %v1371, %v1406
      %v1408 = vmul.f32 %v1372, %v1407
      %v1409 = vmul.f32 %v1373, %v1407
      %v1410 = vmul.f32 %v1374, %v1407
      %v1411 = vmul.f32 %v1375, %v1407
      %v1412 = vmul.f32 %v1376, %v1407
      %v1413 = vmul.f32 %v1377, %v1407
      %v1414 = vmul.f32 %v1378, %v1407
      %v1415 = vmul.f32 %v1379, %v1407
      %v1416 = vmul.f32 %v1380, %v1407
      %v1417 = vmul.f32 %v1381, %v1407
      %v1418 = vmul.f32 %v1382, %v1407
      %v1419 = vmul.f32 %v1383, %v1407
      %v1420 = vmul.f32 %v1384, %v1407
      %v1421 = vmul.f32 %v1385, %v1407
      %v1422 = vmul.f32 %v1386, %v1407
      %v1423 = vmul.f32 %v1387, %v1407
      %v1424 = vmul.f32 %v1388, %v1407
      %v1425 = vmul.f32 %v1389, %v1407
      %v1426 = vmul.f32 %v1390, %v1407
      %v1427 = vmul.f32 %v1391, %v1407
      %v1428 = vmul.f32 %v1392, %v1407
      %v1429 = vmul.f32 %v1393, %v1407
      %v1430 = vmul.f32 %v1394, %v1407
      %v1431 = vmul.f32 %v1395, %v1407
      %v1432 = vmul.f32 %v1396, %v1407
      %v1433 = vmul.f32 %v1397, %v1407
      %v1434 = vmul.f32 %v1398, %v1407
      %v1435 = vmul.f32 %v1399, %v1407
      %v1436 = vmul.f32 %v1400, %v1407
      %v1437 = vmul.f32 %v1401, %v1407
      %v1438 = vmul.f32 %v1402, %v1407
      %v1439 = vmul.f32 %v1403, %v1407
      %v1440 = vadd.f32 %v1339, %v1408
      %v1441 = vadd.f32 %v1340, %v1409
      %v1442 = vadd.f32 %v1341, %v1410
      %v1443 = vadd.f32 %v1342, %v1411
      %v1444 = vadd.f32 %v1343, %v1412
      %v1445 = vadd.f32 %v1344, %v1413
      %v1446 = vadd.f32 %v1345, %v1414
      %v1447 = vadd.f32 %v1346, %v1415
      %v1448 = vadd.f32 %v1347, %v1416
      %v1449 = vadd.f32 %v1348, %v1417
      %v1450 = vadd.f32 %v1349, %v1418
      %v1451 = vadd.f32 %v1350, %v1419
      %v1452 = vadd.f32 %v1351, %v1420
      %v1453 = vadd.f32 %v1352, %v1421
      %v1454 = vadd.f32 %v1353, %v1422
      %v1455 = vadd.f32 %v1354, %v1423
      %v1456 = vadd.f32 %v1355, %v1424
      %v1457 = vadd.f32 %v1356, %v1425
      %v1458 = vadd.f32 %v1357, %v1426
      %v1459 = vadd.f32 %v1358, %v1427
      %v1460 = vadd.f32 %v1359, %v1428
      %v1461 = vadd.f32 %v1360, %v1429
      %v1462 = vadd.f32 %v1361, %v1430
      %v1463 = vadd.f32 %v1362, %v1431
      %v1464 = vadd.f32 %v1363, %v1432
      %v1465 = vadd.f32 %v1364, %v1433
      %v1466 = vadd.f32 %v1365, %v1434
      %v1467 = vadd.f32 %v1366, %v1435
      %v1468 = vadd.f32 %v1367, %v1436
      %v1469 = vadd.f32 %v1368, %v1437
      %v1470 = vadd.f32 %v1369, %v1438
      %v1471 = vadd.f32 %v1370, %v1439
      %v1472 = vld [vmem:[%s213 + $0xb] sm:$0x1]
      %v1473 = vld [vmem:[%s327 + $0x1] sm:$0xff]
      %v1474 = vld [vmem:[%s327 + $0x9] sm:$0xff]
      %v1475 = vld [vmem:[%s327 + $0x19] sm:$0xff]
      %v1476 = vld [vmem:[%s327 + $0x21] sm:$0xff]
      %v1477 = vld [vmem:[%s327 + $0x31] sm:$0xff]
      %v1478 = vld [vmem:[%s327 + $0x39] sm:$0xff]
      %v1479 = vld [vmem:[%s327 + $0x49] sm:$0xff]
      %v1480 = vld [vmem:[%s327 + $0x51] sm:$0xff]
      %v1481 = vld [vmem:[%s327 + $0x61] sm:$0xff]
      %v1482 = vld [vmem:[%s327 + $0x69] sm:$0xff]
      %v1483 = vld [vmem:[%s327 + $0x79] sm:$0xff]
      %v1484 = vld [vmem:[%s327 + $0x81] sm:$0xff]
      %v1485 = vld [vmem:[%s327 + $0x91] sm:$0xff]
      %v1486 = vld [vmem:[%s327 + $0x99] sm:$0xff]
      %v1487 = vld [vmem:[%s327 + $0xa9] sm:$0xff]
      %v1488 = vld [vmem:[%s327 + $0xb1] sm:$0xff]
      %v1489 = vld [vmem:[%s327 + $0xc1] sm:$0xff]
      %v1490 = vld [vmem:[%s327 + $0xc9] sm:$0xff]
      %v1491 = vld [vmem:[%s327 + $0xd9] sm:$0xff]
      %v1492 = vld [vmem:[%s327 + $0xe1] sm:$0xff]
      %v1493 = vld [vmem:[%s327 + $0xf1] sm:$0xff]
      %v1494 = vld [vmem:[%s327 + $0xf9] sm:$0xff]
      %v1495 = vld [vmem:[%s327 + $0x109] sm:$0xff]
      %v1496 = vld [vmem:[%s327 + $0x111] sm:$0xff]
      %v1497 = vld [vmem:[%s327 + $0x121] sm:$0xff]
      %v1498 = vld [vmem:[%s327 + $0x129] sm:$0xff]
      %v1499 = vld [vmem:[%s327 + $0x139] sm:$0xff]
      %v1500 = vld [vmem:[%s327 + $0x141] sm:$0xff]
      %v1501 = vld [vmem:[%s327 + $0x151] sm:$0xff]
      %v1502 = vld [vmem:[%s327 + $0x159] sm:$0xff]
      %v1503 = vld [vmem:[%s327 + $0x169] sm:$0xff]
      %v1504 = vld [vmem:[%s327 + $0x171] sm:$0xff]
      %v1505 = vlaneseq
      %v1506 = vshrl.u32 %v1505, 7
      %v1507 = vsub.s32 0, %v1506
      %v1508 = vrot.slane %v1472, %v1507
      %v1509 = vmul.f32 %v1473, %v1508
      %v1510 = vmul.f32 %v1474, %v1508
      %v1511 = vmul.f32 %v1475, %v1508
      %v1512 = vmul.f32 %v1476, %v1508
      %v1513 = vmul.f32 %v1477, %v1508
      %v1514 = vmul.f32 %v1478, %v1508
      %v1515 = vmul.f32 %v1479, %v1508
      %v1516 = vmul.f32 %v1480, %v1508
      %v1517 = vmul.f32 %v1481, %v1508
      %v1518 = vmul.f32 %v1482, %v1508
      %v1519 = vmul.f32 %v1483, %v1508
      %v1520 = vmul.f32 %v1484, %v1508
      %v1521 = vmul.f32 %v1485, %v1508
      %v1522 = vmul.f32 %v1486, %v1508
      %v1523 = vmul.f32 %v1487, %v1508
      %v1524 = vmul.f32 %v1488, %v1508
      %v1525 = vmul.f32 %v1489, %v1508
      %v1526 = vmul.f32 %v1490, %v1508
      %v1527 = vmul.f32 %v1491, %v1508
      %v1528 = vmul.f32 %v1492, %v1508
      %v1529 = vmul.f32 %v1493, %v1508
      %v1530 = vmul.f32 %v1494, %v1508
      %v1531 = vmul.f32 %v1495, %v1508
      %v1532 = vmul.f32 %v1496, %v1508
      %v1533 = vmul.f32 %v1497, %v1508
      %v1534 = vmul.f32 %v1498, %v1508
      %v1535 = vmul.f32 %v1499, %v1508
      %v1536 = vmul.f32 %v1500, %v1508
      %v1537 = vmul.f32 %v1501, %v1508
      %v1538 = vmul.f32 %v1502, %v1508
      %v1539 = vmul.f32 %v1503, %v1508
      %v1540 = vmul.f32 %v1504, %v1508
      %v1541 = vadd.f32 %v1440, %v1509
      %v1542 = vadd.f32 %v1441, %v1510
      %v1543 = vadd.f32 %v1442, %v1511
      %v1544 = vadd.f32 %v1443, %v1512
      %v1545 = vadd.f32 %v1444, %v1513
      %v1546 = vadd.f32 %v1445, %v1514
      %v1547 = vadd.f32 %v1446, %v1515
      %v1548 = vadd.f32 %v1447, %v1516
      %v1549 = vadd.f32 %v1448, %v1517
      %v1550 = vadd.f32 %v1449, %v1518
      %v1551 = vadd.f32 %v1450, %v1519
      %v1552 = vadd.f32 %v1451, %v1520
      %v1553 = vadd.f32 %v1452, %v1521
      %v1554 = vadd.f32 %v1453, %v1522
      %v1555 = vadd.f32 %v1454, %v1523
      %v1556 = vadd.f32 %v1455, %v1524
      %v1557 = vadd.f32 %v1456, %v1525
      %v1558 = vadd.f32 %v1457, %v1526
      %v1559 = vadd.f32 %v1458, %v1527
      %v1560 = vadd.f32 %v1459, %v1528
      %v1561 = vadd.f32 %v1460, %v1529
      %v1562 = vadd.f32 %v1461, %v1530
      %v1563 = vadd.f32 %v1462, %v1531
      %v1564 = vadd.f32 %v1463, %v1532
      %v1565 = vadd.f32 %v1464, %v1533
      %v1566 = vadd.f32 %v1465, %v1534
      %v1567 = vadd.f32 %v1466, %v1535
      %v1568 = vadd.f32 %v1467, %v1536
      %v1569 = vadd.f32 %v1468, %v1537
      %v1570 = vadd.f32 %v1469, %v1538
      %v1571 = vadd.f32 %v1470, %v1539
      %v1572 = vadd.f32 %v1471, %v1540
      %v1573 = vld [vmem:[%s213 + $0xc] sm:$0x1]
      %v1574 = vld [vmem:[%s327 + $0x2] sm:$0xff]
      %v1575 = vld [vmem:[%s327 + $0xa] sm:$0xff]
      %v1576 = vld [vmem:[%s327 + $0x1a] sm:$0xff]
      %v1577 = vld [vmem:[%s327 + $0x22] sm:$0xff]
      %v1578 = vld [vmem:[%s327 + $0x32] sm:$0xff]
      %v1579 = vld [vmem:[%s327 + $0x3a] sm:$0xff]
      %v1580 = vld [vmem:[%s327 + $0x4a] sm:$0xff]
      %v1581 = vld [vmem:[%s327 + $0x52] sm:$0xff]
      %v1582 = vld [vmem:[%s327 + $0x62] sm:$0xff]
      %v1583 = vld [vmem:[%s327 + $0x6a] sm:$0xff]
      %v1584 = vld [vmem:[%s327 + $0x7a] sm:$0xff]
      %v1585 = vld [vmem:[%s327 + $0x82] sm:$0xff]
      %v1586 = vld [vmem:[%s327 + $0x92] sm:$0xff]
      %v1587 = vld [vmem:[%s327 + $0x9a] sm:$0xff]
      %v1588 = vld [vmem:[%s327 + $0xaa] sm:$0xff]
      %v1589 = vld [vmem:[%s327 + $0xb2] sm:$0xff]
      %v1590 = vld [vmem:[%s327 + $0xc2] sm:$0xff]
      %v1591 = vld [vmem:[%s327 + $0xca] sm:$0xff]
      %v1592 = vld [vmem:[%s327 + $0xda] sm:$0xff]
      %v1593 = vld [vmem:[%s327 + $0xe2] sm:$0xff]
      %v1594 = vld [vmem:[%s327 + $0xf2] sm:$0xff]
      %v1595 = vld [vmem:[%s327 + $0xfa] sm:$0xff]
      %v1596 = vld [vmem:[%s327 + $0x10a] sm:$0xff]
      %v1597 = vld [vmem:[%s327 + $0x112] sm:$0xff]
      %v1598 = vld [vmem:[%s327 + $0x122] sm:$0xff]
      %v1599 = vld [vmem:[%s327 + $0x12a] sm:$0xff]
      %v1600 = vld [vmem:[%s327 + $0x13a] sm:$0xff]
      %v1601 = vld [vmem:[%s327 + $0x142] sm:$0xff]
      %v1602 = vld [vmem:[%s327 + $0x152] sm:$0xff]
      %v1603 = vld [vmem:[%s327 + $0x15a] sm:$0xff]
      %v1604 = vld [vmem:[%s327 + $0x16a] sm:$0xff]
      %v1605 = vld [vmem:[%s327 + $0x172] sm:$0xff]
      %v1606 = vlaneseq
      %v1607 = vshrl.u32 %v1606, 7
      %v1608 = vsub.s32 0, %v1607
      %v1609 = vrot.slane %v1573, %v1608
      %v1610 = vmul.f32 %v1574, %v1609
      %v1611 = vmul.f32 %v1575, %v1609
      %v1612 = vmul.f32 %v1576, %v1609
      %v1613 = vmul.f32 %v1577, %v1609
      %v1614 = vmul.f32 %v1578, %v1609
      %v1615 = vmul.f32 %v1579, %v1609
      %v1616 = vmul.f32 %v1580, %v1609
      %v1617 = vmul.f32 %v1581, %v1609
      %v1618 = vmul.f32 %v1582, %v1609
      %v1619 = vmul.f32 %v1583, %v1609
      %v1620 = vmul.f32 %v1584, %v1609
      %v1621 = vmul.f32 %v1585, %v1609
      %v1622 = vmul.f32 %v1586, %v1609
      %v1623 = vmul.f32 %v1587, %v1609
      %v1624 = vmul.f32 %v1588, %v1609
      %v1625 = vmul.f32 %v1589, %v1609
      %v1626 = vmul.f32 %v1590, %v1609
      %v1627 = vmul.f32 %v1591, %v1609
      %v1628 = vmul.f32 %v1592, %v1609
      %v1629 = vmul.f32 %v1593, %v1609
      %v1630 = vmul.f32 %v1594, %v1609
      %v1631 = vmul.f32 %v1595, %v1609
      %v1632 = vmul.f32 %v1596, %v1609
      %v1633 = vmul.f32 %v1597, %v1609
      %v1634 = vmul.f32 %v1598, %v1609
      %v1635 = vmul.f32 %v1599, %v1609
      %v1636 = vmul.f32 %v1600, %v1609
      %v1637 = vmul.f32 %v1601, %v1609
      %v1638 = vmul.f32 %v1602, %v1609
      %v1639 = vmul.f32 %v1603, %v1609
      %v1640 = vmul.f32 %v1604, %v1609
      %v1641 = vmul.f32 %v1605, %v1609
      %v1642 = vadd.f32 %v1541, %v1610
      %v1643 = vadd.f32 %v1542, %v1611
      %v1644 = vadd.f32 %v1543, %v1612
      %v1645 = vadd.f32 %v1544, %v1613
      %v1646 = vadd.f32 %v1545, %v1614
      %v1647 = vadd.f32 %v1546, %v1615
      %v1648 = vadd.f32 %v1547, %v1616
      %v1649 = vadd.f32 %v1548, %v1617
      %v1650 = vadd.f32 %v1549, %v1618
      %v1651 = vadd.f32 %v1550, %v1619
      %v1652 = vadd.f32 %v1551, %v1620
      %v1653 = vadd.f32 %v1552, %v1621
      %v1654 = vadd.f32 %v1553, %v1622
      %v1655 = vadd.f32 %v1554, %v1623
      %v1656 = vadd.f32 %v1555, %v1624
      %v1657 = vadd.f32 %v1556, %v1625
      %v1658 = vadd.f32 %v1557, %v1626
      %v1659 = vadd.f32 %v1558, %v1627
      %v1660 = vadd.f32 %v1559, %v1628
      %v1661 = vadd.f32 %v1560, %v1629
      %v1662 = vadd.f32 %v1561, %v1630
      %v1663 = vadd.f32 %v1562, %v1631
      %v1664 = vadd.f32 %v1563, %v1632
      %v1665 = vadd.f32 %v1564, %v1633
      %v1666 = vadd.f32 %v1565, %v1634
      %v1667 = vadd.f32 %v1566, %v1635
      %v1668 = vadd.f32 %v1567, %v1636
      %v1669 = vadd.f32 %v1568, %v1637
      %v1670 = vadd.f32 %v1569, %v1638
      %v1671 = vadd.f32 %v1570, %v1639
      %v1672 = vadd.f32 %v1571, %v1640
      %v1673 = vadd.f32 %v1572, %v1641
      %v1674 = vld [vmem:[%s213 + $0xd] sm:$0x1]
      %v1675 = vld [vmem:[%s327 + $0x3] sm:$0xff]
      %v1676 = vld [vmem:[%s327 + $0xb] sm:$0xff]
      %v1677 = vld [vmem:[%s327 + $0x1b] sm:$0xff]
      %v1678 = vld [vmem:[%s327 + $0x23] sm:$0xff]
      %v1679 = vld [vmem:[%s327 + $0x33] sm:$0xff]
      %v1680 = vld [vmem:[%s327 + $0x3b] sm:$0xff]
      %v1681 = vld [vmem:[%s327 + $0x4b] sm:$0xff]
      %v1682 = vld [vmem:[%s327 + $0x53] sm:$0xff]
      %v1683 = vld [vmem:[%s327 + $0x63] sm:$0xff]
      %v1684 = vld [vmem:[%s327 + $0x6b] sm:$0xff]
      %v1685 = vld [vmem:[%s327 + $0x7b] sm:$0xff]
      %v1686 = vld [vmem:[%s327 + $0x83] sm:$0xff]
      %v1687 = vld [vmem:[%s327 + $0x93] sm:$0xff]
      %v1688 = vld [vmem:[%s327 + $0x9b] sm:$0xff]
      %v1689 = vld [vmem:[%s327 + $0xab] sm:$0xff]
      %v1690 = vld [vmem:[%s327 + $0xb3] sm:$0xff]
      %v1691 = vld [vmem:[%s327 + $0xc3] sm:$0xff]
      %v1692 = vld [vmem:[%s327 + $0xcb] sm:$0xff]
      %v1693 = vld [vmem:[%s327 + $0xdb] sm:$0xff]
      %v1694 = vld [vmem:[%s327 + $0xe3] sm:$0xff]
      %v1695 = vld [vmem:[%s327 + $0xf3] sm:$0xff]
      %v1696 = vld [vmem:[%s327 + $0xfb] sm:$0xff]
      %v1697 = vld [vmem:[%s327 + $0x10b] sm:$0xff]
      %v1698 = vld [vmem:[%s327 + $0x113] sm:$0xff]
      %v1699 = vld [vmem:[%s327 + $0x123] sm:$0xff]
      %v1700 = vld [vmem:[%s327 + $0x12b] sm:$0xff]
      %v1701 = vld [vmem:[%s327 + $0x13b] sm:$0xff]
      %v1702 = vld [vmem:[%s327 + $0x143] sm:$0xff]
      %v1703 = vld [vmem:[%s327 + $0x153] sm:$0xff]
      %v1704 = vld [vmem:[%s327 + $0x15b] sm:$0xff]
      %v1705 = vld [vmem:[%s327 + $0x16b] sm:$0xff]
      %v1706 = vld [vmem:[%s327 + $0x173] sm:$0xff]
      %v1707 = vlaneseq
      %v1708 = vshrl.u32 %v1707, 7
      %v1709 = vsub.s32 0, %v1708
      %v1710 = vrot.slane %v1674, %v1709
      %v1711 = vmul.f32 %v1675, %v1710
      %v1712 = vmul.f32 %v1676, %v1710
      %v1713 = vmul.f32 %v1677, %v1710
      %v1714 = vmul.f32 %v1678, %v1710
      %v1715 = vmul.f32 %v1679, %v1710
      %v1716 = vmul.f32 %v1680, %v1710
      %v1717 = vmul.f32 %v1681, %v1710
      %v1718 = vmul.f32 %v1682, %v1710
      %v1719 = vmul.f32 %v1683, %v1710
      %v1720 = vmul.f32 %v1684, %v1710
      %v1721 = vmul.f32 %v1685, %v1710
      %v1722 = vmul.f32 %v1686, %v1710
      %v1723 = vmul.f32 %v1687, %v1710
      %v1724 = vmul.f32 %v1688, %v1710
      %v1725 = vmul.f32 %v1689, %v1710
      %v1726 = vmul.f32 %v1690, %v1710
      %v1727 = vmul.f32 %v1691, %v1710
      %v1728 = vmul.f32 %v1692, %v1710
      %v1729 = vmul.f32 %v1693, %v1710
      %v1730 = vmul.f32 %v1694, %v1710
      %v1731 = vmul.f32 %v1695, %v1710
      %v1732 = vmul.f32 %v1696, %v1710
      %v1733 = vmul.f32 %v1697, %v1710
      %v1734 = vmul.f32 %v1698, %v1710
      %v1735 = vmul.f32 %v1699, %v1710
      %v1736 = vmul.f32 %v1700, %v1710
      %v1737 = vmul.f32 %v1701, %v1710
      %v1738 = vmul.f32 %v1702, %v1710
      %v1739 = vmul.f32 %v1703, %v1710
      %v1740 = vmul.f32 %v1704, %v1710
      %v1741 = vmul.f32 %v1705, %v1710
      %v1742 = vmul.f32 %v1706, %v1710
      %v1743 = vadd.f32 %v1642, %v1711
      %v1744 = vadd.f32 %v1643, %v1712
      %v1745 = vadd.f32 %v1644, %v1713
      %v1746 = vadd.f32 %v1645, %v1714
      %v1747 = vadd.f32 %v1646, %v1715
      %v1748 = vadd.f32 %v1647, %v1716
      %v1749 = vadd.f32 %v1648, %v1717
      %v1750 = vadd.f32 %v1649, %v1718
      %v1751 = vadd.f32 %v1650, %v1719
      %v1752 = vadd.f32 %v1651, %v1720
      %v1753 = vadd.f32 %v1652, %v1721
      %v1754 = vadd.f32 %v1653, %v1722
      %v1755 = vadd.f32 %v1654, %v1723
      %v1756 = vadd.f32 %v1655, %v1724
      %v1757 = vadd.f32 %v1656, %v1725
      %v1758 = vadd.f32 %v1657, %v1726
      %v1759 = vadd.f32 %v1658, %v1727
      %v1760 = vadd.f32 %v1659, %v1728
      %v1761 = vadd.f32 %v1660, %v1729
      %v1762 = vadd.f32 %v1661, %v1730
      %v1763 = vadd.f32 %v1662, %v1731
      %v1764 = vadd.f32 %v1663, %v1732
      %v1765 = vadd.f32 %v1664, %v1733
      %v1766 = vadd.f32 %v1665, %v1734
      %v1767 = vadd.f32 %v1666, %v1735
      %v1768 = vadd.f32 %v1667, %v1736
      %v1769 = vadd.f32 %v1668, %v1737
      %v1770 = vadd.f32 %v1669, %v1738
      %v1771 = vadd.f32 %v1670, %v1739
      %v1772 = vadd.f32 %v1671, %v1740
      %v1773 = vadd.f32 %v1672, %v1741
      %v1774 = vadd.f32 %v1673, %v1742
      %v1775 = vld [vmem:[%s213 + $0xe] sm:$0x1]
      %v1776 = vld [vmem:[%s327 + $0x4] sm:$0xff]
      %v1777 = vld [vmem:[%s327 + $0xc] sm:$0xff]
      %v1778 = vld [vmem:[%s327 + $0x1c] sm:$0xff]
      %v1779 = vld [vmem:[%s327 + $0x24] sm:$0xff]
      %v1780 = vld [vmem:[%s327 + $0x34] sm:$0xff]
      %v1781 = vld [vmem:[%s327 + $0x3c] sm:$0xff]
      %v1782 = vld [vmem:[%s327 + $0x4c] sm:$0xff]
      %v1783 = vld [vmem:[%s327 + $0x54] sm:$0xff]
      %v1784 = vld [vmem:[%s327 + $0x64] sm:$0xff]
      %v1785 = vld [vmem:[%s327 + $0x6c] sm:$0xff]
      %v1786 = vld [vmem:[%s327 + $0x7c] sm:$0xff]
      %v1787 = vld [vmem:[%s327 + $0x84] sm:$0xff]
      %v1788 = vld [vmem:[%s327 + $0x94] sm:$0xff]
      %v1789 = vld [vmem:[%s327 + $0x9c] sm:$0xff]
      %v1790 = vld [vmem:[%s327 + $0xac] sm:$0xff]
      %v1791 = vld [vmem:[%s327 + $0xb4] sm:$0xff]
      %v1792 = vld [vmem:[%s327 + $0xc4] sm:$0xff]
      %v1793 = vld [vmem:[%s327 + $0xcc] sm:$0xff]
      %v1794 = vld [vmem:[%s327 + $0xdc] sm:$0xff]
      %v1795 = vld [vmem:[%s327 + $0xe4] sm:$0xff]
      %v1796 = vld [vmem:[%s327 + $0xf4] sm:$0xff]
      %v1797 = vld [vmem:[%s327 + $0xfc] sm:$0xff]
      %v1798 = vld [vmem:[%s327 + $0x10c] sm:$0xff]
      %v1799 = vld [vmem:[%s327 + $0x114] sm:$0xff]
      %v1800 = vld [vmem:[%s327 + $0x124] sm:$0xff]
      %v1801 = vld [vmem:[%s327 + $0x12c] sm:$0xff]
      %v1802 = vld [vmem:[%s327 + $0x13c] sm:$0xff]
      %v1803 = vld [vmem:[%s327 + $0x144] sm:$0xff]
      %v1804 = vld [vmem:[%s327 + $0x154] sm:$0xff]
      %v1805 = vld [vmem:[%s327 + $0x15c] sm:$0xff]
      %v1806 = vld [vmem:[%s327 + $0x16c] sm:$0xff]
      %v1807 = vld [vmem:[%s327 + $0x174] sm:$0xff]
      %v1808 = vlaneseq
      %v1809 = vshrl.u32 %v1808, 7
      %v1810 = vsub.s32 0, %v1809
      %v1811 = vrot.slane %v1775, %v1810
      %v1812 = vmul.f32 %v1776, %v1811
      %v1813 = vmul.f32 %v1777, %v1811
      %v1814 = vmul.f32 %v1778, %v1811
      %v1815 = vmul.f32 %v1779, %v1811
      %v1816 = vmul.f32 %v1780, %v1811
      %v1817 = vmul.f32 %v1781, %v1811
      %v1818 = vmul.f32 %v1782, %v1811
      %v1819 = vmul.f32 %v1783, %v1811
      %v1820 = vmul.f32 %v1784, %v1811
      %v1821 = vmul.f32 %v1785, %v1811
      %v1822 = vmul.f32 %v1786, %v1811
      %v1823 = vmul.f32 %v1787, %v1811
      %v1824 = vmul.f32 %v1788, %v1811
      %v1825 = vmul.f32 %v1789, %v1811
      %v1826 = vmul.f32 %v1790, %v1811
      %v1827 = vmul.f32 %v1791, %v1811
      %v1828 = vmul.f32 %v1792, %v1811
      %v1829 = vmul.f32 %v1793, %v1811
      %v1830 = vmul.f32 %v1794, %v1811
      %v1831 = vmul.f32 %v1795, %v1811
      %v1832 = vmul.f32 %v1796, %v1811
      %v1833 = vmul.f32 %v1797, %v1811
      %v1834 = vmul.f32 %v1798, %v1811
      %v1835 = vmul.f32 %v1799, %v1811
      %v1836 = vmul.f32 %v1800, %v1811
      %v1837 = vmul.f32 %v1801, %v1811
      %v1838 = vmul.f32 %v1802, %v1811
      %v1839 = vmul.f32 %v1803, %v1811
      %v1840 = vmul.f32 %v1804, %v1811
      %v1841 = vmul.f32 %v1805, %v1811
      %v1842 = vmul.f32 %v1806, %v1811
      %v1843 = vmul.f32 %v1807, %v1811
      %v1844 = vadd.f32 %v1743, %v1812
      %v1845 = vadd.f32 %v1744, %v1813
      %v1846 = vadd.f32 %v1745, %v1814
      %v1847 = vadd.f32 %v1746, %v1815
      %v1848 = vadd.f32 %v1747, %v1816
      %v1849 = vadd.f32 %v1748, %v1817
      %v1850 = vadd.f32 %v1749, %v1818
      %v1851 = vadd.f32 %v1750, %v1819
      %v1852 = vadd.f32 %v1751, %v1820
      %v1853 = vadd.f32 %v1752, %v1821
      %v1854 = vadd.f32 %v1753, %v1822
      %v1855 = vadd.f32 %v1754, %v1823
      %v1856 = vadd.f32 %v1755, %v1824
      %v1857 = vadd.f32 %v1756, %v1825
      %v1858 = vadd.f32 %v1757, %v1826
      %v1859 = vadd.f32 %v1758, %v1827
      %v1860 = vadd.f32 %v1759, %v1828
      %v1861 = vadd.f32 %v1760, %v1829
      %v1862 = vadd.f32 %v1761, %v1830
      %v1863 = vadd.f32 %v1762, %v1831
      %v1864 = vadd.f32 %v1763, %v1832
      %v1865 = vadd.f32 %v1764, %v1833
      %v1866 = vadd.f32 %v1765, %v1834
      %v1867 = vadd.f32 %v1766, %v1835
      %v1868 = vadd.f32 %v1767, %v1836
      %v1869 = vadd.f32 %v1768, %v1837
      %v1870 = vadd.f32 %v1769, %v1838
      %v1871 = vadd.f32 %v1770, %v1839
      %v1872 = vadd.f32 %v1771, %v1840
      %v1873 = vadd.f32 %v1772, %v1841
      %v1874 = vadd.f32 %v1773, %v1842
      %v1875 = vadd.f32 %v1774, %v1843
      %v1876 = vld [vmem:[%s213 + $0xf] sm:$0x1]
      %s1877 = scalar_lea.vmem [#allocation2], 72
      %v1878 = vld [vmem:[%s1877] sm:$0xff]
      %v1879 = vld [vmem:[%s1877 + $0x8] sm:$0xff]
      %v1880 = vld [vmem:[%s1877 + $0x18] sm:$0xff]
      %v1881 = vld [vmem:[%s1877 + $0x20] sm:$0xff]
      %v1882 = vld [vmem:[%s1877 + $0x30] sm:$0xff]
      %v1883 = vld [vmem:[%s1877 + $0x38] sm:$0xff]
      %v1884 = vld [vmem:[%s1877 + $0x48] sm:$0xff]
      %v1885 = vld [vmem:[%s1877 + $0x50] sm:$0xff]
      %v1886 = vld [vmem:[%s1877 + $0x60] sm:$0xff]
      %v1887 = vld [vmem:[%s1877 + $0x68] sm:$0xff]
      %v1888 = vld [vmem:[%s1877 + $0x78] sm:$0xff]
      %v1889 = vld [vmem:[%s1877 + $0x80] sm:$0xff]
      %v1890 = vld [vmem:[%s1877 + $0x90] sm:$0xff]
      %v1891 = vld [vmem:[%s1877 + $0x98] sm:$0xff]
      %v1892 = vld [vmem:[%s1877 + $0xa8] sm:$0xff]
      %v1893 = vld [vmem:[%s1877 + $0xb0] sm:$0xff]
      %v1894 = vld [vmem:[%s1877 + $0xc0] sm:$0xff]
      %v1895 = vld [vmem:[%s1877 + $0xc8] sm:$0xff]
      %v1896 = vld [vmem:[%s1877 + $0xd8] sm:$0xff]
      %v1897 = vld [vmem:[%s1877 + $0xe0] sm:$0xff]
      %v1898 = vld [vmem:[%s1877 + $0xf0] sm:$0xff]
      %v1899 = vld [vmem:[%s1877 + $0xf8] sm:$0xff]
      %v1900 = vld [vmem:[%s1877 + $0x108] sm:$0xff]
      %v1901 = vld [vmem:[%s1877 + $0x110] sm:$0xff]
      %v1902 = vld [vmem:[%s1877 + $0x120] sm:$0xff]
      %v1903 = vld [vmem:[%s1877 + $0x128] sm:$0xff]
      %v1904 = vld [vmem:[%s1877 + $0x138] sm:$0xff]
      %v1905 = vld [vmem:[%s1877 + $0x140] sm:$0xff]
      %v1906 = vld [vmem:[%s1877 + $0x150] sm:$0xff]
      %v1907 = vld [vmem:[%s1877 + $0x158] sm:$0xff]
      %v1908 = vld [vmem:[%s1877 + $0x168] sm:$0xff]
      %v1909 = vld [vmem:[%s1877 + $0x170] sm:$0xff]
      %v1910 = vlaneseq
      %v1911 = vshrl.u32 %v1910, 7
      %v1912 = vsub.s32 0, %v1911
      %v1913 = vrot.slane %v1876, %v1912
      %v1914 = vmul.f32 %v1878, %v1913
      %v1915 = vmul.f32 %v1879, %v1913
      %v1916 = vmul.f32 %v1880, %v1913
      %v1917 = vmul.f32 %v1881, %v1913
      %v1918 = vmul.f32 %v1882, %v1913
      %v1919 = vmul.f32 %v1883, %v1913
      %v1920 = vmul.f32 %v1884, %v1913
      %v1921 = vmul.f32 %v1885, %v1913
      %v1922 = vmul.f32 %v1886, %v1913
      %v1923 = vmul.f32 %v1887, %v1913
      %v1924 = vmul.f32 %v1888, %v1913
      %v1925 = vmul.f32 %v1889, %v1913
      %v1926 = vmul.f32 %v1890, %v1913
      %v1927 = vmul.f32 %v1891, %v1913
      %v1928 = vmul.f32 %v1892, %v1913
      %v1929 = vmul.f32 %v1893, %v1913
      %v1930 = vmul.f32 %v1894, %v1913
      %v1931 = vmul.f32 %v1895, %v1913
      %v1932 = vmul.f32 %v1896, %v1913
      %v1933 = vmul.f32 %v1897, %v1913
      %v1934 = vmul.f32 %v1898, %v1913
      %v1935 = vmul.f32 %v1899, %v1913
      %v1936 = vmul.f32 %v1900, %v1913
      %v1937 = vmul.f32 %v1901, %v1913
      %v1938 = vmul.f32 %v1902, %v1913
      %v1939 = vmul.f32 %v1903, %v1913
      %v1940 = vmul.f32 %v1904, %v1913
      %v1941 = vmul.f32 %v1905, %v1913
      %v1942 = vmul.f32 %v1906, %v1913
      %v1943 = vmul.f32 %v1907, %v1913
      %v1944 = vmul.f32 %v1908, %v1913
      %v1945 = vmul.f32 %v1909, %v1913
      %v1946 = vadd.f32 %v1844, %v1914
      %v1947 = vadd.f32 %v1845, %v1915
      %v1948 = vadd.f32 %v1846, %v1916
      %v1949 = vadd.f32 %v1847, %v1917
      %v1950 = vadd.f32 %v1848, %v1918
      %v1951 = vadd.f32 %v1849, %v1919
      %v1952 = vadd.f32 %v1850, %v1920
      %v1953 = vadd.f32 %v1851, %v1921
      %v1954 = vadd.f32 %v1852, %v1922
      %v1955 = vadd.f32 %v1853, %v1923
      %v1956 = vadd.f32 %v1854, %v1924
      %v1957 = vadd.f32 %v1855, %v1925
      %v1958 = vadd.f32 %v1856, %v1926
      %v1959 = vadd.f32 %v1857, %v1927
      %v1960 = vadd.f32 %v1858, %v1928
      %v1961 = vadd.f32 %v1859, %v1929
      %v1962 = vadd.f32 %v1860, %v1930
      %v1963 = vadd.f32 %v1861, %v1931
      %v1964 = vadd.f32 %v1862, %v1932
      %v1965 = vadd.f32 %v1863, %v1933
      %v1966 = vadd.f32 %v1864, %v1934
      %v1967 = vadd.f32 %v1865, %v1935
      %v1968 = vadd.f32 %v1866, %v1936
      %v1969 = vadd.f32 %v1867, %v1937
      %v1970 = vadd.f32 %v1868, %v1938
      %v1971 = vadd.f32 %v1869, %v1939
      %v1972 = vadd.f32 %v1870, %v1940
      %v1973 = vadd.f32 %v1871, %v1941
      %v1974 = vadd.f32 %v1872, %v1942
      %v1975 = vadd.f32 %v1873, %v1943
      %v1976 = vadd.f32 %v1874, %v1944
      %v1977 = vadd.f32 %v1875, %v1945
      %v1978 = vld [vmem:[%s213 + $0x10] sm:$0x1]
      %v1979 = vld [vmem:[%s1877 + $0x1] sm:$0xff]
      %v1980 = vld [vmem:[%s1877 + $0x9] sm:$0xff]
      %v1981 = vld [vmem:[%s1877 + $0x19] sm:$0xff]
      %v1982 = vld [vmem:[%s1877 + $0x21] sm:$0xff]
      %v1983 = vld [vmem:[%s1877 + $0x31] sm:$0xff]
      %v1984 = vld [vmem:[%s1877 + $0x39] sm:$0xff]
      %v1985 = vld [vmem:[%s1877 + $0x49] sm:$0xff]
      %v1986 = vld [vmem:[%s1877 + $0x51] sm:$0xff]
      %v1987 = vld [vmem:[%s1877 + $0x61] sm:$0xff]
      %v1988 = vld [vmem:[%s1877 + $0x69] sm:$0xff]
      %v1989 = vld [vmem:[%s1877 + $0x79] sm:$0xff]
      %v1990 = vld [vmem:[%s1877 + $0x81] sm:$0xff]
      %v1991 = vld [vmem:[%s1877 + $0x91] sm:$0xff]
      %v1992 = vld [vmem:[%s1877 + $0x99] sm:$0xff]
      %v1993 = vld [vmem:[%s1877 + $0xa9] sm:$0xff]
      %v1994 = vld [vmem:[%s1877 + $0xb1] sm:$0xff]
      %v1995 = vld [vmem:[%s1877 + $0xc1] sm:$0xff]
      %v1996 = vld [vmem:[%s1877 + $0xc9] sm:$0xff]
      %v1997 = vld [vmem:[%s1877 + $0xd9] sm:$0xff]
      %v1998 = vld [vmem:[%s1877 + $0xe1] sm:$0xff]
      %v1999 = vld [vmem:[%s1877 + $0xf1] sm:$0xff]
      %v2000 = vld [vmem:[%s1877 + $0xf9] sm:$0xff]
      %v2001 = vld [vmem:[%s1877 + $0x109] sm:$0xff]
      %v2002 = vld [vmem:[%s1877 + $0x111] sm:$0xff]
      %v2003 = vld [vmem:[%s1877 + $0x121] sm:$0xff]
      %v2004 = vld [vmem:[%s1877 + $0x129] sm:$0xff]
      %v2005 = vld [vmem:[%s1877 + $0x139] sm:$0xff]
      %v2006 = vld [vmem:[%s1877 + $0x141] sm:$0xff]
      %v2007 = vld [vmem:[%s1877 + $0x151] sm:$0xff]
      %v2008 = vld [vmem:[%s1877 + $0x159] sm:$0xff]
      %v2009 = vld [vmem:[%s1877 + $0x169] sm:$0xff]
      %v2010 = vld [vmem:[%s1877 + $0x171] sm:$0xff]
      %v2011 = vlaneseq
      %v2012 = vshrl.u32 %v2011, 7
      %v2013 = vsub.s32 0, %v2012
      %v2014 = vrot.slane %v1978, %v2013
      %v2015 = vmul.f32 %v1979, %v2014
      %v2016 = vmul.f32 %v1980, %v2014
      %v2017 = vmul.f32 %v1981, %v2014
      %v2018 = vmul.f32 %v1982, %v2014
      %v2019 = vmul.f32 %v1983, %v2014
      %v2020 = vmul.f32 %v1984, %v2014
      %v2021 = vmul.f32 %v1985, %v2014
      %v2022 = vmul.f32 %v1986, %v2014
      %v2023 = vmul.f32 %v1987, %v2014
      %v2024 = vmul.f32 %v1988, %v2014
      %v2025 = vmul.f32 %v1989, %v2014
      %v2026 = vmul.f32 %v1990, %v2014
      %v2027 = vmul.f32 %v1991, %v2014
      %v2028 = vmul.f32 %v1992, %v2014
      %v2029 = vmul.f32 %v1993, %v2014
      %v2030 = vmul.f32 %v1994, %v2014
      %v2031 = vmul.f32 %v1995, %v2014
      %v2032 = vmul.f32 %v1996, %v2014
      %v2033 = vmul.f32 %v1997, %v2014
      %v2034 = vmul.f32 %v1998, %v2014
      %v2035 = vmul.f32 %v1999, %v2014
      %v2036 = vmul.f32 %v2000, %v2014
      %v2037 = vmul.f32 %v2001, %v2014
      %v2038 = vmul.f32 %v2002, %v2014
      %v2039 = vmul.f32 %v2003, %v2014
      %v2040 = vmul.f32 %v2004, %v2014
      %v2041 = vmul.f32 %v2005, %v2014
      %v2042 = vmul.f32 %v2006, %v2014
      %v2043 = vmul.f32 %v2007, %v2014
      %v2044 = vmul.f32 %v2008, %v2014
      %v2045 = vmul.f32 %v2009, %v2014
      %v2046 = vmul.f32 %v2010, %v2014
      %v2047 = vadd.f32 %v1946, %v2015
      %v2048 = vadd.f32 %v1947, %v2016
      %v2049 = vadd.f32 %v1948, %v2017
      %v2050 = vadd.f32 %v1949, %v2018
      %v2051 = vadd.f32 %v1950, %v2019
      %v2052 = vadd.f32 %v1951, %v2020
      %v2053 = vadd.f32 %v1952, %v2021
      %v2054 = vadd.f32 %v1953, %v2022
      %v2055 = vadd.f32 %v1954, %v2023
      %v2056 = vadd.f32 %v1955, %v2024
      %v2057 = vadd.f32 %v1956, %v2025
      %v2058 = vadd.f32 %v1957, %v2026
      %v2059 = vadd.f32 %v1958, %v2027
      %v2060 = vadd.f32 %v1959, %v2028
      %v2061 = vadd.f32 %v1960, %v2029
      %v2062 = vadd.f32 %v1961, %v2030
      %v2063 = vadd.f32 %v1962, %v2031
      %v2064 = vadd.f32 %v1963, %v2032
      %v2065 = vadd.f32 %v1964, %v2033
      %v2066 = vadd.f32 %v1965, %v2034
      %v2067 = vadd.f32 %v1966, %v2035
      %v2068 = vadd.f32 %v1967, %v2036
      %v2069 = vadd.f32 %v1968, %v2037
      %v2070 = vadd.f32 %v1969, %v2038
      %v2071 = vadd.f32 %v1970, %v2039
      %v2072 = vadd.f32 %v1971, %v2040
      %v2073 = vadd.f32 %v1972, %v2041
      %v2074 = vadd.f32 %v1973, %v2042
      %v2075 = vadd.f32 %v1974, %v2043
      %v2076 = vadd.f32 %v1975, %v2044
      %v2077 = vadd.f32 %v1976, %v2045
      %v2078 = vadd.f32 %v1977, %v2046
      %v2079 = vld [vmem:[%s213 + $0x11] sm:$0x1]
      %v2080 = vld [vmem:[%s1877 + $0x2] sm:$0xff]
      %v2081 = vld [vmem:[%s1877 + $0xa] sm:$0xff]
      %v2082 = vld [vmem:[%s1877 + $0x1a] sm:$0xff]
      %v2083 = vld [vmem:[%s1877 + $0x22] sm:$0xff]
      %v2084 = vld [vmem:[%s1877 + $0x32] sm:$0xff]
      %v2085 = vld [vmem:[%s1877 + $0x3a] sm:$0xff]
      %v2086 = vld [vmem:[%s1877 + $0x4a] sm:$0xff]
      %v2087 = vld [vmem:[%s1877 + $0x52] sm:$0xff]
      %v2088 = vld [vmem:[%s1877 + $0x62] sm:$0xff]
      %v2089 = vld [vmem:[%s1877 + $0x6a] sm:$0xff]
      %v2090 = vld [vmem:[%s1877 + $0x7a] sm:$0xff]
      %v2091 = vld [vmem:[%s1877 + $0x82] sm:$0xff]
      %v2092 = vld [vmem:[%s1877 + $0x92] sm:$0xff]
      %v2093 = vld [vmem:[%s1877 + $0x9a] sm:$0xff]
      %v2094 = vld [vmem:[%s1877 + $0xaa] sm:$0xff]
      %v2095 = vld [vmem:[%s1877 + $0xb2] sm:$0xff]
      %v2096 = vld [vmem:[%s1877 + $0xc2] sm:$0xff]
      %v2097 = vld [vmem:[%s1877 + $0xca] sm:$0xff]
      %v2098 = vld [vmem:[%s1877 + $0xda] sm:$0xff]
      %v2099 = vld [vmem:[%s1877 + $0xe2] sm:$0xff]
      %v2100 = vld [vmem:[%s1877 + $0xf2] sm:$0xff]
      %v2101 = vld [vmem:[%s1877 + $0xfa] sm:$0xff]
      %v2102 = vld [vmem:[%s1877 + $0x10a] sm:$0xff]
      %v2103 = vld [vmem:[%s1877 + $0x112] sm:$0xff]
      %v2104 = vld [vmem:[%s1877 + $0x122] sm:$0xff]
      %v2105 = vld [vmem:[%s1877 + $0x12a] sm:$0xff]
      %v2106 = vld [vmem:[%s1877 + $0x13a] sm:$0xff]
      %v2107 = vld [vmem:[%s1877 + $0x142] sm:$0xff]
      %v2108 = vld [vmem:[%s1877 + $0x152] sm:$0xff]
      %v2109 = vld [vmem:[%s1877 + $0x15a] sm:$0xff]
      %v2110 = vld [vmem:[%s1877 + $0x16a] sm:$0xff]
      %v2111 = vld [vmem:[%s1877 + $0x172] sm:$0xff]
      %v2112 = vlaneseq
      %v2113 = vshrl.u32 %v2112, 7
      %v2114 = vsub.s32 0, %v2113
      %v2115 = vrot.slane %v2079, %v2114
      %v2116 = vmul.f32 %v2080, %v2115
      %v2117 = vmul.f32 %v2081, %v2115
      %v2118 = vmul.f32 %v2082, %v2115
      %v2119 = vmul.f32 %v2083, %v2115
      %v2120 = vmul.f32 %v2084, %v2115
      %v2121 = vmul.f32 %v2085, %v2115
      %v2122 = vmul.f32 %v2086, %v2115
      %v2123 = vmul.f32 %v2087, %v2115
      %v2124 = vmul.f32 %v2088, %v2115
      %v2125 = vmul.f32 %v2089, %v2115
      %v2126 = vmul.f32 %v2090, %v2115
      %v2127 = vmul.f32 %v2091, %v2115
      %v2128 = vmul.f32 %v2092, %v2115
      %v2129 = vmul.f32 %v2093, %v2115
      %v2130 = vmul.f32 %v2094, %v2115
      %v2131 = vmul.f32 %v2095, %v2115
      %v2132 = vmul.f32 %v2096, %v2115
      %v2133 = vmul.f32 %v2097, %v2115
      %v2134 = vmul.f32 %v2098, %v2115
      %v2135 = vmul.f32 %v2099, %v2115
      %v2136 = vmul.f32 %v2100, %v2115
      %v2137 = vmul.f32 %v2101, %v2115
      %v2138 = vmul.f32 %v2102, %v2115
      %v2139 = vmul.f32 %v2103, %v2115
      %v2140 = vmul.f32 %v2104, %v2115
      %v2141 = vmul.f32 %v2105, %v2115
      %v2142 = vmul.f32 %v2106, %v2115
      %v2143 = vmul.f32 %v2107, %v2115
      %v2144 = vmul.f32 %v2108, %v2115
      %v2145 = vmul.f32 %v2109, %v2115
      %v2146 = vmul.f32 %v2110, %v2115
      %v2147 = vmul.f32 %v2111, %v2115
      %v2148 = vadd.f32 %v2047, %v2116
      %v2149 = vadd.f32 %v2048, %v2117
      %v2150 = vadd.f32 %v2049, %v2118
      %v2151 = vadd.f32 %v2050, %v2119
      %v2152 = vadd.f32 %v2051, %v2120
      %v2153 = vadd.f32 %v2052, %v2121
      %v2154 = vadd.f32 %v2053, %v2122
      %v2155 = vadd.f32 %v2054, %v2123
      %v2156 = vadd.f32 %v2055, %v2124
      %v2157 = vadd.f32 %v2056, %v2125
      %v2158 = vadd.f32 %v2057, %v2126
      %v2159 = vadd.f32 %v2058, %v2127
      %v2160 = vadd.f32 %v2059, %v2128
      %v2161 = vadd.f32 %v2060, %v2129
      %v2162 = vadd.f32 %v2061, %v2130
      %v2163 = vadd.f32 %v2062, %v2131
      %v2164 = vadd.f32 %v2063, %v2132
      %v2165 = vadd.f32 %v2064, %v2133
      %v2166 = vadd.f32 %v2065, %v2134
      %v2167 = vadd.f32 %v2066, %v2135
      %v2168 = vadd.f32 %v2067, %v2136
      %v2169 = vadd.f32 %v2068, %v2137
      %v2170 = vadd.f32 %v2069, %v2138
      %v2171 = vadd.f32 %v2070, %v2139
      %v2172 = vadd.f32 %v2071, %v2140
      %v2173 = vadd.f32 %v2072, %v2141
      %v2174 = vadd.f32 %v2073, %v2142
      %v2175 = vadd.f32 %v2074, %v2143
      %v2176 = vadd.f32 %v2075, %v2144
      %v2177 = vadd.f32 %v2076, %v2145
      %v2178 = vadd.f32 %v2077, %v2146
      %v2179 = vadd.f32 %v2078, %v2147
      %v2180 = vld [vmem:[%s213 + $0x12] sm:$0x1]
      %v2181 = vld [vmem:[%s1877 + $0x3] sm:$0xff]
      %v2182 = vld [vmem:[%s1877 + $0xb] sm:$0xff]
      %v2183 = vld [vmem:[%s1877 + $0x1b] sm:$0xff]
      %v2184 = vld [vmem:[%s1877 + $0x23] sm:$0xff]
      %v2185 = vld [vmem:[%s1877 + $0x33] sm:$0xff]
      %v2186 = vld [vmem:[%s1877 + $0x3b] sm:$0xff]
      %v2187 = vld [vmem:[%s1877 + $0x4b] sm:$0xff]
      %v2188 = vld [vmem:[%s1877 + $0x53] sm:$0xff]
      %v2189 = vld [vmem:[%s1877 + $0x63] sm:$0xff]
      %v2190 = vld [vmem:[%s1877 + $0x6b] sm:$0xff]
      %v2191 = vld [vmem:[%s1877 + $0x7b] sm:$0xff]
      %v2192 = vld [vmem:[%s1877 + $0x83] sm:$0xff]
      %v2193 = vld [vmem:[%s1877 + $0x93] sm:$0xff]
      %v2194 = vld [vmem:[%s1877 + $0x9b] sm:$0xff]
      %v2195 = vld [vmem:[%s1877 + $0xab] sm:$0xff]
      %v2196 = vld [vmem:[%s1877 + $0xb3] sm:$0xff]
      %v2197 = vld [vmem:[%s1877 + $0xc3] sm:$0xff]
      %v2198 = vld [vmem:[%s1877 + $0xcb] sm:$0xff]
      %v2199 = vld [vmem:[%s1877 + $0xdb] sm:$0xff]
      %v2200 = vld [vmem:[%s1877 + $0xe3] sm:$0xff]
      %v2201 = vld [vmem:[%s1877 + $0xf3] sm:$0xff]
      %v2202 = vld [vmem:[%s1877 + $0xfb] sm:$0xff]
      %v2203 = vld [vmem:[%s1877 + $0x10b] sm:$0xff]
      %v2204 = vld [vmem:[%s1877 + $0x113] sm:$0xff]
      %v2205 = vld [vmem:[%s1877 + $0x123] sm:$0xff]
      %v2206 = vld [vmem:[%s1877 + $0x12b] sm:$0xff]
      %v2207 = vld [vmem:[%s1877 + $0x13b] sm:$0xff]
      %v2208 = vld [vmem:[%s1877 + $0x143] sm:$0xff]
      %v2209 = vld [vmem:[%s1877 + $0x153] sm:$0xff]
      %v2210 = vld [vmem:[%s1877 + $0x15b] sm:$0xff]
      %v2211 = vld [vmem:[%s1877 + $0x16b] sm:$0xff]
      %v2212 = vld [vmem:[%s1877 + $0x173] sm:$0xff]
      %v2213 = vlaneseq
      %v2214 = vshrl.u32 %v2213, 7
      %v2215 = vsub.s32 0, %v2214
      %v2216 = vrot.slane %v2180, %v2215
      %v2217 = vmul.f32 %v2181, %v2216
      %v2218 = vmul.f32 %v2182, %v2216
      %v2219 = vmul.f32 %v2183, %v2216
      %v2220 = vmul.f32 %v2184, %v2216
      %v2221 = vmul.f32 %v2185, %v2216
      %v2222 = vmul.f32 %v2186, %v2216
      %v2223 = vmul.f32 %v2187, %v2216
      %v2224 = vmul.f32 %v2188, %v2216
      %v2225 = vmul.f32 %v2189, %v2216
      %v2226 = vmul.f32 %v2190, %v2216
      %v2227 = vmul.f32 %v2191, %v2216
      %v2228 = vmul.f32 %v2192, %v2216
      %v2229 = vmul.f32 %v2193, %v2216
      %v2230 = vmul.f32 %v2194, %v2216
      %v2231 = vmul.f32 %v2195, %v2216
      %v2232 = vmul.f32 %v2196, %v2216
      %v2233 = vmul.f32 %v2197, %v2216
      %v2234 = vmul.f32 %v2198, %v2216
      %v2235 = vmul.f32 %v2199, %v2216
      %v2236 = vmul.f32 %v2200, %v2216
      %v2237 = vmul.f32 %v2201, %v2216
      %v2238 = vmul.f32 %v2202, %v2216
      %v2239 = vmul.f32 %v2203, %v2216
      %v2240 = vmul.f32 %v2204, %v2216
      %v2241 = vmul.f32 %v2205, %v2216
      %v2242 = vmul.f32 %v2206, %v2216
      %v2243 = vmul.f32 %v2207, %v2216
      %v2244 = vmul.f32 %v2208, %v2216
      %v2245 = vmul.f32 %v2209, %v2216
      %v2246 = vmul.f32 %v2210, %v2216
      %v2247 = vmul.f32 %v2211, %v2216
      %v2248 = vmul.f32 %v2212, %v2216
      %v2249 = vadd.f32 %v2148, %v2217
      %v2250 = vadd.f32 %v2149, %v2218
      %v2251 = vadd.f32 %v2150, %v2219
      %v2252 = vadd.f32 %v2151, %v2220
      %v2253 = vadd.f32 %v2152, %v2221
      %v2254 = vadd.f32 %v2153, %v2222
      %v2255 = vadd.f32 %v2154, %v2223
      %v2256 = vadd.f32 %v2155, %v2224
      %v2257 = vadd.f32 %v2156, %v2225
      %v2258 = vadd.f32 %v2157, %v2226
      %v2259 = vadd.f32 %v2158, %v2227
      %v2260 = vadd.f32 %v2159, %v2228
      %v2261 = vadd.f32 %v2160, %v2229
      %v2262 = vadd.f32 %v2161, %v2230
      %v2263 = vadd.f32 %v2162, %v2231
      %v2264 = vadd.f32 %v2163, %v2232
      %v2265 = vadd.f32 %v2164, %v2233
      %v2266 = vadd.f32 %v2165, %v2234
      %v2267 = vadd.f32 %v2166, %v2235
      %v2268 = vadd.f32 %v2167, %v2236
      %v2269 = vadd.f32 %v2168, %v2237
      %v2270 = vadd.f32 %v2169, %v2238
      %v2271 = vadd.f32 %v2170, %v2239
      %v2272 = vadd.f32 %v2171, %v2240
      %v2273 = vadd.f32 %v2172, %v2241
      %v2274 = vadd.f32 %v2173, %v2242
      %v2275 = vadd.f32 %v2174, %v2243
      %v2276 = vadd.f32 %v2175, %v2244
      %v2277 = vadd.f32 %v2176, %v2245
      %v2278 = vadd.f32 %v2177, %v2246
      %v2279 = vadd.f32 %v2178, %v2247
      %v2280 = vadd.f32 %v2179, %v2248
      %v2281 = vld [vmem:[%s213 + $0x13] sm:$0x1]
      %v2282 = vld [vmem:[%s1877 + $0x4] sm:$0xff]
      %v2283 = vld [vmem:[%s1877 + $0xc] sm:$0xff]
      %v2284 = vld [vmem:[%s1877 + $0x1c] sm:$0xff]
      %v2285 = vld [vmem:[%s1877 + $0x24] sm:$0xff]
      %v2286 = vld [vmem:[%s1877 + $0x34] sm:$0xff]
      %v2287 = vld [vmem:[%s1877 + $0x3c] sm:$0xff]
      %v2288 = vld [vmem:[%s1877 + $0x4c] sm:$0xff]
      %v2289 = vld [vmem:[%s1877 + $0x54] sm:$0xff]
      %v2290 = vld [vmem:[%s1877 + $0x64] sm:$0xff]
      %v2291 = vld [vmem:[%s1877 + $0x6c] sm:$0xff]
      %v2292 = vld [vmem:[%s1877 + $0x7c] sm:$0xff]
      %v2293 = vld [vmem:[%s1877 + $0x84] sm:$0xff]
      %v2294 = vld [vmem:[%s1877 + $0x94] sm:$0xff]
      %v2295 = vld [vmem:[%s1877 + $0x9c] sm:$0xff]
      %v2296 = vld [vmem:[%s1877 + $0xac] sm:$0xff]
      %v2297 = vld [vmem:[%s1877 + $0xb4] sm:$0xff]
      %v2298 = vld [vmem:[%s1877 + $0xc4] sm:$0xff]
      %v2299 = vld [vmem:[%s1877 + $0xcc] sm:$0xff]
      %v2300 = vld [vmem:[%s1877 + $0xdc] sm:$0xff]
      %v2301 = vld [vmem:[%s1877 + $0xe4] sm:$0xff]
      %v2302 = vld [vmem:[%s1877 + $0xf4] sm:$0xff]
      %v2303 = vld [vmem:[%s1877 + $0xfc] sm:$0xff]
      %v2304 = vld [vmem:[%s1877 + $0x10c] sm:$0xff]
      %v2305 = vld [vmem:[%s1877 + $0x114] sm:$0xff]
      %v2306 = vld [vmem:[%s1877 + $0x124] sm:$0xff]
      %v2307 = vld [vmem:[%s1877 + $0x12c] sm:$0xff]
      %v2308 = vld [vmem:[%s1877 + $0x13c] sm:$0xff]
      %v2309 = vld [vmem:[%s1877 + $0x144] sm:$0xff]
      %v2310 = vld [vmem:[%s1877 + $0x154] sm:$0xff]
      %v2311 = vld [vmem:[%s1877 + $0x15c] sm:$0xff]
      %v2312 = vld [vmem:[%s1877 + $0x16c] sm:$0xff]
      %v2313 = vld [vmem:[%s1877 + $0x174] sm:$0xff]
      %v2314 = vlaneseq
      %v2315 = vshrl.u32 %v2314, 7
      %v2316 = vsub.s32 0, %v2315
      %v2317 = vrot.slane %v2281, %v2316
      %v2318 = vmul.f32 %v2282, %v2317
      %v2319 = vmul.f32 %v2283, %v2317
      %v2320 = vmul.f32 %v2284, %v2317
      %v2321 = vmul.f32 %v2285, %v2317
      %v2322 = vmul.f32 %v2286, %v2317
      %v2323 = vmul.f32 %v2287, %v2317
      %v2324 = vmul.f32 %v2288, %v2317
      %v2325 = vmul.f32 %v2289, %v2317
      %v2326 = vmul.f32 %v2290, %v2317
      %v2327 = vmul.f32 %v2291, %v2317
      %v2328 = vmul.f32 %v2292, %v2317
      %v2329 = vmul.f32 %v2293, %v2317
      %v2330 = vmul.f32 %v2294, %v2317
      %v2331 = vmul.f32 %v2295, %v2317
      %v2332 = vmul.f32 %v2296, %v2317
      %v2333 = vmul.f32 %v2297, %v2317
      %v2334 = vmul.f32 %v2298, %v2317
      %v2335 = vmul.f32 %v2299, %v2317
      %v2336 = vmul.f32 %v2300, %v2317
      %v2337 = vmul.f32 %v2301, %v2317
      %v2338 = vmul.f32 %v2302, %v2317
      %v2339 = vmul.f32 %v2303, %v2317
      %v2340 = vmul.f32 %v2304, %v2317
      %v2341 = vmul.f32 %v2305, %v2317
      %v2342 = vmul.f32 %v2306, %v2317
      %v2343 = vmul.f32 %v2307, %v2317
      %v2344 = vmul.f32 %v2308, %v2317
      %v2345 = vmul.f32 %v2309, %v2317
      %v2346 = vmul.f32 %v2310, %v2317
      %v2347 = vmul.f32 %v2311, %v2317
      %v2348 = vmul.f32 %v2312, %v2317
      %v2349 = vmul.f32 %v2313, %v2317
      %v2350 = vadd.f32 %v2249, %v2318
      %v2351 = vadd.f32 %v2250, %v2319
      %v2352 = vadd.f32 %v2251, %v2320
      %v2353 = vadd.f32 %v2252, %v2321
      %v2354 = vadd.f32 %v2253, %v2322
      %v2355 = vadd.f32 %v2254, %v2323
      %v2356 = vadd.f32 %v2255, %v2324
      %v2357 = vadd.f32 %v2256, %v2325
      %v2358 = vadd.f32 %v2257, %v2326
      %v2359 = vadd.f32 %v2258, %v2327
      %v2360 = vadd.f32 %v2259, %v2328
      %v2361 = vadd.f32 %v2260, %v2329
      %v2362 = vadd.f32 %v2261, %v2330
      %v2363 = vadd.f32 %v2262, %v2331
      %v2364 = vadd.f32 %v2263, %v2332
      %v2365 = vadd.f32 %v2264, %v2333
      %v2366 = vadd.f32 %v2265, %v2334
      %v2367 = vadd.f32 %v2266, %v2335
      %v2368 = vadd.f32 %v2267, %v2336
      %v2369 = vadd.f32 %v2268, %v2337
      %v2370 = vadd.f32 %v2269, %v2338
      %v2371 = vadd.f32 %v2270, %v2339
      %v2372 = vadd.f32 %v2271, %v2340
      %v2373 = vadd.f32 %v2272, %v2341
      %v2374 = vadd.f32 %v2273, %v2342
      %v2375 = vadd.f32 %v2274, %v2343
      %v2376 = vadd.f32 %v2275, %v2344
      %v2377 = vadd.f32 %v2276, %v2345
      %v2378 = vadd.f32 %v2277, %v2346
      %v2379 = vadd.f32 %v2278, %v2347
      %v2380 = vadd.f32 %v2279, %v2348
      %v2381 = vadd.f32 %v2280, %v2349
      %v2382 = vld [vmem:[%s213 + $0x14] sm:$0x1]
      %s2383 = scalar_lea.vmem [#allocation2], 96
      %v2384 = vld [vmem:[%s2383] sm:$0xff]
      %v2385 = vld [vmem:[%s2383 + $0x8] sm:$0xff]
      %v2386 = vld [vmem:[%s2383 + $0x18] sm:$0xff]
      %v2387 = vld [vmem:[%s2383 + $0x20] sm:$0xff]
      %v2388 = vld [vmem:[%s2383 + $0x30] sm:$0xff]
      %v2389 = vld [vmem:[%s2383 + $0x38] sm:$0xff]
      %v2390 = vld [vmem:[%s2383 + $0x48] sm:$0xff]
      %v2391 = vld [vmem:[%s2383 + $0x50] sm:$0xff]
      %v2392 = vld [vmem:[%s2383 + $0x60] sm:$0xff]
      %v2393 = vld [vmem:[%s2383 + $0x68] sm:$0xff]
      %v2394 = vld [vmem:[%s2383 + $0x78] sm:$0xff]
      %v2395 = vld [vmem:[%s2383 + $0x80] sm:$0xff]
      %v2396 = vld [vmem:[%s2383 + $0x90] sm:$0xff]
      %v2397 = vld [vmem:[%s2383 + $0x98] sm:$0xff]
      %v2398 = vld [vmem:[%s2383 + $0xa8] sm:$0xff]
      %v2399 = vld [vmem:[%s2383 + $0xb0] sm:$0xff]
      %v2400 = vld [vmem:[%s2383 + $0xc0] sm:$0xff]
      %v2401 = vld [vmem:[%s2383 + $0xc8] sm:$0xff]
      %v2402 = vld [vmem:[%s2383 + $0xd8] sm:$0xff]
      %v2403 = vld [vmem:[%s2383 + $0xe0] sm:$0xff]
      %v2404 = vld [vmem:[%s2383 + $0xf0] sm:$0xff]
      %v2405 = vld [vmem:[%s2383 + $0xf8] sm:$0xff]
      %v2406 = vld [vmem:[%s2383 + $0x108] sm:$0xff]
      %v2407 = vld [vmem:[%s2383 + $0x110] sm:$0xff]
      %v2408 = vld [vmem:[%s2383 + $0x120] sm:$0xff]
      %v2409 = vld [vmem:[%s2383 + $0x128] sm:$0xff]
      %v2410 = vld [vmem:[%s2383 + $0x138] sm:$0xff]
      %v2411 = vld [vmem:[%s2383 + $0x140] sm:$0xff]
      %v2412 = vld [vmem:[%s2383 + $0x150] sm:$0xff]
      %v2413 = vld [vmem:[%s2383 + $0x158] sm:$0xff]
      %v2414 = vld [vmem:[%s2383 + $0x168] sm:$0xff]
      %v2415 = vld [vmem:[%s2383 + $0x170] sm:$0xff]
      %v2416 = vlaneseq
      %v2417 = vshrl.u32 %v2416, 7
      %v2418 = vsub.s32 0, %v2417
      %v2419 = vrot.slane %v2382, %v2418
      %v2420 = vmul.f32 %v2384, %v2419
      %v2421 = vmul.f32 %v2385, %v2419
      %v2422 = vmul.f32 %v2386, %v2419
      %v2423 = vmul.f32 %v2387, %v2419
      %v2424 = vmul.f32 %v2388, %v2419
      %v2425 = vmul.f32 %v2389, %v2419
      %v2426 = vmul.f32 %v2390, %v2419
      %v2427 = vmul.f32 %v2391, %v2419
      %v2428 = vmul.f32 %v2392, %v2419
      %v2429 = vmul.f32 %v2393, %v2419
      %v2430 = vmul.f32 %v2394, %v2419
      %v2431 = vmul.f32 %v2395, %v2419
      %v2432 = vmul.f32 %v2396, %v2419
      %v2433 = vmul.f32 %v2397, %v2419
      %v2434 = vmul.f32 %v2398, %v2419
      %v2435 = vmul.f32 %v2399, %v2419
      %v2436 = vmul.f32 %v2400, %v2419
      %v2437 = vmul.f32 %v2401, %v2419
      %v2438 = vmul.f32 %v2402, %v2419
      %v2439 = vmul.f32 %v2403, %v2419
      %v2440 = vmul.f32 %v2404, %v2419
      %v2441 = vmul.f32 %v2405, %v2419
      %v2442 = vmul.f32 %v2406, %v2419
      %v2443 = vmul.f32 %v2407, %v2419
      %v2444 = vmul.f32 %v2408, %v2419
      %v2445 = vmul.f32 %v2409, %v2419
      %v2446 = vmul.f32 %v2410, %v2419
      %v2447 = vmul.f32 %v2411, %v2419
      %v2448 = vmul.f32 %v2412, %v2419
      %v2449 = vmul.f32 %v2413, %v2419
      %v2450 = vmul.f32 %v2414, %v2419
      %v2451 = vmul.f32 %v2415, %v2419
      %v2452 = vadd.f32 %v2350, %v2420
      %v2453 = vadd.f32 %v2351, %v2421
      %v2454 = vadd.f32 %v2352, %v2422
      %v2455 = vadd.f32 %v2353, %v2423
      %v2456 = vadd.f32 %v2354, %v2424
      %v2457 = vadd.f32 %v2355, %v2425
      %v2458 = vadd.f32 %v2356, %v2426
      %v2459 = vadd.f32 %v2357, %v2427
      %v2460 = vadd.f32 %v2358, %v2428
      %v2461 = vadd.f32 %v2359, %v2429
      %v2462 = vadd.f32 %v2360, %v2430
      %v2463 = vadd.f32 %v2361, %v2431
      %v2464 = vadd.f32 %v2362, %v2432
      %v2465 = vadd.f32 %v2363, %v2433
      %v2466 = vadd.f32 %v2364, %v2434
      %v2467 = vadd.f32 %v2365, %v2435
      %v2468 = vadd.f32 %v2366, %v2436
      %v2469 = vadd.f32 %v2367, %v2437
      %v2470 = vadd.f32 %v2368, %v2438
      %v2471 = vadd.f32 %v2369, %v2439
      %v2472 = vadd.f32 %v2370, %v2440
      %v2473 = vadd.f32 %v2371, %v2441
      %v2474 = vadd.f32 %v2372, %v2442
      %v2475 = vadd.f32 %v2373, %v2443
      %v2476 = vadd.f32 %v2374, %v2444
      %v2477 = vadd.f32 %v2375, %v2445
      %v2478 = vadd.f32 %v2376, %v2446
      %v2479 = vadd.f32 %v2377, %v2447
      %v2480 = vadd.f32 %v2378, %v2448
      %v2481 = vadd.f32 %v2379, %v2449
      %v2482 = vadd.f32 %v2380, %v2450
      %v2483 = vadd.f32 %v2381, %v2451
      %v2484 = vld [vmem:[%s213 + $0x15] sm:$0x1]
      %v2485 = vld [vmem:[%s2383 + $0x1] sm:$0xff]
      %v2486 = vld [vmem:[%s2383 + $0x9] sm:$0xff]
      %v2487 = vld [vmem:[%s2383 + $0x19] sm:$0xff]
      %v2488 = vld [vmem:[%s2383 + $0x21] sm:$0xff]
      %v2489 = vld [vmem:[%s2383 + $0x31] sm:$0xff]
      %v2490 = vld [vmem:[%s2383 + $0x39] sm:$0xff]
      %v2491 = vld [vmem:[%s2383 + $0x49] sm:$0xff]
      %v2492 = vld [vmem:[%s2383 + $0x51] sm:$0xff]
      %v2493 = vld [vmem:[%s2383 + $0x61] sm:$0xff]
      %v2494 = vld [vmem:[%s2383 + $0x69] sm:$0xff]
      %v2495 = vld [vmem:[%s2383 + $0x79] sm:$0xff]
      %v2496 = vld [vmem:[%s2383 + $0x81] sm:$0xff]
      %v2497 = vld [vmem:[%s2383 + $0x91] sm:$0xff]
      %v2498 = vld [vmem:[%s2383 + $0x99] sm:$0xff]
      %v2499 = vld [vmem:[%s2383 + $0xa9] sm:$0xff]
      %v2500 = vld [vmem:[%s2383 + $0xb1] sm:$0xff]
      %v2501 = vld [vmem:[%s2383 + $0xc1] sm:$0xff]
      %v2502 = vld [vmem:[%s2383 + $0xc9] sm:$0xff]
      %v2503 = vld [vmem:[%s2383 + $0xd9] sm:$0xff]
      %v2504 = vld [vmem:[%s2383 + $0xe1] sm:$0xff]
      %v2505 = vld [vmem:[%s2383 + $0xf1] sm:$0xff]
      %v2506 = vld [vmem:[%s2383 + $0xf9] sm:$0xff]
      %v2507 = vld [vmem:[%s2383 + $0x109] sm:$0xff]
      %v2508 = vld [vmem:[%s2383 + $0x111] sm:$0xff]
      %v2509 = vld [vmem:[%s2383 + $0x121] sm:$0xff]
      %v2510 = vld [vmem:[%s2383 + $0x129] sm:$0xff]
      %v2511 = vld [vmem:[%s2383 + $0x139] sm:$0xff]
      %v2512 = vld [vmem:[%s2383 + $0x141] sm:$0xff]
      %v2513 = vld [vmem:[%s2383 + $0x151] sm:$0xff]
      %v2514 = vld [vmem:[%s2383 + $0x159] sm:$0xff]
      %v2515 = vld [vmem:[%s2383 + $0x169] sm:$0xff]
      %v2516 = vld [vmem:[%s2383 + $0x171] sm:$0xff]
      %v2517 = vlaneseq
      %v2518 = vshrl.u32 %v2517, 7
      %v2519 = vsub.s32 0, %v2518
      %v2520 = vrot.slane %v2484, %v2519
      %v2521 = vmul.f32 %v2485, %v2520
      %v2522 = vmul.f32 %v2486, %v2520
      %v2523 = vmul.f32 %v2487, %v2520
      %v2524 = vmul.f32 %v2488, %v2520
      %v2525 = vmul.f32 %v2489, %v2520
      %v2526 = vmul.f32 %v2490, %v2520
      %v2527 = vmul.f32 %v2491, %v2520
      %v2528 = vmul.f32 %v2492, %v2520
      %v2529 = vmul.f32 %v2493, %v2520
      %v2530 = vmul.f32 %v2494, %v2520
      %v2531 = vmul.f32 %v2495, %v2520
      %v2532 = vmul.f32 %v2496, %v2520
      %v2533 = vmul.f32 %v2497, %v2520
      %v2534 = vmul.f32 %v2498, %v2520
      %v2535 = vmul.f32 %v2499, %v2520
      %v2536 = vmul.f32 %v2500, %v2520
      %v2537 = vmul.f32 %v2501, %v2520
      %v2538 = vmul.f32 %v2502, %v2520
      %v2539 = vmul.f32 %v2503, %v2520
      %v2540 = vmul.f32 %v2504, %v2520
      %v2541 = vmul.f32 %v2505, %v2520
      %v2542 = vmul.f32 %v2506, %v2520
      %v2543 = vmul.f32 %v2507, %v2520
      %v2544 = vmul.f32 %v2508, %v2520
      %v2545 = vmul.f32 %v2509, %v2520
      %v2546 = vmul.f32 %v2510, %v2520
      %v2547 = vmul.f32 %v2511, %v2520
      %v2548 = vmul.f32 %v2512, %v2520
      %v2549 = vmul.f32 %v2513, %v2520
      %v2550 = vmul.f32 %v2514, %v2520
      %v2551 = vmul.f32 %v2515, %v2520
      %v2552 = vmul.f32 %v2516, %v2520
      %v2553 = vadd.f32 %v2452, %v2521
      %v2554 = vadd.f32 %v2453, %v2522
      %v2555 = vadd.f32 %v2454, %v2523
      %v2556 = vadd.f32 %v2455, %v2524
      %v2557 = vadd.f32 %v2456, %v2525
      %v2558 = vadd.f32 %v2457, %v2526
      %v2559 = vadd.f32 %v2458, %v2527
      %v2560 = vadd.f32 %v2459, %v2528
      %v2561 = vadd.f32 %v2460, %v2529
      %v2562 = vadd.f32 %v2461, %v2530
      %v2563 = vadd.f32 %v2462, %v2531
      %v2564 = vadd.f32 %v2463, %v2532
      %v2565 = vadd.f32 %v2464, %v2533
      %v2566 = vadd.f32 %v2465, %v2534
      %v2567 = vadd.f32 %v2466, %v2535
      %v2568 = vadd.f32 %v2467, %v2536
      %v2569 = vadd.f32 %v2468, %v2537
      %v2570 = vadd.f32 %v2469, %v2538
      %v2571 = vadd.f32 %v2470, %v2539
      %v2572 = vadd.f32 %v2471, %v2540
      %v2573 = vadd.f32 %v2472, %v2541
      %v2574 = vadd.f32 %v2473, %v2542
      %v2575 = vadd.f32 %v2474, %v2543
      %v2576 = vadd.f32 %v2475, %v2544
      %v2577 = vadd.f32 %v2476, %v2545
      %v2578 = vadd.f32 %v2477, %v2546
      %v2579 = vadd.f32 %v2478, %v2547
      %v2580 = vadd.f32 %v2479, %v2548
      %v2581 = vadd.f32 %v2480, %v2549
      %v2582 = vadd.f32 %v2481, %v2550
      %v2583 = vadd.f32 %v2482, %v2551
      %v2584 = vadd.f32 %v2483, %v2552
      %v2585 = vld [vmem:[%s213 + $0x16] sm:$0x1]
      %v2586 = vld [vmem:[%s2383 + $0x2] sm:$0xff]
      %v2587 = vld [vmem:[%s2383 + $0xa] sm:$0xff]
      %v2588 = vld [vmem:[%s2383 + $0x1a] sm:$0xff]
      %v2589 = vld [vmem:[%s2383 + $0x22] sm:$0xff]
      %v2590 = vld [vmem:[%s2383 + $0x32] sm:$0xff]
      %v2591 = vld [vmem:[%s2383 + $0x3a] sm:$0xff]
      %v2592 = vld [vmem:[%s2383 + $0x4a] sm:$0xff]
      %v2593 = vld [vmem:[%s2383 + $0x52] sm:$0xff]
      %v2594 = vld [vmem:[%s2383 + $0x62] sm:$0xff]
      %v2595 = vld [vmem:[%s2383 + $0x6a] sm:$0xff]
      %v2596 = vld [vmem:[%s2383 + $0x7a] sm:$0xff]
      %v2597 = vld [vmem:[%s2383 + $0x82] sm:$0xff]
      %v2598 = vld [vmem:[%s2383 + $0x92] sm:$0xff]
      %v2599 = vld [vmem:[%s2383 + $0x9a] sm:$0xff]
      %v2600 = vld [vmem:[%s2383 + $0xaa] sm:$0xff]
      %v2601 = vld [vmem:[%s2383 + $0xb2] sm:$0xff]
      %v2602 = vld [vmem:[%s2383 + $0xc2] sm:$0xff]
      %v2603 = vld [vmem:[%s2383 + $0xca] sm:$0xff]
      %v2604 = vld [vmem:[%s2383 + $0xda] sm:$0xff]
      %v2605 = vld [vmem:[%s2383 + $0xe2] sm:$0xff]
      %v2606 = vld [vmem:[%s2383 + $0xf2] sm:$0xff]
      %v2607 = vld [vmem:[%s2383 + $0xfa] sm:$0xff]
      %v2608 = vld [vmem:[%s2383 + $0x10a] sm:$0xff]
      %v2609 = vld [vmem:[%s2383 + $0x112] sm:$0xff]
      %v2610 = vld [vmem:[%s2383 + $0x122] sm:$0xff]
      %v2611 = vld [vmem:[%s2383 + $0x12a] sm:$0xff]
      %v2612 = vld [vmem:[%s2383 + $0x13a] sm:$0xff]
      %v2613 = vld [vmem:[%s2383 + $0x142] sm:$0xff]
      %v2614 = vld [vmem:[%s2383 + $0x152] sm:$0xff]
      %v2615 = vld [vmem:[%s2383 + $0x15a] sm:$0xff]
      %v2616 = vld [vmem:[%s2383 + $0x16a] sm:$0xff]
      %v2617 = vld [vmem:[%s2383 + $0x172] sm:$0xff]
      %v2618 = vlaneseq
      %v2619 = vshrl.u32 %v2618, 7
      %v2620 = vsub.s32 0, %v2619
      %v2621 = vrot.slane %v2585, %v2620
      %v2622 = vmul.f32 %v2586, %v2621
      %v2623 = vmul.f32 %v2587, %v2621
      %v2624 = vmul.f32 %v2588, %v2621
      %v2625 = vmul.f32 %v2589, %v2621
      %v2626 = vmul.f32 %v2590, %v2621
      %v2627 = vmul.f32 %v2591, %v2621
      %v2628 = vmul.f32 %v2592, %v2621
      %v2629 = vmul.f32 %v2593, %v2621
      %v2630 = vmul.f32 %v2594, %v2621
      %v2631 = vmul.f32 %v2595, %v2621
      %v2632 = vmul.f32 %v2596, %v2621
      %v2633 = vmul.f32 %v2597, %v2621
      %v2634 = vmul.f32 %v2598, %v2621
      %v2635 = vmul.f32 %v2599, %v2621
      %v2636 = vmul.f32 %v2600, %v2621
      %v2637 = vmul.f32 %v2601, %v2621
      %v2638 = vmul.f32 %v2602, %v2621
      %v2639 = vmul.f32 %v2603, %v2621
      %v2640 = vmul.f32 %v2604, %v2621
      %v2641 = vmul.f32 %v2605, %v2621
      %v2642 = vmul.f32 %v2606, %v2621
      %v2643 = vmul.f32 %v2607, %v2621
      %v2644 = vmul.f32 %v2608, %v2621
      %v2645 = vmul.f32 %v2609, %v2621
      %v2646 = vmul.f32 %v2610, %v2621
      %v2647 = vmul.f32 %v2611, %v2621
      %v2648 = vmul.f32 %v2612, %v2621
      %v2649 = vmul.f32 %v2613, %v2621
      %v2650 = vmul.f32 %v2614, %v2621
      %v2651 = vmul.f32 %v2615, %v2621
      %v2652 = vmul.f32 %v2616, %v2621
      %v2653 = vmul.f32 %v2617, %v2621
      %v2654 = vadd.f32 %v2553, %v2622
      %v2655 = vadd.f32 %v2554, %v2623
      %v2656 = vadd.f32 %v2555, %v2624
      %v2657 = vadd.f32 %v2556, %v2625
      %v2658 = vadd.f32 %v2557, %v2626
      %v2659 = vadd.f32 %v2558, %v2627
      %v2660 = vadd.f32 %v2559, %v2628
      %v2661 = vadd.f32 %v2560, %v2629
      %v2662 = vadd.f32 %v2561, %v2630
      %v2663 = vadd.f32 %v2562, %v2631
      %v2664 = vadd.f32 %v2563, %v2632
      %v2665 = vadd.f32 %v2564, %v2633
      %v2666 = vadd.f32 %v2565, %v2634
      %v2667 = vadd.f32 %v2566, %v2635
      %v2668 = vadd.f32 %v2567, %v2636
      %v2669 = vadd.f32 %v2568, %v2637
      %v2670 = vadd.f32 %v2569, %v2638
      %v2671 = vadd.f32 %v2570, %v2639
      %v2672 = vadd.f32 %v2571, %v2640
      %v2673 = vadd.f32 %v2572, %v2641
      %v2674 = vadd.f32 %v2573, %v2642
      %v2675 = vadd.f32 %v2574, %v2643
      %v2676 = vadd.f32 %v2575, %v2644
      %v2677 = vadd.f32 %v2576, %v2645
      %v2678 = vadd.f32 %v2577, %v2646
      %v2679 = vadd.f32 %v2578, %v2647
      %v2680 = vadd.f32 %v2579, %v2648
      %v2681 = vadd.f32 %v2580, %v2649
      %v2682 = vadd.f32 %v2581, %v2650
      %v2683 = vadd.f32 %v2582, %v2651
      %v2684 = vadd.f32 %v2583, %v2652
      %v2685 = vadd.f32 %v2584, %v2653
      %v2686 = vld [vmem:[%s213 + $0x17] sm:$0x1]
      %v2687 = vld [vmem:[%s2383 + $0x3] sm:$0xff]
      %v2688 = vld [vmem:[%s2383 + $0xb] sm:$0xff]
      %v2689 = vld [vmem:[%s2383 + $0x1b] sm:$0xff]
      %v2690 = vld [vmem:[%s2383 + $0x23] sm:$0xff]
      %v2691 = vld [vmem:[%s2383 + $0x33] sm:$0xff]
      %v2692 = vld [vmem:[%s2383 + $0x3b] sm:$0xff]
      %v2693 = vld [vmem:[%s2383 + $0x4b] sm:$0xff]
      %v2694 = vld [vmem:[%s2383 + $0x53] sm:$0xff]
      %v2695 = vld [vmem:[%s2383 + $0x63] sm:$0xff]
      %v2696 = vld [vmem:[%s2383 + $0x6b] sm:$0xff]
      %v2697 = vld [vmem:[%s2383 + $0x7b] sm:$0xff]
      %v2698 = vld [vmem:[%s2383 + $0x83] sm:$0xff]
      %v2699 = vld [vmem:[%s2383 + $0x93] sm:$0xff]
      %v2700 = vld [vmem:[%s2383 + $0x9b] sm:$0xff]
      %v2701 = vld [vmem:[%s2383 + $0xab] sm:$0xff]
      %v2702 = vld [vmem:[%s2383 + $0xb3] sm:$0xff]
      %v2703 = vld [vmem:[%s2383 + $0xc3] sm:$0xff]
      %v2704 = vld [vmem:[%s2383 + $0xcb] sm:$0xff]
      %v2705 = vld [vmem:[%s2383 + $0xdb] sm:$0xff]
      %v2706 = vld [vmem:[%s2383 + $0xe3] sm:$0xff]
      %v2707 = vld [vmem:[%s2383 + $0xf3] sm:$0xff]
      %v2708 = vld [vmem:[%s2383 + $0xfb] sm:$0xff]
      %v2709 = vld [vmem:[%s2383 + $0x10b] sm:$0xff]
      %v2710 = vld [vmem:[%s2383 + $0x113] sm:$0xff]
      %v2711 = vld [vmem:[%s2383 + $0x123] sm:$0xff]
      %v2712 = vld [vmem:[%s2383 + $0x12b] sm:$0xff]
      %v2713 = vld [vmem:[%s2383 + $0x13b] sm:$0xff]
      %v2714 = vld [vmem:[%s2383 + $0x143] sm:$0xff]
      %v2715 = vld [vmem:[%s2383 + $0x153] sm:$0xff]
      %v2716 = vld [vmem:[%s2383 + $0x15b] sm:$0xff]
      %v2717 = vld [vmem:[%s2383 + $0x16b] sm:$0xff]
      %v2718 = vld [vmem:[%s2383 + $0x173] sm:$0xff]
      %v2719 = vlaneseq
      %v2720 = vshrl.u32 %v2719, 7
      %v2721 = vsub.s32 0, %v2720
      %v2722 = vrot.slane %v2686, %v2721
      %v2723 = vmul.f32 %v2687, %v2722
      %v2724 = vmul.f32 %v2688, %v2722
      %v2725 = vmul.f32 %v2689, %v2722
      %v2726 = vmul.f32 %v2690, %v2722
      %v2727 = vmul.f32 %v2691, %v2722
      %v2728 = vmul.f32 %v2692, %v2722
      %v2729 = vmul.f32 %v2693, %v2722
      %v2730 = vmul.f32 %v2694, %v2722
      %v2731 = vmul.f32 %v2695, %v2722
      %v2732 = vmul.f32 %v2696, %v2722
      %v2733 = vmul.f32 %v2697, %v2722
      %v2734 = vmul.f32 %v2698, %v2722
      %v2735 = vmul.f32 %v2699, %v2722
      %v2736 = vmul.f32 %v2700, %v2722
      %v2737 = vmul.f32 %v2701, %v2722
      %v2738 = vmul.f32 %v2702, %v2722
      %v2739 = vmul.f32 %v2703, %v2722
      %v2740 = vmul.f32 %v2704, %v2722
      %v2741 = vmul.f32 %v2705, %v2722
      %v2742 = vmul.f32 %v2706, %v2722
      %v2743 = vmul.f32 %v2707, %v2722
      %v2744 = vmul.f32 %v2708, %v2722
      %v2745 = vmul.f32 %v2709, %v2722
      %v2746 = vmul.f32 %v2710, %v2722
      %v2747 = vmul.f32 %v2711, %v2722
      %v2748 = vmul.f32 %v2712, %v2722
      %v2749 = vmul.f32 %v2713, %v2722
      %v2750 = vmul.f32 %v2714, %v2722
      %v2751 = vmul.f32 %v2715, %v2722
      %v2752 = vmul.f32 %v2716, %v2722
      %v2753 = vmul.f32 %v2717, %v2722
      %v2754 = vmul.f32 %v2718, %v2722
      %v2755 = vadd.f32 %v2654, %v2723
      %v2756 = vadd.f32 %v2655, %v2724
      %v2757 = vadd.f32 %v2656, %v2725
      %v2758 = vadd.f32 %v2657, %v2726
      %v2759 = vadd.f32 %v2658, %v2727
      %v2760 = vadd.f32 %v2659, %v2728
      %v2761 = vadd.f32 %v2660, %v2729
      %v2762 = vadd.f32 %v2661, %v2730
      %v2763 = vadd.f32 %v2662, %v2731
      %v2764 = vadd.f32 %v2663, %v2732
      %v2765 = vadd.f32 %v2664, %v2733
      %v2766 = vadd.f32 %v2665, %v2734
      %v2767 = vadd.f32 %v2666, %v2735
      %v2768 = vadd.f32 %v2667, %v2736
      %v2769 = vadd.f32 %v2668, %v2737
      %v2770 = vadd.f32 %v2669, %v2738
      %v2771 = vadd.f32 %v2670, %v2739
      %v2772 = vadd.f32 %v2671, %v2740
      %v2773 = vadd.f32 %v2672, %v2741
      %v2774 = vadd.f32 %v2673, %v2742
      %v2775 = vadd.f32 %v2674, %v2743
      %v2776 = vadd.f32 %v2675, %v2744
      %v2777 = vadd.f32 %v2676, %v2745
      %v2778 = vadd.f32 %v2677, %v2746
      %v2779 = vadd.f32 %v2678, %v2747
      %v2780 = vadd.f32 %v2679, %v2748
      %v2781 = vadd.f32 %v2680, %v2749
      %v2782 = vadd.f32 %v2681, %v2750
      %v2783 = vadd.f32 %v2682, %v2751
      %v2784 = vadd.f32 %v2683, %v2752
      %v2785 = vadd.f32 %v2684, %v2753
      %v2786 = vadd.f32 %v2685, %v2754
      %v2787 = vld [vmem:[%s213 + $0x18] sm:$0x1]
      %v2788 = vld [vmem:[%s2383 + $0x4] sm:$0xff]
      %v2789 = vld [vmem:[%s2383 + $0xc] sm:$0xff]
      %v2790 = vld [vmem:[%s2383 + $0x1c] sm:$0xff]
      %v2791 = vld [vmem:[%s2383 + $0x24] sm:$0xff]
      %v2792 = vld [vmem:[%s2383 + $0x34] sm:$0xff]
      %v2793 = vld [vmem:[%s2383 + $0x3c] sm:$0xff]
      %v2794 = vld [vmem:[%s2383 + $0x4c] sm:$0xff]
      %v2795 = vld [vmem:[%s2383 + $0x54] sm:$0xff]
      %v2796 = vld [vmem:[%s2383 + $0x64] sm:$0xff]
      %v2797 = vld [vmem:[%s2383 + $0x6c] sm:$0xff]
      %v2798 = vld [vmem:[%s2383 + $0x7c] sm:$0xff]
      %v2799 = vld [vmem:[%s2383 + $0x84] sm:$0xff]
      %v2800 = vld [vmem:[%s2383 + $0x94] sm:$0xff]
      %v2801 = vld [vmem:[%s2383 + $0x9c] sm:$0xff]
      %v2802 = vld [vmem:[%s2383 + $0xac] sm:$0xff]
      %v2803 = vld [vmem:[%s2383 + $0xb4] sm:$0xff]
      %v2804 = vld [vmem:[%s2383 + $0xc4] sm:$0xff]
      %v2805 = vld [vmem:[%s2383 + $0xcc] sm:$0xff]
      %v2806 = vld [vmem:[%s2383 + $0xdc] sm:$0xff]
      %v2807 = vld [vmem:[%s2383 + $0xe4] sm:$0xff]
      %v2808 = vld [vmem:[%s2383 + $0xf4] sm:$0xff]
      %v2809 = vld [vmem:[%s2383 + $0xfc] sm:$0xff]
      %v2810 = vld [vmem:[%s2383 + $0x10c] sm:$0xff]
      %v2811 = vld [vmem:[%s2383 + $0x114] sm:$0xff]
      %v2812 = vld [vmem:[%s2383 + $0x124] sm:$0xff]
      %v2813 = vld [vmem:[%s2383 + $0x12c] sm:$0xff]
      %v2814 = vld [vmem:[%s2383 + $0x13c] sm:$0xff]
      %v2815 = vld [vmem:[%s2383 + $0x144] sm:$0xff]
      %v2816 = vld [vmem:[%s2383 + $0x154] sm:$0xff]
      %v2817 = vld [vmem:[%s2383 + $0x15c] sm:$0xff]
      %v2818 = vld [vmem:[%s2383 + $0x16c] sm:$0xff]
      %v2819 = vld [vmem:[%s2383 + $0x174] sm:$0xff]
      %v2820 = vlaneseq
      %v2821 = vshrl.u32 %v2820, 7
      %v2822 = vsub.s32 0, %v2821
      %v2823 = vrot.slane %v2787, %v2822
      %v2824 = vmul.f32 %v2788, %v2823
      %v2825 = vmul.f32 %v2789, %v2823
      %v2826 = vmul.f32 %v2790, %v2823
      %v2827 = vmul.f32 %v2791, %v2823
      %v2828 = vmul.f32 %v2792, %v2823
      %v2829 = vmul.f32 %v2793, %v2823
      %v2830 = vmul.f32 %v2794, %v2823
      %v2831 = vmul.f32 %v2795, %v2823
      %v2832 = vmul.f32 %v2796, %v2823
      %v2833 = vmul.f32 %v2797, %v2823
      %v2834 = vmul.f32 %v2798, %v2823
      %v2835 = vmul.f32 %v2799, %v2823
      %v2836 = vmul.f32 %v2800, %v2823
      %v2837 = vmul.f32 %v2801, %v2823
      %v2838 = vmul.f32 %v2802, %v2823
      %v2839 = vmul.f32 %v2803, %v2823
      %v2840 = vmul.f32 %v2804, %v2823
      %v2841 = vmul.f32 %v2805, %v2823
      %v2842 = vmul.f32 %v2806, %v2823
      %v2843 = vmul.f32 %v2807, %v2823
      %v2844 = vmul.f32 %v2808, %v2823
      %v2845 = vmul.f32 %v2809, %v2823
      %v2846 = vmul.f32 %v2810, %v2823
      %v2847 = vmul.f32 %v2811, %v2823
      %v2848 = vmul.f32 %v2812, %v2823
      %v2849 = vmul.f32 %v2813, %v2823
      %v2850 = vmul.f32 %v2814, %v2823
      %v2851 = vmul.f32 %v2815, %v2823
      %v2852 = vmul.f32 %v2816, %v2823
      %v2853 = vmul.f32 %v2817, %v2823
      %v2854 = vmul.f32 %v2818, %v2823
      %v2855 = vmul.f32 %v2819, %v2823
      %v2856 = vadd.f32 %v2755, %v2824
      %v2857 = vadd.f32 %v2756, %v2825
      %v2858 = vadd.f32 %v2757, %v2826
      %v2859 = vadd.f32 %v2758, %v2827
      %v2860 = vadd.f32 %v2759, %v2828
      %v2861 = vadd.f32 %v2760, %v2829
      %v2862 = vadd.f32 %v2761, %v2830
      %v2863 = vadd.f32 %v2762, %v2831
      %v2864 = vadd.f32 %v2763, %v2832
      %v2865 = vadd.f32 %v2764, %v2833
      %v2866 = vadd.f32 %v2765, %v2834
      %v2867 = vadd.f32 %v2766, %v2835
      %v2868 = vadd.f32 %v2767, %v2836
      %v2869 = vadd.f32 %v2768, %v2837
      %v2870 = vadd.f32 %v2769, %v2838
      %v2871 = vadd.f32 %v2770, %v2839
      %v2872 = vadd.f32 %v2771, %v2840
      %v2873 = vadd.f32 %v2772, %v2841
      %v2874 = vadd.f32 %v2773, %v2842
      %v2875 = vadd.f32 %v2774, %v2843
      %v2876 = vadd.f32 %v2775, %v2844
      %v2877 = vadd.f32 %v2776, %v2845
      %v2878 = vadd.f32 %v2777, %v2846
      %v2879 = vadd.f32 %v2778, %v2847
      %v2880 = vadd.f32 %v2779, %v2848
      %v2881 = vadd.f32 %v2780, %v2849
      %v2882 = vadd.f32 %v2781, %v2850
      %v2883 = vadd.f32 %v2782, %v2851
      %v2884 = vadd.f32 %v2783, %v2852
      %v2885 = vadd.f32 %v2784, %v2853
      %v2886 = vadd.f32 %v2785, %v2854
      %v2887 = vadd.f32 %v2786, %v2855
      %v2888 = vld [vmem:[%s216] sm:$0x1]
      %v2890 = vlaneseq
      %v2891 = vshrl.u32 %v2890, 7
      %v2892 = vsub.s32 0, %v2891
      %v2893 = vrot.slane %v2888, %v2892
      %v2895 = vadd.f32 %v2856, %v2893
      %v2896 = vadd.f32 %v2857, %v2893
      %v2897 = vadd.f32 %v2858, %v2893
      %v2898 = vadd.f32 %v2859, %v2893
      %v2899 = vadd.f32 %v2860, %v2893
      %v2900 = vadd.f32 %v2861, %v2893
      %v2901 = vadd.f32 %v2862, %v2893
      %v2902 = vadd.f32 %v2863, %v2893
      %v2903 = vadd.f32 %v2864, %v2893
      %v2904 = vadd.f32 %v2865, %v2893
      %v2905 = vadd.f32 %v2866, %v2893
      %v2906 = vadd.f32 %v2867, %v2893
      %v2907 = vadd.f32 %v2868, %v2893
      %v2908 = vadd.f32 %v2869, %v2893
      %v2909 = vadd.f32 %v2870, %v2893
      %v2910 = vadd.f32 %v2871, %v2893
      %v2911 = vadd.f32 %v2872, %v2893
      %v2912 = vadd.f32 %v2873, %v2893
      %v2913 = vadd.f32 %v2874, %v2893
      %v2914 = vadd.f32 %v2875, %v2893
      %v2915 = vadd.f32 %v2876, %v2893
      %v2916 = vadd.f32 %v2877, %v2893
      %v2917 = vadd.f32 %v2878, %v2893
      %v2918 = vadd.f32 %v2879, %v2893
      %v2919 = vadd.f32 %v2880, %v2893
      %v2920 = vadd.f32 %v2881, %v2893
      %v2921 = vadd.f32 %v2882, %v2893
      %v2922 = vadd.f32 %v2883, %v2893
      %v2923 = vadd.f32 %v2884, %v2893
      %v2924 = vadd.f32 %v2885, %v2893
      %v2925 = vadd.f32 %v2886, %v2893
      %v2926 = vadd.f32 %v2887, %v2893
      %v2927 = vmax.f32 %v2895, 0.0
      %v2928 = vmax.f32 %v2896, 0.0
      %v2929 = vmax.f32 %v2897, 0.0
      %v2930 = vmax.f32 %v2898, 0.0
      %v2931 = vmax.f32 %v2899, 0.0
      %v2932 = vmax.f32 %v2900, 0.0
      %v2933 = vmax.f32 %v2901, 0.0
      %v2934 = vmax.f32 %v2902, 0.0
      %v2935 = vmax.f32 %v2903, 0.0
      %v2936 = vmax.f32 %v2904, 0.0
      %v2937 = vmax.f32 %v2905, 0.0
      %v2938 = vmax.f32 %v2906, 0.0
      %v2939 = vmax.f32 %v2907, 0.0
      %v2940 = vmax.f32 %v2908, 0.0
      %v2941 = vmax.f32 %v2909, 0.0
      %v2942 = vmax.f32 %v2910, 0.0
      %v2943 = vmax.f32 %v2911, 0.0
      %v2944 = vmax.f32 %v2912, 0.0
      %v2945 = vmax.f32 %v2913, 0.0
      %v2946 = vmax.f32 %v2914, 0.0
      %v2947 = vmax.f32 %v2915, 0.0
      %v2948 = vmax.f32 %v2916, 0.0
      %v2949 = vmax.f32 %v2917, 0.0
      %v2950 = vmax.f32 %v2918, 0.0
      %v2951 = vmax.f32 %v2919, 0.0
      %v2952 = vmax.f32 %v2920, 0.0
      %v2953 = vmax.f32 %v2921, 0.0
      %v2954 = vmax.f32 %v2922, 0.0
      %v2955 = vmax.f32 %v2923, 0.0
      %v2956 = vmax.f32 %v2924, 0.0
      %v2957 = vmax.f32 %v2925, 0.0
      %v2958 = vmax.f32 %v2926, 0.0
      %v2959 = vmin.f32 %v2927, 6.0
      %v2960 = vmin.f32 %v2928, 6.0
      %v2961 = vmin.f32 %v2929, 6.0
      %v2962 = vmin.f32 %v2930, 6.0
      %v2963 = vmin.f32 %v2931, 6.0
      %v2964 = vmin.f32 %v2932, 6.0
      %v2965 = vmin.f32 %v2933, 6.0
      %v2966 = vmin.f32 %v2934, 6.0
      %v2967 = vmin.f32 %v2935, 6.0
      %v2968 = vmin.f32 %v2936, 6.0
      %v2969 = vmin.f32 %v2937, 6.0
      %v2970 = vmin.f32 %v2938, 6.0
      %v2971 = vmin.f32 %v2939, 6.0
      %v2972 = vmin.f32 %v2940, 6.0
      %v2973 = vmin.f32 %v2941, 6.0
      %v2974 = vmin.f32 %v2942, 6.0
      %v2975 = vmin.f32 %v2943, 6.0
      %v2976 = vmin.f32 %v2944, 6.0
      %v2977 = vmin.f32 %v2945, 6.0
      %v2978 = vmin.f32 %v2946, 6.0
      %v2979 = vmin.f32 %v2947, 6.0
      %v2980 = vmin.f32 %v2948, 6.0
      %v2981 = vmin.f32 %v2949, 6.0
      %v2982 = vmin.f32 %v2950, 6.0
      %v2983 = vmin.f32 %v2951, 6.0
      %v2984 = vmin.f32 %v2952, 6.0
      %v2985 = vmin.f32 %v2953, 6.0
      %v2986 = vmin.f32 %v2954, 6.0
      %v2987 = vmin.f32 %v2955, 6.0
      %v2988 = vmin.f32 %v2956, 6.0
      %v2989 = vmin.f32 %v2957, 6.0
      %v2990 = vmin.f32 %v2958, 6.0
      %2991 = vst.msk [vmem:[%s232] sm:$0xff] %vm233, %v2959
      %2992 = vst.msk [vmem:[%s232 + $0x8] sm:$0xff] %vm233, %v2960
      %2993 = vst.msk [vmem:[%s232 + $0x10] sm:$0xff] %vm233, %v2961
      %2994 = vst.msk [vmem:[%s232 + $0x18] sm:$0xff] %vm233, %v2962
      %2995 = vst.msk [vmem:[%s232 + $0x20] sm:$0xff] %vm233, %v2963
      %2996 = vst.msk [vmem:[%s232 + $0x28] sm:$0xff] %vm233, %v2964
      %2997 = vst.msk [vmem:[%s232 + $0x30] sm:$0xff] %vm233, %v2965
      %2998 = vst.msk [vmem:[%s232 + $0x38] sm:$0xff] %vm233, %v2966
      %2999 = vst.msk [vmem:[%s232 + $0x40] sm:$0xff] %vm233, %v2967
      %3000 = vst.msk [vmem:[%s232 + $0x48] sm:$0xff] %vm233, %v2968
      %3001 = vst.msk [vmem:[%s232 + $0x50] sm:$0xff] %vm233, %v2969
      %3002 = vst.msk [vmem:[%s232 + $0x58] sm:$0xff] %vm233, %v2970
      %3003 = vst.msk [vmem:[%s232 + $0x60] sm:$0xff] %vm233, %v2971
      %3004 = vst.msk [vmem:[%s232 + $0x68] sm:$0xff] %vm233, %v2972
      %3005 = vst.msk [vmem:[%s232 + $0x70] sm:$0xff] %vm233, %v2973
      %3006 = vst.msk [vmem:[%s232 + $0x78] sm:$0xff] %vm233, %v2974
      %3007 = vst.msk [vmem:[%s232 + $0x80] sm:$0xff] %vm233, %v2975
      %3008 = vst.msk [vmem:[%s232 + $0x88] sm:$0xff] %vm233, %v2976
      %3009 = vst.msk [vmem:[%s232 + $0x90] sm:$0xff] %vm233, %v2977
      %3010 = vst.msk [vmem:[%s232 + $0x98] sm:$0xff] %vm233, %v2978
      %3011 = vst.msk [vmem:[%s232 + $0xa0] sm:$0xff] %vm233, %v2979
      %3012 = vst.msk [vmem:[%s232 + $0xa8] sm:$0xff] %vm233, %v2980
      %3013 = vst.msk [vmem:[%s232 + $0xb0] sm:$0xff] %vm233, %v2981
      %3014 = vst.msk [vmem:[%s232 + $0xb8] sm:$0xff] %vm233, %v2982
      %3015 = vst.msk [vmem:[%s232 + $0xc0] sm:$0xff] %vm233, %v2983
      %3016 = vst.msk [vmem:[%s232 + $0xc8] sm:$0xff] %vm233, %v2984
      %3017 = vst.msk [vmem:[%s232 + $0xd0] sm:$0xff] %vm233, %v2985
      %3018 = vst.msk [vmem:[%s232 + $0xd8] sm:$0xff] %vm233, %v2986
      %3019 = vst.msk [vmem:[%s232 + $0xe0] sm:$0xff] %vm233, %v2987
      %3020 = vst.msk [vmem:[%s232 + $0xe8] sm:$0xff] %vm233, %v2988
      %3021 = vst.msk [vmem:[%s232 + $0xf0] sm:$0xff] %vm233, %v2989
      %3022 = vst.msk [vmem:[%s232 + $0xf8] sm:$0xff] %vm233, %v2990
      %p3023 = scmp.lt.s32.totalorder %s18, 1
      %s3024 = scalar_select %p3023, %s18, 1
      %p3025 = scmp.lt.s32.totalorder %s19, 0
      %s3026 = scalar_select %p3025, %s19, 0
      %s3027 = smul.addr %s3024, 32
      %s3028 = sadd.s32 %s3026, %s3027
      %s3029 = smul.addr %s3028, 8
      %s3030 = scalar_lea.vmem %s3, %s3029
      // Predicated region
      $region33: #{tpu_custom_call.1} parent=31 // pred_check
        %p3031 = pneg %p126
      $region34: #{tpu_custom_call.1} parent=31 // pred_check_branch
        %3033 = sbr.rel (%p3031) target = $region36
      $region35: #{tpu_custom_call.1} parent=31 // pred_region
        _
      $region36: #{tpu_custom_call.1} parent=31 // pred_fallthru
        _
    $region32: #{tpu_custom_call.1} parent=5 // pred_fallthru
      _
    %p3034 = scmp.le.s32.totalorder 2, %s9
    // Predicated region
    $region37: #{tpu_custom_call.1} parent=5 // pred_check
      %p3035 = pneg %p3034
    $region38: #{tpu_custom_call.1} parent=5 // pred_check_branch
      %3037 = sbr.rel (%p3035) target = $region40
    $region39: #{tpu_custom_call.1} parent=5 // pred_region
      %s3038 = ssub.s32 %s9, 2
      // Predicated region
      $region41: #{tpu_custom_call.1} parent=39 // pred_check
        %p3039 = pneg %p132
      $region42: #{tpu_custom_call.1} parent=39 // pred_check_branch
        %3041 = sbr.rel (%p3039) target = $region44
      $region43: #{tpu_custom_call.1} parent=39 // pred_region
        %p3042 = scmp.lt.s32.totalorder %s20, 1
        %s3043 = scalar_select %p3042, %s20, 1
        %p3044 = scmp.lt.s32.totalorder %s21, 0
        %s3045 = scalar_select %p3044, %s21, 0
        %s3046 = smul.addr %s3043, 32
        %s3047 = sadd.s32 %s3045, %s3046
        %s3048 = smul.addr %s3047, 8
        %s3049 = scalar_lea.vmem %s3, %s3048
      $region44: #{tpu_custom_call.1} parent=39 // pred_fallthru
        _
    $region40: #{tpu_custom_call.1} parent=5 // pred_fallthru
      _
  $region6: #{tpu_custom_call.1} parent=0 // loop_footer
    %s13 = sadd.s32 1, %s9
  $region7: #{tpu_custom_call.1} parent=0 // loop_footer_branch
    %8 = sbr.rel target = $region3
  $region8: #{tpu_custom_call.1} parent=0 // loop_exit
    _

</llo_original>
